<compile_context>
chip_gen: v7x
topology: tpu7x:2x2x1
jax: 0.10.0
libtpu: 0.0.40
codegen_flags: <defaults>
</compile_context>

<pallas_src>
import jax
import jax.numpy as jnp
from jax.experimental import pallas as pl
from jax.experimental.pallas import tpu as pltpu

D_IN = 1760
D_PAD = 1792          # 14 * 128 -- lane-aligned padding for the 1760-wide dims
H1 = 256
Z = 32
STATS_W = 128         # packed lane-dense stats slab: [mu | logvar | z | pad]
DROP_P = 0.3


def _round_up(x, m):
    return (x + m - 1) // m * m


def vae_dual_kernel(x_ref, w1_ref, b1_ref, wh_ref, bh_ref, w3_ref, b3_ref,
                    w4_ref, b4_ref, eps_ref, dmask_ref,
                    recon_ref, stats_ref):
    # encode: fc1 (bf16 weights, f32 accumulate) -> relu -> dropout
    x = x_ref[...].astype(jnp.bfloat16)
    h1 = jnp.dot(x, w1_ref[...], preferred_element_type=jnp.float32) + b1_ref[...]
    h1 = jnp.maximum(h1, 0.0)
    h1 = h1 * dmask_ref[...]                          # mask pre-scaled by 1/(1-p)

    # fused mu / logvar head: one (256, 64) matmul, slice the halves
    head = jnp.dot(h1, wh_ref[...], preferred_element_type=jnp.float32) + bh_ref[...]
    mu = head[:, :Z]
    logvar = head[:, Z:]

    # reparameterize
    std = jnp.exp(0.5 * logvar)
    z = mu + eps_ref[...] * std

    # decode: fc3 -> relu -> fc4 (bf16 weights, f32 accumulate) -> sigmoid
    h3 = jnp.dot(z, w3_ref[...], preferred_element_type=jnp.float32) + b3_ref[...]
    h3 = jnp.maximum(h3, 0.0)
    logits = jnp.dot(h3.astype(jnp.bfloat16), w4_ref[...],
                     preferred_element_type=jnp.float32) + b4_ref[...]
    recon_ref[...] = jax.nn.sigmoid(logits)

    # pack mu / logvar / z into one lane-dense 128-wide output slab
    stats_ref[...] = jnp.concatenate([mu, logvar, z, jnp.zeros_like(mu)], axis=-1)


@jax.jit
def vae_dual_forward(x, params, eps, dmask):
    B = x.shape[0]
    tile_b = 128 if B >= 128 else _round_up(B, 8)
    b_pad = _round_up(B, tile_b)
    nb = b_pad // tile_b

    # zero-pad batched tensors to (b_pad, ...) and x to the lane-aligned D_PAD
    x_p = jnp.zeros((b_pad, D_PAD), jnp.float32).at[:B, :D_IN].set(x)
    eps_p = jnp.zeros((b_pad, Z), jnp.float32).at[:B].set(eps)
    dmask_p = jnp.zeros((b_pad, H1), jnp.float32).at[:B].set(dmask)

    # Big weights: bf16 stream, pad the 1760 dims to 1792. Heads fused.
    w1_p = (jnp.zeros((D_PAD, H1), jnp.float32)
            .at[:D_IN].set(params["w1"]).astype(jnp.bfloat16))
    w4_p = (jnp.zeros((H1, D_PAD), jnp.float32)
            .at[:, :D_IN].set(params["w4"]).astype(jnp.bfloat16))
    b4_p = jnp.zeros((1, D_PAD), jnp.float32).at[:, :D_IN].set(params["b4"])
    wh = jnp.concatenate([params["w21"], params["w22"]], axis=1)   # (256, 64)
    bh = jnp.concatenate([params["b21"], params["b22"]], axis=1)   # (1, 64)

    def batched(feat):
        return pl.BlockSpec((tile_b, feat), lambda i: (i, 0))

    def resident(shape):
        # constant block index -> weight stays VMEM-resident across grid steps
        return pl.BlockSpec(shape, lambda i: (0, 0))

    inputs = (x_p, w1_p, params["b1"], wh, bh, params["w3"], params["b3"],
              w4_p, b4_p, eps_p, dmask_p)
    in_specs = [
        batched(D_PAD),
        resident(w1_p.shape), resident(params["b1"].shape),
        resident(wh.shape), resident(bh.shape),
        resident(params["w3"].shape), resident(params["b3"].shape),
        resident(w4_p.shape), resident(b4_p.shape),
        batched(Z), batched(H1),
    ]

    out_shapes = (
        jax.ShapeDtypeStruct((b_pad, D_PAD), jnp.float32),    # recon (padded)
        jax.ShapeDtypeStruct((b_pad, STATS_W), jnp.float32),  # [mu|logvar|z|pad]
    )
    out_specs = (batched(D_PAD), batched(STATS_W))

    recon_p, stats_p = pl.pallas_call(
        vae_dual_kernel,
        out_shape=out_shapes,
        grid=(nb,),
        in_specs=in_specs,
        out_specs=out_specs,
        compiler_params=pltpu.CompilerParams(
            dimension_semantics=("parallel",),   # batch tiles shard across TCs (v7x)
            vmem_limit_bytes=16 << 20,           # real footprint ~8 MiB; v7x-safe
        ),
    )(*inputs)

    recon = recon_p[:B, :D_IN]
    mu = stats_p[:B, 0:Z]
    logvar = stats_p[:B, Z:2 * Z]
    z = stats_p[:B, 2 * Z:3 * Z]
    return recon, mu, logvar, z


def init_params(key):
    """Deterministic init mimicking PyTorch Linear default (uniform +/- 1/sqrt(fan_in))."""
    def linear(key, fan_in, fan_out):
        kw, kb = jax.random.split(key)
        bound = 1.0 / jnp.sqrt(fan_in)
        w = jax.random.uniform(kw, (fan_in, fan_out), jnp.float32, -bound, bound)
        b = jax.random.uniform(kb, (1, fan_out), jnp.float32, -bound, bound)
        return w, b

    k1, k21, k22, k3, k4 = jax.random.split(key, 5)
    w1, b1 = linear(k1, D_IN, H1)
    w21, b21 = linear(k21, H1, Z)
    w22, b22 = linear(k22, H1, Z)
    w3, b3 = linear(k3, Z, H1)
    w4, b4 = linear(k4, H1, D_IN)
    return dict(w1=w1, b1=b1, w21=w21, b21=b21, w22=w22, b22=b22,
                w3=w3, b3=b3, w4=w4, b4=b4)


def vae_dual_reference(x, params, eps, dmask):
    """Pure-JAX f32 reference of the PyTorch forward (dropout mask provided)."""
    h1 = jnp.maximum(x @ params["w1"] + params["b1"], 0.0) * dmask
    mu = h1 @ params["w21"] + params["b21"]
    logvar = h1 @ params["w22"] + params["b22"]
    z = mu + eps * jnp.exp(0.5 * logvar)
    h3 = jnp.maximum(z @ params["w3"] + params["b3"], 0.0)
    recon = jax.nn.sigmoid(h3 @ params["w4"] + params["b4"])
    return recon, mu, logvar, z


if __name__ == "__main__":
    B = 2
    key = jax.random.PRNGKey(0)
    kp, kx, keps, kdrop = jax.random.split(key, 4)

    params = init_params(kp)
    x = jax.random.uniform(kx, (B, D_IN), jnp.float32)      # already flat (x.view(-1, 1760))
    eps = jax.random.normal(keps, (B, Z), jnp.float32)       # eps = randn_like(std)
    # training-mode dropout (module default); pass all-ones to emulate eval()
    keep = jax.random.bernoulli(kdrop, 1.0 - DROP_P, (B, H1)).astype(jnp.float32)
    dmask = keep / (1.0 - DROP_P)

    recon, mu, logvar, z = vae_dual_forward(x, params, eps, dmask)
    jax.block_until_ready((recon, mu, logvar, z))

    assert recon.shape == (B, D_IN) and mu.shape == (B, Z)
    assert logvar.shape == (B, Z) and z.shape == (B, Z)
    for t in (recon, mu, logvar, z):
        assert bool(jnp.all(jnp.isfinite(t)))

    # loose tolerance: fc1 / fc4 weights are streamed in bf16 (f32 accumulate)
    r_ref, mu_ref, lv_ref, z_ref = vae_dual_reference(x, params, eps, dmask)
    assert float(jnp.max(jnp.abs(recon - r_ref))) < 2e-2
    assert float(jnp.max(jnp.abs(mu - mu_ref))) < 2e-2
    assert float(jnp.max(jnp.abs(logvar - lv_ref))) < 2e-2
    assert float(jnp.max(jnp.abs(z - z_ref))) < 2e-2

    print("KERNEL_OK")
</pallas_src>

<mosaic_0001>
module attributes {stable_mosaic.version = 11 : i64} {
  func.func @vae_dual_kernel(%arg0: i32, %arg1: memref<8x1792xf32, #tpu.memory_space<vmem>>, %arg2: memref<1792x256xbf16, #tpu.memory_space<vmem>>, %arg3: memref<1x256xf32, #tpu.memory_space<vmem>>, %arg4: memref<256x64xf32, #tpu.memory_space<vmem>>, %arg5: memref<1x64xf32, #tpu.memory_space<vmem>>, %arg6: memref<32x256xf32, #tpu.memory_space<vmem>>, %arg7: memref<1x256xf32, #tpu.memory_space<vmem>>, %arg8: memref<256x1792xbf16, #tpu.memory_space<vmem>>, %arg9: memref<1x1792xf32, #tpu.memory_space<vmem>>, %arg10: memref<8x32xf32, #tpu.memory_space<vmem>>, %arg11: memref<8x256xf32, #tpu.memory_space<vmem>>, %arg12: memref<8x1792xf32, #tpu.memory_space<vmem>>, %arg13: memref<8x128xf32, #tpu.memory_space<vmem>>) attributes {dimension_semantics = [#tpu.dimension_semantics<parallel>], iteration_bounds = array<i64: 1>, scalar_prefetch = 0 : i64, scratch_operands = 0 : i64, tpu.core_type = #tpu.core_type<tc>, window_params = [{transform_indices = @transform_0, window_bounds = array<i64: 8, 1792>}, {pipeline_mode = #tpu.pipeline_mode<synchronous>, transform_indices = @transform_1, window_bounds = array<i64: 1792, 256>}, {pipeline_mode = #tpu.pipeline_mode<synchronous>, transform_indices = @transform_2, window_bounds = array<i64: 1, 256>}, {pipeline_mode = #tpu.pipeline_mode<synchronous>, transform_indices = @transform_3, window_bounds = array<i64: 256, 64>}, {pipeline_mode = #tpu.pipeline_mode<synchronous>, transform_indices = @transform_4, window_bounds = array<i64: 1, 64>}, {pipeline_mode = #tpu.pipeline_mode<synchronous>, transform_indices = @transform_5, window_bounds = array<i64: 32, 256>}, {pipeline_mode = #tpu.pipeline_mode<synchronous>, transform_indices = @transform_6, window_bounds = array<i64: 1, 256>}, {pipeline_mode = #tpu.pipeline_mode<synchronous>, transform_indices = @transform_7, window_bounds = array<i64: 256, 1792>}, {pipeline_mode = #tpu.pipeline_mode<synchronous>, transform_indices = @transform_8, window_bounds = array<i64: 1, 1792>}, {transform_indices = @transform_9, window_bounds = array<i64: 8, 32>}, {transform_indices = @transform_10, window_bounds = array<i64: 8, 256>}, {transform_indices = @transform_11, window_bounds = array<i64: 8, 1792>}, {transform_indices = @transform_12, window_bounds = array<i64: 8, 128>}]} {
    %c0 = arith.constant 0 : index
    %c0_0 = arith.constant 0 : index
    %0 = vector.load %arg1[%c0, %c0_0] : memref<8x1792xf32, #tpu.memory_space<vmem>>, vector<8x1792xf32>
    %1 = arith.truncf %0 : vector<8x1792xf32> to vector<8x1792xbf16>
    %c0_1 = arith.constant 0 : index
    %c0_2 = arith.constant 0 : index
    %2 = vector.load %arg2[%c0_1, %c0_2] : memref<1792x256xbf16, #tpu.memory_space<vmem>>, vector<1792x256xbf16>
    %cst = arith.constant dense<0.000000e+00> : vector<8x256xf32>
    %3 = tpu.matmul %1, %2, %cst {dimension_numbers = #tpu.dot_dimension_numbers<[1], [0], [0], [1], [0, 0, 1, 1], [], []>} : vector<8x1792xbf16>, vector<1792x256xbf16>, vector<8x256xf32> -> vector<8x256xf32>
    %c0_3 = arith.constant 0 : index
    %c0_4 = arith.constant 0 : index
    %4 = vector.load %arg3[%c0_3, %c0_4] : memref<1x256xf32, #tpu.memory_space<vmem>>, vector<1x256xf32>
    %5 = vector.broadcast %4 : vector<1x256xf32> to vector<8x256xf32>
    %6 = arith.addf %3, %5 : vector<8x256xf32>
    %cst_5 = arith.constant 0.000000e+00 : f32
    %7 = vector.broadcast %cst_5 : f32 to vector<8x256xf32>
    %8 = arith.maximumf %6, %7 : vector<8x256xf32>
    %c0_6 = arith.constant 0 : index
    %c0_7 = arith.constant 0 : index
    %9 = vector.load %arg11[%c0_6, %c0_7] : memref<8x256xf32, #tpu.memory_space<vmem>>, vector<8x256xf32>
    %10 = arith.mulf %8, %9 : vector<8x256xf32>
    %c0_8 = arith.constant 0 : index
    %c0_9 = arith.constant 0 : index
    %11 = vector.load %arg4[%c0_8, %c0_9] : memref<256x64xf32, #tpu.memory_space<vmem>>, vector<256x64xf32>
    %cst_10 = arith.constant dense<0.000000e+00> : vector<8x64xf32>
    %12 = tpu.matmul %10, %11, %cst_10 {dimension_numbers = #tpu.dot_dimension_numbers<[1], [0], [0], [1], [0, 0, 1, 1], [], []>} : vector<8x256xf32>, vector<256x64xf32>, vector<8x64xf32> -> vector<8x64xf32>
    %c0_11 = arith.constant 0 : index
    %c0_12 = arith.constant 0 : index
    %13 = vector.load %arg5[%c0_11, %c0_12] : memref<1x64xf32, #tpu.memory_space<vmem>>, vector<1x64xf32>
    %14 = vector.broadcast %13 : vector<1x64xf32> to vector<8x64xf32>
    %15 = arith.addf %12, %14 : vector<8x64xf32>
    %16 = vector.extract_strided_slice %15 {offsets = [0, 0], sizes = [8, 32], strides = [1, 1]} : vector<8x64xf32> to vector<8x32xf32>
    %17 = vector.extract_strided_slice %15 {offsets = [0, 32], sizes = [8, 32], strides = [1, 1]} : vector<8x64xf32> to vector<8x32xf32>
    %cst_13 = arith.constant 5.000000e-01 : f32
    %18 = vector.broadcast %cst_13 : f32 to vector<8x32xf32>
    %19 = arith.mulf %18, %17 : vector<8x32xf32>
    %20 = math.exp %19 : vector<8x32xf32>
    %c0_14 = arith.constant 0 : index
    %c0_15 = arith.constant 0 : index
    %21 = vector.load %arg10[%c0_14, %c0_15] : memref<8x32xf32, #tpu.memory_space<vmem>>, vector<8x32xf32>
    %22 = arith.mulf %21, %20 : vector<8x32xf32>
    %23 = arith.addf %16, %22 : vector<8x32xf32>
    %c0_16 = arith.constant 0 : index
    %c0_17 = arith.constant 0 : index
    %24 = vector.load %arg6[%c0_16, %c0_17] : memref<32x256xf32, #tpu.memory_space<vmem>>, vector<32x256xf32>
    %cst_18 = arith.constant dense<0.000000e+00> : vector<8x256xf32>
    %25 = tpu.matmul %23, %24, %cst_18 {dimension_numbers = #tpu.dot_dimension_numbers<[1], [0], [0], [1], [0, 0, 1, 1], [], []>} : vector<8x32xf32>, vector<32x256xf32>, vector<8x256xf32> -> vector<8x256xf32>
    %c0_19 = arith.constant 0 : index
    %c0_20 = arith.constant 0 : index
    %26 = vector.load %arg7[%c0_19, %c0_20] : memref<1x256xf32, #tpu.memory_space<vmem>>, vector<1x256xf32>
    %27 = vector.broadcast %26 : vector<1x256xf32> to vector<8x256xf32>
    %28 = arith.addf %25, %27 : vector<8x256xf32>
    %cst_21 = arith.constant 0.000000e+00 : f32
    %29 = vector.broadcast %cst_21 : f32 to vector<8x256xf32>
    %30 = arith.maximumf %28, %29 : vector<8x256xf32>
    %31 = arith.truncf %30 : vector<8x256xf32> to vector<8x256xbf16>
    %c0_22 = arith.constant 0 : index
    %c0_23 = arith.constant 0 : index
    %32 = vector.load %arg8[%c0_22, %c0_23] : memref<256x1792xbf16, #tpu.memory_space<vmem>>, vector<256x1792xbf16>
    %cst_24 = arith.constant dense<0.000000e+00> : vector<8x1792xf32>
    %33 = tpu.matmul %31, %32, %cst_24 {dimension_numbers = #tpu.dot_dimension_numbers<[1], [0], [0], [1], [0, 0, 1, 1], [], []>} : vector<8x256xbf16>, vector<256x1792xbf16>, vector<8x1792xf32> -> vector<8x1792xf32>
    %c0_25 = arith.constant 0 : index
    %c0_26 = arith.constant 0 : index
    %34 = vector.load %arg9[%c0_25, %c0_26] : memref<1x1792xf32, #tpu.memory_space<vmem>>, vector<1x1792xf32>
    %35 = vector.broadcast %34 : vector<1x1792xf32> to vector<8x1792xf32>
    %36 = arith.addf %33, %35 : vector<8x1792xf32>
    %37 = arith.negf %36 : vector<8x1792xf32>
    %38 = math.exp %37 : vector<8x1792xf32>
    %cst_27 = arith.constant 1.000000e+00 : f32
    %39 = vector.broadcast %cst_27 : f32 to vector<8x1792xf32>
    %40 = arith.addf %39, %38 : vector<8x1792xf32>
    %41 = arith.divf %39, %40 : vector<8x1792xf32>
    %c0_28 = arith.constant 0 : index
    %c0_29 = arith.constant 0 : index
    %42 = vector.load %arg12[%c0_28, %c0_29] : memref<8x1792xf32, #tpu.memory_space<vmem>>, vector<8x1792xf32>
    tpu.vector_store %arg12[%c0_28, %c0_29], %41 {strides = array<i32>} : memref<8x1792xf32, #tpu.memory_space<vmem>>, vector<8x1792xf32>,
    %cst_30 = arith.constant 0.000000e+00 : f32
    %43 = vector.broadcast %cst_30 : f32 to vector<8x32xf32>
    %44 = tpu.concatenate %16, %17, %23, %43 in 1 : vector<8x32xf32>, vector<8x32xf32>, vector<8x32xf32>, vector<8x32xf32> -> vector<8x128xf32>
    %c0_31 = arith.constant 0 : index
    %c0_32 = arith.constant 0 : index
    %45 = vector.load %arg13[%c0_31, %c0_32] : memref<8x128xf32, #tpu.memory_space<vmem>>, vector<8x128xf32>
    tpu.vector_store %arg13[%c0_31, %c0_32], %44 {strides = array<i32>} : memref<8x128xf32, #tpu.memory_space<vmem>>, vector<8x128xf32>,
    return
  }
  func.func @transform_0(%arg0: i32) -> (i32, i32) {
    %c0_i32 = arith.constant 0 : i32
    %c0_i32_0 = arith.constant 0 : i32
    return %arg0, %c0_i32 : i32, i32
  }
  func.func @transform_1(%arg0: i32) -> (i32, i32) {
    %c0_i32 = arith.constant 0 : i32
    %c0_i32_0 = arith.constant 0 : i32
    %c0_i32_1 = arith.constant 0 : i32
    return %c0_i32, %c0_i32_0 : i32, i32
  }
  func.func @transform_2(%arg0: i32) -> (i32, i32) {
    %c0_i32 = arith.constant 0 : i32
    %c0_i32_0 = arith.constant 0 : i32
    %c0_i32_1 = arith.constant 0 : i32
    return %c0_i32, %c0_i32_0 : i32, i32
  }
  func.func @transform_3(%arg0: i32) -> (i32, i32) {
    %c0_i32 = arith.constant 0 : i32
    %c0_i32_0 = arith.constant 0 : i32
    %c0_i32_1 = arith.constant 0 : i32
    return %c0_i32, %c0_i32_0 : i32, i32
  }
  func.func @transform_4(%arg0: i32) -> (i32, i32) {
    %c0_i32 = arith.constant 0 : i32
    %c0_i32_0 = arith.constant 0 : i32
    %c0_i32_1 = arith.constant 0 : i32
    return %c0_i32, %c0_i32_0 : i32, i32
  }
  func.func @transform_5(%arg0: i32) -> (i32, i32) {
    %c0_i32 = arith.constant 0 : i32
    %c0_i32_0 = arith.constant 0 : i32
    %c0_i32_1 = arith.constant 0 : i32
    return %c0_i32, %c0_i32_0 : i32, i32
  }
  func.func @transform_6(%arg0: i32) -> (i32, i32) {
    %c0_i32 = arith.constant 0 : i32
    %c0_i32_0 = arith.constant 0 : i32
    %c0_i32_1 = arith.constant 0 : i32
    return %c0_i32, %c0_i32_0 : i32, i32
  }
  func.func @transform_7(%arg0: i32) -> (i32, i32) {
    %c0_i32 = arith.constant 0 : i32
    %c0_i32_0 = arith.constant 0 : i32
    %c0_i32_1 = arith.constant 0 : i32
    return %c0_i32, %c0_i32_0 : i32, i32
  }
  func.func @transform_8(%arg0: i32) -> (i32, i32) {
    %c0_i32 = arith.constant 0 : i32
    %c0_i32_0 = arith.constant 0 : i32
    %c0_i32_1 = arith.constant 0 : i32
    return %c0_i32, %c0_i32_0 : i32, i32
  }
  func.func @transform_9(%arg0: i32) -> (i32, i32) {
    %c0_i32 = arith.constant 0 : i32
    %c0_i32_0 = arith.constant 0 : i32
    return %arg0, %c0_i32 : i32, i32
  }
  func.func @transform_10(%arg0: i32) -> (i32, i32) {
    %c0_i32 = arith.constant 0 : i32
    %c0_i32_0 = arith.constant 0 : i32
    return %arg0, %c0_i32 : i32, i32
  }
  func.func @transform_11(%arg0: i32) -> (i32, i32) {
    %c0_i32 = arith.constant 0 : i32
    %c0_i32_0 = arith.constant 0 : i32
    return %arg0, %c0_i32 : i32, i32
  }
  func.func @transform_12(%arg0: i32) -> (i32, i32) {
    %c0_i32 = arith.constant 0 : i32
    %c0_i32_0 = arith.constant 0 : i32
    return %arg0, %c0_i32 : i32, i32
  }
}

</mosaic_0001>

<llo_original>
// kernel: vae_dual_forward.1
$region0: #{vae_dual_forward.1}
  #allocation0 [shape = 'u32[]', space=smem, size = 0x4, offset = 0x4, fixed_abs, tag = 'smem constant byte address 0x4 - core index']
  #allocation1 [shape = 'u32[144,128]{1,0:T(1,128)}', space=vmem, size = 0x12000, scoped, tag = 'internal scratch']
  %s0 = inlined_call_operand.vmem [shape: f32[8,1792], index: 0, kind: input, shape index: {}]
  %s1 = inlined_call_operand.vmem [shape: bf16[1792,256], index: 1, kind: input, shape index: {}]
  %s2 = inlined_call_operand.vmem [shape: f32[1,256], index: 2, kind: input, shape index: {}]
  %s3 = inlined_call_operand.vmem [shape: f32[256,64], index: 3, kind: input, shape index: {}]
  %s4 = inlined_call_operand.vmem [shape: f32[1,64], index: 4, kind: input, shape index: {}]
  %s5 = inlined_call_operand.vmem [shape: f32[32,256], index: 5, kind: input, shape index: {}]
  %s6 = inlined_call_operand.vmem [shape: f32[1,256], index: 6, kind: input, shape index: {}]
  %s7 = inlined_call_operand.vmem [shape: bf16[256,1792], index: 7, kind: input, shape index: {}]
  %s8 = inlined_call_operand.vmem [shape: f32[1,1792], index: 8, kind: input, shape index: {}]
  %s9 = inlined_call_operand.vmem [shape: f32[8,32], index: 9, kind: input, shape index: {}]
  %s10 = inlined_call_operand.vmem [shape: f32[8,256], index: 10, kind: input, shape index: {}]
  %s11 = inlined_call_operand.vmem [shape: f32[8,1792], index: 11, kind: output, shape index: {0}]
  %s12 = inlined_call_operand.vmem [shape: f32[8,128], index: 12, kind: output, shape index: {1}]
  %13 = xla_tuple %s11, %s12
  %s14 = sld [smem:[#allocation0]]
  $region62: #{vae_dual_forward.1} parent=0
    _
  %s16 = ssub.s32 1, %s14
  %s17 = scalar_select 0, %s16, %s14
  // Predicated region
  $region2: #{vae_dual_forward.1} parent=0 // pred_check
    _
  $region3: #{vae_dual_forward.1} parent=0 // pred_check_branch
    %19 = sbr.rel (0) target = $region5
  $region4: #{vae_dual_forward.1} parent=0 // pred_region
    _
  $region5: #{vae_dual_forward.1} parent=0 // pred_fallthru
    _
  // Predicated region
  $region6: #{vae_dual_forward.1} parent=0 // pred_check
    _
  $region7: #{vae_dual_forward.1} parent=0 // pred_check_branch
    %21 = sbr.rel (0) target = $region9
  $region8: #{vae_dual_forward.1} parent=0 // pred_region
    _
  $region9: #{vae_dual_forward.1} parent=0 // pred_fallthru
    _
  // Predicated region
  $region10: #{vae_dual_forward.1} parent=0 // pred_check
    _
  $region11: #{vae_dual_forward.1} parent=0 // pred_check_branch
    %23 = sbr.rel (0) target = $region13
  $region12: #{vae_dual_forward.1} parent=0 // pred_region
    _
  $region13: #{vae_dual_forward.1} parent=0 // pred_fallthru
    _
  // Predicated region
  $region14: #{vae_dual_forward.1} parent=0 // pred_check
    _
  $region15: #{vae_dual_forward.1} parent=0 // pred_check_branch
    %25 = sbr.rel (0) target = $region17
  $region16: #{vae_dual_forward.1} parent=0 // pred_region
    _
  $region17: #{vae_dual_forward.1} parent=0 // pred_fallthru
    _
  // Predicated region
  $region18: #{vae_dual_forward.1} parent=0 // pred_check
    _
  $region19: #{vae_dual_forward.1} parent=0 // pred_check_branch
    %27 = sbr.rel (0) target = $region21
  $region20: #{vae_dual_forward.1} parent=0 // pred_region
    _
  $region21: #{vae_dual_forward.1} parent=0 // pred_fallthru
    _
  // Predicated region
  $region22: #{vae_dual_forward.1} parent=0 // pred_check
    _
  $region23: #{vae_dual_forward.1} parent=0 // pred_check_branch
    %29 = sbr.rel (0) target = $region25
  $region24: #{vae_dual_forward.1} parent=0 // pred_region
    _
  $region25: #{vae_dual_forward.1} parent=0 // pred_fallthru
    _
  // Predicated region
  $region26: #{vae_dual_forward.1} parent=0 // pred_check
    _
  $region27: #{vae_dual_forward.1} parent=0 // pred_check_branch
    %31 = sbr.rel (0) target = $region29
  $region28: #{vae_dual_forward.1} parent=0 // pred_region
    _
  $region29: #{vae_dual_forward.1} parent=0 // pred_fallthru
    _
  // Predicated region
  $region30: #{vae_dual_forward.1} parent=0 // pred_check
    _
  $region31: #{vae_dual_forward.1} parent=0 // pred_check_branch
    %33 = sbr.rel (0) target = $region33
  $region32: #{vae_dual_forward.1} parent=0 // pred_region
    _
  $region33: #{vae_dual_forward.1} parent=0 // pred_fallthru
    _
  // Predicated region
  $region34: #{vae_dual_forward.1} parent=0 // pred_check
    _
  $region35: #{vae_dual_forward.1} parent=0 // pred_check_branch
    %35 = sbr.rel (0) target = $region37
  $region36: #{vae_dual_forward.1} parent=0 // pred_region
    _
  $region37: #{vae_dual_forward.1} parent=0 // pred_fallthru
    _
  // Predicated region
  $region38: #{vae_dual_forward.1} parent=0 // pred_check
    _
  $region39: #{vae_dual_forward.1} parent=0 // pred_check_branch
    %37 = sbr.rel (0) target = $region41
  $region40: #{vae_dual_forward.1} parent=0 // pred_region
    _
  $region41: #{vae_dual_forward.1} parent=0 // pred_fallthru
    _
  // Predicated region
  $region42: #{vae_dual_forward.1} parent=0 // pred_check
    _
  $region43: #{vae_dual_forward.1} parent=0 // pred_check_branch
    %39 = sbr.rel (0) target = $region45
  $region44: #{vae_dual_forward.1} parent=0 // pred_region
    _
  $region45: #{vae_dual_forward.1} parent=0 // pred_fallthru
    _
  %v40 = vld [vmem:[%s0] sm:$0xff]
  %v41 = vld [vmem:[%s0 + $0x8] sm:$0xff]
  %v42 = vld [vmem:[%s0 + $0x10] sm:$0xff]
  %v43 = vld [vmem:[%s0 + $0x18] sm:$0xff]
  %v44 = vld [vmem:[%s0 + $0x20] sm:$0xff]
  %v45 = vld [vmem:[%s0 + $0x28] sm:$0xff]
  %v46 = vld [vmem:[%s0 + $0x30] sm:$0xff]
  %v47 = vld [vmem:[%s0 + $0x38] sm:$0xff]
  %v48 = vld [vmem:[%s0 + $0x40] sm:$0xff]
  %v49 = vld [vmem:[%s0 + $0x48] sm:$0xff]
  %v50 = vld [vmem:[%s0 + $0x50] sm:$0xff]
  %v51 = vld [vmem:[%s0 + $0x58] sm:$0xff]
  %v52 = vld [vmem:[%s0 + $0x60] sm:$0xff]
  %v53 = vld [vmem:[%s0 + $0x68] sm:$0xff]
  %v54 = vpack.c.bf16 %v40, %v40
  %v55 = vpack.c.bf16 %v41, %v41
  %v56 = vpack.c.bf16 %v42, %v42
  %v57 = vpack.c.bf16 %v43, %v43
  %v58 = vpack.c.bf16 %v44, %v44
  %v59 = vpack.c.bf16 %v45, %v45
  %v60 = vpack.c.bf16 %v46, %v46
  %v61 = vpack.c.bf16 %v47, %v47
  %v62 = vpack.c.bf16 %v48, %v48
  %v63 = vpack.c.bf16 %v49, %v49
  %v64 = vpack.c.bf16 %v50, %v50
  %v65 = vpack.c.bf16 %v51, %v51
  %v66 = vpack.c.bf16 %v52, %v52
  %v67 = vpack.c.bf16 %v53, %v53
  %v68 = vld [vmem:[%s1] sm:$0xff]
  %v69 = vld [vmem:[%s1 + $0x8] sm:$0xff]
  %v70 = vld [vmem:[%s1 + $0x10] sm:$0xff]
  %v71 = vld [vmem:[%s1 + $0x18] sm:$0xff]
  %v72 = vld [vmem:[%s1 + $0x20] sm:$0xff]
  %v73 = vld [vmem:[%s1 + $0x28] sm:$0xff]
  %v74 = vld [vmem:[%s1 + $0x30] sm:$0xff]
  %v75 = vld [vmem:[%s1 + $0x38] sm:$0xff]
  %v76 = vld [vmem:[%s1 + $0x40] sm:$0xff]
  %v77 = vld [vmem:[%s1 + $0x48] sm:$0xff]
  %v78 = vld [vmem:[%s1 + $0x50] sm:$0xff]
  %v79 = vld [vmem:[%s1 + $0x58] sm:$0xff]
  %v80 = vld [vmem:[%s1 + $0x60] sm:$0xff]
  %v81 = vld [vmem:[%s1 + $0x68] sm:$0xff]
  %v82 = vld [vmem:[%s1 + $0x70] sm:$0xff]
  %v83 = vld [vmem:[%s1 + $0x78] sm:$0xff]
  %v84 = vld [vmem:[%s1 + $0x80] sm:$0xff]
  %v85 = vld [vmem:[%s1 + $0x88] sm:$0xff]
  %v86 = vld [vmem:[%s1 + $0x90] sm:$0xff]
  %v87 = vld [vmem:[%s1 + $0x98] sm:$0xff]
  %v88 = vld [vmem:[%s1 + $0xa0] sm:$0xff]
  %v89 = vld [vmem:[%s1 + $0xa8] sm:$0xff]
  %v90 = vld [vmem:[%s1 + $0xb0] sm:$0xff]
  %v91 = vld [vmem:[%s1 + $0xb8] sm:$0xff]
  %v92 = vld [vmem:[%s1 + $0xc0] sm:$0xff]
  %v93 = vld [vmem:[%s1 + $0xc8] sm:$0xff]
  %v94 = vld [vmem:[%s1 + $0xd0] sm:$0xff]
  %v95 = vld [vmem:[%s1 + $0xd8] sm:$0xff]
  %v96 = vld [vmem:[%s1 + $0xe0] sm:$0xff]
  %v97 = vld [vmem:[%s1 + $0xe8] sm:$0xff]
  %v98 = vld [vmem:[%s1 + $0xf0] sm:$0xff]
  %v99 = vld [vmem:[%s1 + $0xf8] sm:$0xff]
  %v100 = vld [vmem:[%s1 + $0x100] sm:$0xff]
  %v101 = vld [vmem:[%s1 + $0x108] sm:$0xff]
  %v102 = vld [vmem:[%s1 + $0x110] sm:$0xff]
  %v103 = vld [vmem:[%s1 + $0x118] sm:$0xff]
  %v104 = vld [vmem:[%s1 + $0x120] sm:$0xff]
  %v105 = vld [vmem:[%s1 + $0x128] sm:$0xff]
  %v106 = vld [vmem:[%s1 + $0x130] sm:$0xff]
  %v107 = vld [vmem:[%s1 + $0x138] sm:$0xff]
  %v108 = vld [vmem:[%s1 + $0x140] sm:$0xff]
  %v109 = vld [vmem:[%s1 + $0x148] sm:$0xff]
  %v110 = vld [vmem:[%s1 + $0x150] sm:$0xff]
  %v111 = vld [vmem:[%s1 + $0x158] sm:$0xff]
  %v112 = vld [vmem:[%s1 + $0x160] sm:$0xff]
  %v113 = vld [vmem:[%s1 + $0x168] sm:$0xff]
  %v114 = vld [vmem:[%s1 + $0x170] sm:$0xff]
  %v115 = vld [vmem:[%s1 + $0x178] sm:$0xff]
  %v116 = vld [vmem:[%s1 + $0x180] sm:$0xff]
  %v117 = vld [vmem:[%s1 + $0x188] sm:$0xff]
  %v118 = vld [vmem:[%s1 + $0x190] sm:$0xff]
  %v119 = vld [vmem:[%s1 + $0x198] sm:$0xff]
  %v120 = vld [vmem:[%s1 + $0x1a0] sm:$0xff]
  %v121 = vld [vmem:[%s1 + $0x1a8] sm:$0xff]
  %v122 = vld [vmem:[%s1 + $0x1b0] sm:$0xff]
  %v123 = vld [vmem:[%s1 + $0x1b8] sm:$0xff]
  %v124 = vld [vmem:[%s1 + $0x1c0] sm:$0xff]
  %v125 = vld [vmem:[%s1 + $0x1c8] sm:$0xff]
  %v126 = vld [vmem:[%s1 + $0x1d0] sm:$0xff]
  %v127 = vld [vmem:[%s1 + $0x1d8] sm:$0xff]
  %v128 = vld [vmem:[%s1 + $0x1e0] sm:$0xff]
  %v129 = vld [vmem:[%s1 + $0x1e8] sm:$0xff]
  %v130 = vld [vmem:[%s1 + $0x1f0] sm:$0xff]
  %v131 = vld [vmem:[%s1 + $0x1f8] sm:$0xff]
  %v132 = vld [vmem:[%s1 + $0x200] sm:$0xff]
  %v133 = vld [vmem:[%s1 + $0x208] sm:$0xff]
  %v134 = vld [vmem:[%s1 + $0x210] sm:$0xff]
  %v135 = vld [vmem:[%s1 + $0x218] sm:$0xff]
  %v136 = vld [vmem:[%s1 + $0x220] sm:$0xff]
  %v137 = vld [vmem:[%s1 + $0x228] sm:$0xff]
  %v138 = vld [vmem:[%s1 + $0x230] sm:$0xff]
  %v139 = vld [vmem:[%s1 + $0x238] sm:$0xff]
  %v140 = vld [vmem:[%s1 + $0x240] sm:$0xff]
  %v141 = vld [vmem:[%s1 + $0x248] sm:$0xff]
  %v142 = vld [vmem:[%s1 + $0x250] sm:$0xff]
  %v143 = vld [vmem:[%s1 + $0x258] sm:$0xff]
  %v144 = vld [vmem:[%s1 + $0x260] sm:$0xff]
  %v145 = vld [vmem:[%s1 + $0x268] sm:$0xff]
  %v146 = vld [vmem:[%s1 + $0x270] sm:$0xff]
  %v147 = vld [vmem:[%s1 + $0x278] sm:$0xff]
  %v148 = vld [vmem:[%s1 + $0x280] sm:$0xff]
  %v149 = vld [vmem:[%s1 + $0x288] sm:$0xff]
  %v150 = vld [vmem:[%s1 + $0x290] sm:$0xff]
  %v151 = vld [vmem:[%s1 + $0x298] sm:$0xff]
  %v152 = vld [vmem:[%s1 + $0x2a0] sm:$0xff]
  %v153 = vld [vmem:[%s1 + $0x2a8] sm:$0xff]
  %v154 = vld [vmem:[%s1 + $0x2b0] sm:$0xff]
  %v155 = vld [vmem:[%s1 + $0x2b8] sm:$0xff]
  %v156 = vld [vmem:[%s1 + $0x2c0] sm:$0xff]
  %v157 = vld [vmem:[%s1 + $0x2c8] sm:$0xff]
  %v158 = vld [vmem:[%s1 + $0x2d0] sm:$0xff]
  %v159 = vld [vmem:[%s1 + $0x2d8] sm:$0xff]
  %v160 = vld [vmem:[%s1 + $0x2e0] sm:$0xff]
  %v161 = vld [vmem:[%s1 + $0x2e8] sm:$0xff]
  %v162 = vld [vmem:[%s1 + $0x2f0] sm:$0xff]
  %v163 = vld [vmem:[%s1 + $0x2f8] sm:$0xff]
  %v164 = vld [vmem:[%s1 + $0x300] sm:$0xff]
  %v165 = vld [vmem:[%s1 + $0x308] sm:$0xff]
  %v166 = vld [vmem:[%s1 + $0x310] sm:$0xff]
  %v167 = vld [vmem:[%s1 + $0x318] sm:$0xff]
  %v168 = vld [vmem:[%s1 + $0x320] sm:$0xff]
  %v169 = vld [vmem:[%s1 + $0x328] sm:$0xff]
  %v170 = vld [vmem:[%s1 + $0x330] sm:$0xff]
  %v171 = vld [vmem:[%s1 + $0x338] sm:$0xff]
  %v172 = vld [vmem:[%s1 + $0x340] sm:$0xff]
  %v173 = vld [vmem:[%s1 + $0x348] sm:$0xff]
  %v174 = vld [vmem:[%s1 + $0x350] sm:$0xff]
  %v175 = vld [vmem:[%s1 + $0x358] sm:$0xff]
  %v176 = vld [vmem:[%s1 + $0x360] sm:$0xff]
  %v177 = vld [vmem:[%s1 + $0x368] sm:$0xff]
  %v178 = vld [vmem:[%s1 + $0x370] sm:$0xff]
  %v179 = vld [vmem:[%s1 + $0x378] sm:$0xff]
  %v180 = vld [vmem:[%s1 + $0x380] sm:$0xff]
  %v181 = vld [vmem:[%s1 + $0x388] sm:$0xff]
  %v182 = vld [vmem:[%s1 + $0x390] sm:$0xff]
  %v183 = vld [vmem:[%s1 + $0x398] sm:$0xff]
  %v184 = vld [vmem:[%s1 + $0x3a0] sm:$0xff]
  %v185 = vld [vmem:[%s1 + $0x3a8] sm:$0xff]
  %v186 = vld [vmem:[%s1 + $0x3b0] sm:$0xff]
  %v187 = vld [vmem:[%s1 + $0x3b8] sm:$0xff]
  %v188 = vld [vmem:[%s1 + $0x3c0] sm:$0xff]
  %v189 = vld [vmem:[%s1 + $0x3c8] sm:$0xff]
  %v190 = vld [vmem:[%s1 + $0x3d0] sm:$0xff]
  %v191 = vld [vmem:[%s1 + $0x3d8] sm:$0xff]
  %v192 = vld [vmem:[%s1 + $0x3e0] sm:$0xff]
  %v193 = vld [vmem:[%s1 + $0x3e8] sm:$0xff]
  %v194 = vld [vmem:[%s1 + $0x3f0] sm:$0xff]
  %v195 = vld [vmem:[%s1 + $0x3f8] sm:$0xff]
  %v196 = vld [vmem:[%s1 + $0x400] sm:$0xff]
  %v197 = vld [vmem:[%s1 + $0x408] sm:$0xff]
  %v198 = vld [vmem:[%s1 + $0x410] sm:$0xff]
  %v199 = vld [vmem:[%s1 + $0x418] sm:$0xff]
  %v200 = vld [vmem:[%s1 + $0x420] sm:$0xff]
  %v201 = vld [vmem:[%s1 + $0x428] sm:$0xff]
  %v202 = vld [vmem:[%s1 + $0x430] sm:$0xff]
  %v203 = vld [vmem:[%s1 + $0x438] sm:$0xff]
  %v204 = vld [vmem:[%s1 + $0x440] sm:$0xff]
  %v205 = vld [vmem:[%s1 + $0x448] sm:$0xff]
  %v206 = vld [vmem:[%s1 + $0x450] sm:$0xff]
  %v207 = vld [vmem:[%s1 + $0x458] sm:$0xff]
  %v208 = vld [vmem:[%s1 + $0x460] sm:$0xff]
  %v209 = vld [vmem:[%s1 + $0x468] sm:$0xff]
  %v210 = vld [vmem:[%s1 + $0x470] sm:$0xff]
  %v211 = vld [vmem:[%s1 + $0x478] sm:$0xff]
  %v212 = vld [vmem:[%s1 + $0x480] sm:$0xff]
  %v213 = vld [vmem:[%s1 + $0x488] sm:$0xff]
  %v214 = vld [vmem:[%s1 + $0x490] sm:$0xff]
  %v215 = vld [vmem:[%s1 + $0x498] sm:$0xff]
  %v216 = vld [vmem:[%s1 + $0x4a0] sm:$0xff]
  %v217 = vld [vmem:[%s1 + $0x4a8] sm:$0xff]
  %v218 = vld [vmem:[%s1 + $0x4b0] sm:$0xff]
  %v219 = vld [vmem:[%s1 + $0x4b8] sm:$0xff]
  %v220 = vld [vmem:[%s1 + $0x4c0] sm:$0xff]
  %v221 = vld [vmem:[%s1 + $0x4c8] sm:$0xff]
  %v222 = vld [vmem:[%s1 + $0x4d0] sm:$0xff]
  %v223 = vld [vmem:[%s1 + $0x4d8] sm:$0xff]
  %v224 = vld [vmem:[%s1 + $0x4e0] sm:$0xff]
  %v225 = vld [vmem:[%s1 + $0x4e8] sm:$0xff]
  %v226 = vld [vmem:[%s1 + $0x4f0] sm:$0xff]
  %v227 = vld [vmem:[%s1 + $0x4f8] sm:$0xff]
  %v228 = vld [vmem:[%s1 + $0x500] sm:$0xff]
  %v229 = vld [vmem:[%s1 + $0x508] sm:$0xff]
  %v230 = vld [vmem:[%s1 + $0x510] sm:$0xff]
  %v231 = vld [vmem:[%s1 + $0x518] sm:$0xff]
  %v232 = vld [vmem:[%s1 + $0x520] sm:$0xff]
  %v233 = vld [vmem:[%s1 + $0x528] sm:$0xff]
  %v234 = vld [vmem:[%s1 + $0x530] sm:$0xff]
  %v235 = vld [vmem:[%s1 + $0x538] sm:$0xff]
  %v236 = vld [vmem:[%s1 + $0x540] sm:$0xff]
  %v237 = vld [vmem:[%s1 + $0x548] sm:$0xff]
  %v238 = vld [vmem:[%s1 + $0x550] sm:$0xff]
  %v239 = vld [vmem:[%s1 + $0x558] sm:$0xff]
  %v240 = vld [vmem:[%s1 + $0x560] sm:$0xff]
  %v241 = vld [vmem:[%s1 + $0x568] sm:$0xff]
  %v242 = vld [vmem:[%s1 + $0x570] sm:$0xff]
  %v243 = vld [vmem:[%s1 + $0x578] sm:$0xff]
  %v244 = vld [vmem:[%s1 + $0x580] sm:$0xff]
  %v245 = vld [vmem:[%s1 + $0x588] sm:$0xff]
  %v246 = vld [vmem:[%s1 + $0x590] sm:$0xff]
  %v247 = vld [vmem:[%s1 + $0x598] sm:$0xff]
  %v248 = vld [vmem:[%s1 + $0x5a0] sm:$0xff]
  %v249 = vld [vmem:[%s1 + $0x5a8] sm:$0xff]
  %v250 = vld [vmem:[%s1 + $0x5b0] sm:$0xff]
  %v251 = vld [vmem:[%s1 + $0x5b8] sm:$0xff]
  %v252 = vld [vmem:[%s1 + $0x5c0] sm:$0xff]
  %v253 = vld [vmem:[%s1 + $0x5c8] sm:$0xff]
  %v254 = vld [vmem:[%s1 + $0x5d0] sm:$0xff]
  %v255 = vld [vmem:[%s1 + $0x5d8] sm:$0xff]
  %v256 = vld [vmem:[%s1 + $0x5e0] sm:$0xff]
  %v257 = vld [vmem:[%s1 + $0x5e8] sm:$0xff]
  %v258 = vld [vmem:[%s1 + $0x5f0] sm:$0xff]
  %v259 = vld [vmem:[%s1 + $0x5f8] sm:$0xff]
  %v260 = vld [vmem:[%s1 + $0x600] sm:$0xff]
  %v261 = vld [vmem:[%s1 + $0x608] sm:$0xff]
  %v262 = vld [vmem:[%s1 + $0x610] sm:$0xff]
  %v263 = vld [vmem:[%s1 + $0x618] sm:$0xff]
  %v264 = vld [vmem:[%s1 + $0x620] sm:$0xff]
  %v265 = vld [vmem:[%s1 + $0x628] sm:$0xff]
  %v266 = vld [vmem:[%s1 + $0x630] sm:$0xff]
  %v267 = vld [vmem:[%s1 + $0x638] sm:$0xff]
  %v268 = vld [vmem:[%s1 + $0x640] sm:$0xff]
  %v269 = vld [vmem:[%s1 + $0x648] sm:$0xff]
  %v270 = vld [vmem:[%s1 + $0x650] sm:$0xff]
  %v271 = vld [vmem:[%s1 + $0x658] sm:$0xff]
  %v272 = vld [vmem:[%s1 + $0x660] sm:$0xff]
  %v273 = vld [vmem:[%s1 + $0x668] sm:$0xff]
  %v274 = vld [vmem:[%s1 + $0x670] sm:$0xff]
  %v275 = vld [vmem:[%s1 + $0x678] sm:$0xff]
  %v276 = vld [vmem:[%s1 + $0x680] sm:$0xff]
  %v277 = vld [vmem:[%s1 + $0x688] sm:$0xff]
  %v278 = vld [vmem:[%s1 + $0x690] sm:$0xff]
  %v279 = vld [vmem:[%s1 + $0x698] sm:$0xff]
  %v280 = vld [vmem:[%s1 + $0x6a0] sm:$0xff]
  %v281 = vld [vmem:[%s1 + $0x6a8] sm:$0xff]
  %v282 = vld [vmem:[%s1 + $0x6b0] sm:$0xff]
  %v283 = vld [vmem:[%s1 + $0x6b8] sm:$0xff]
  %v284 = vld [vmem:[%s1 + $0x6c0] sm:$0xff]
  %v285 = vld [vmem:[%s1 + $0x6c8] sm:$0xff]
  %v286 = vld [vmem:[%s1 + $0x6d0] sm:$0xff]
  %v287 = vld [vmem:[%s1 + $0x6d8] sm:$0xff]
  %v288 = vld [vmem:[%s1 + $0x6e0] sm:$0xff]
  %v289 = vld [vmem:[%s1 + $0x6e8] sm:$0xff]
  %v290 = vld [vmem:[%s1 + $0x6f0] sm:$0xff]
  %v291 = vld [vmem:[%s1 + $0x6f8] sm:$0xff]
  %v292 = vld [vmem:[%s2] sm:$0x3]
  %v294 = vlaneseq
  %v295 = vshrl.u32 %v294, 7
  %v296 = vsub.s32 0, %v295
  %v297 = vrot.slane %v292, %v296
  %v298 = vlaneseq
  %v299 = vshrl.u32 %v298, 7
  %v300 = vsub.s32 1, %v299
  %v301 = vrot.slane %v292, %v300
  %v528 = vunpack.c.l.b16 %v68
  %v529 = vunpack.c.h.b16 %v68
  %v530 = vunpack.c.l.b16 %v69
  %v531 = vunpack.c.h.b16 %v69
  %v532 = vunpack.c.l.b16 %v70
  %v533 = vunpack.c.h.b16 %v70
  %v534 = vunpack.c.l.b16 %v71
  %v535 = vunpack.c.h.b16 %v71
  %v536 = vunpack.c.l.b16 %v72
  %v537 = vunpack.c.h.b16 %v72
  %v538 = vunpack.c.l.b16 %v73
  %v539 = vunpack.c.h.b16 %v73
  %v540 = vunpack.c.l.b16 %v74
  %v541 = vunpack.c.h.b16 %v74
  %v542 = vunpack.c.l.b16 %v75
  %v543 = vunpack.c.h.b16 %v75
  %v544 = vunpack.c.l.b16 %v76
  %v545 = vunpack.c.h.b16 %v76
  %v546 = vunpack.c.l.b16 %v77
  %v547 = vunpack.c.h.b16 %v77
  %v548 = vunpack.c.l.b16 %v78
  %v549 = vunpack.c.h.b16 %v78
  %v550 = vunpack.c.l.b16 %v79
  %v551 = vunpack.c.h.b16 %v79
  %v552 = vunpack.c.l.b16 %v80
  %v553 = vunpack.c.h.b16 %v80
  %v554 = vunpack.c.l.b16 %v81
  %v555 = vunpack.c.h.b16 %v81
  %v556 = vunpack.c.l.b16 %v82
  %v557 = vunpack.c.h.b16 %v82
  %v558 = vunpack.c.l.b16 %v83
  %v559 = vunpack.c.h.b16 %v83
  %v560 = vunpack.c.l.b16 %v84
  %v561 = vunpack.c.h.b16 %v84
  %v562 = vunpack.c.l.b16 %v85
  %v563 = vunpack.c.h.b16 %v85
  %v564 = vunpack.c.l.b16 %v86
  %v565 = vunpack.c.h.b16 %v86
  %v566 = vunpack.c.l.b16 %v87
  %v567 = vunpack.c.h.b16 %v87
  %v568 = vunpack.c.l.b16 %v88
  %v569 = vunpack.c.h.b16 %v88
  %v570 = vunpack.c.l.b16 %v89
  %v571 = vunpack.c.h.b16 %v89
  %v572 = vunpack.c.l.b16 %v90
  %v573 = vunpack.c.h.b16 %v90
  %v574 = vunpack.c.l.b16 %v91
  %v575 = vunpack.c.h.b16 %v91
  %v576 = vunpack.c.l.b16 %v92
  %v577 = vunpack.c.h.b16 %v92
  %v578 = vunpack.c.l.b16 %v93
  %v579 = vunpack.c.h.b16 %v93
  %v580 = vunpack.c.l.b16 %v94
  %v581 = vunpack.c.h.b16 %v94
  %v582 = vunpack.c.l.b16 %v95
  %v583 = vunpack.c.h.b16 %v95
  %v584 = vunpack.c.l.b16 %v96
  %v585 = vunpack.c.h.b16 %v96
  %v586 = vunpack.c.l.b16 %v97
  %v587 = vunpack.c.h.b16 %v97
  %v588 = vunpack.c.l.b16 %v98
  %v589 = vunpack.c.h.b16 %v98
  %v590 = vunpack.c.l.b16 %v99
  %v591 = vunpack.c.h.b16 %v99
  %v592 = vunpack.c.l.b16 %v100
  %v593 = vunpack.c.h.b16 %v100
  %v594 = vunpack.c.l.b16 %v101
  %v595 = vunpack.c.h.b16 %v101
  %v596 = vunpack.c.l.b16 %v102
  %v597 = vunpack.c.h.b16 %v102
  %v598 = vunpack.c.l.b16 %v103
  %v599 = vunpack.c.h.b16 %v103
  %v600 = vunpack.c.l.b16 %v104
  %v601 = vunpack.c.h.b16 %v104
  %v602 = vunpack.c.l.b16 %v105
  %v603 = vunpack.c.h.b16 %v105
  %v604 = vunpack.c.l.b16 %v106
  %v605 = vunpack.c.h.b16 %v106
  %v606 = vunpack.c.l.b16 %v107
  %v607 = vunpack.c.h.b16 %v107
  %v608 = vunpack.c.l.b16 %v108
  %v609 = vunpack.c.h.b16 %v108
  %v610 = vunpack.c.l.b16 %v109
  %v611 = vunpack.c.h.b16 %v109
  %v612 = vunpack.c.l.b16 %v110
  %v613 = vunpack.c.h.b16 %v110
  %v614 = vunpack.c.l.b16 %v111
  %v615 = vunpack.c.h.b16 %v111
  %v616 = vunpack.c.l.b16 %v112
  %v617 = vunpack.c.h.b16 %v112
  %v618 = vunpack.c.l.b16 %v113
  %v619 = vunpack.c.h.b16 %v113
  %v620 = vunpack.c.l.b16 %v114
  %v621 = vunpack.c.h.b16 %v114
  %v622 = vunpack.c.l.b16 %v115
  %v623 = vunpack.c.h.b16 %v115
  %v624 = vunpack.c.l.b16 %v116
  %v625 = vunpack.c.h.b16 %v116
  %v626 = vunpack.c.l.b16 %v117
  %v627 = vunpack.c.h.b16 %v117
  %v628 = vunpack.c.l.b16 %v118
  %v629 = vunpack.c.h.b16 %v118
  %v630 = vunpack.c.l.b16 %v119
  %v631 = vunpack.c.h.b16 %v119
  %v632 = vunpack.c.l.b16 %v120
  %v633 = vunpack.c.h.b16 %v120
  %v634 = vunpack.c.l.b16 %v121
  %v635 = vunpack.c.h.b16 %v121
  %v636 = vunpack.c.l.b16 %v122
  %v637 = vunpack.c.h.b16 %v122
  %v638 = vunpack.c.l.b16 %v123
  %v639 = vunpack.c.h.b16 %v123
  %v640 = vunpack.c.l.b16 %v124
  %v641 = vunpack.c.h.b16 %v124
  %v642 = vunpack.c.l.b16 %v125
  %v643 = vunpack.c.h.b16 %v125
  %v644 = vunpack.c.l.b16 %v126
  %v645 = vunpack.c.h.b16 %v126
  %v646 = vunpack.c.l.b16 %v127
  %v647 = vunpack.c.h.b16 %v127
  %v648 = vunpack.c.l.b16 %v128
  %v649 = vunpack.c.h.b16 %v128
  %v650 = vunpack.c.l.b16 %v129
  %v651 = vunpack.c.h.b16 %v129
  %v652 = vunpack.c.l.b16 %v130
  %v653 = vunpack.c.h.b16 %v130
  %v654 = vunpack.c.l.b16 %v131
  %v655 = vunpack.c.h.b16 %v131
  %v656 = vunpack.c.l.b16 %v132
  %v657 = vunpack.c.h.b16 %v132
  %v658 = vunpack.c.l.b16 %v133
  %v659 = vunpack.c.h.b16 %v133
  %v660 = vunpack.c.l.b16 %v134
  %v661 = vunpack.c.h.b16 %v134
  %v662 = vunpack.c.l.b16 %v135
  %v663 = vunpack.c.h.b16 %v135
  %v664 = vunpack.c.l.b16 %v136
  %v665 = vunpack.c.h.b16 %v136
  %v666 = vunpack.c.l.b16 %v137
  %v667 = vunpack.c.h.b16 %v137
  %v668 = vunpack.c.l.b16 %v138
  %v669 = vunpack.c.h.b16 %v138
  %v670 = vunpack.c.l.b16 %v139
  %v671 = vunpack.c.h.b16 %v139
  %v672 = vunpack.c.l.b16 %v140
  %v673 = vunpack.c.h.b16 %v140
  %v674 = vunpack.c.l.b16 %v141
  %v675 = vunpack.c.h.b16 %v141
  %v676 = vunpack.c.l.b16 %v142
  %v677 = vunpack.c.h.b16 %v142
  %v678 = vunpack.c.l.b16 %v143
  %v679 = vunpack.c.h.b16 %v143
  %v680 = vunpack.c.l.b16 %v144
  %v681 = vunpack.c.h.b16 %v144
  %v682 = vunpack.c.l.b16 %v145
  %v683 = vunpack.c.h.b16 %v145
  %v684 = vunpack.c.l.b16 %v146
  %v685 = vunpack.c.h.b16 %v146
  %v686 = vunpack.c.l.b16 %v147
  %v687 = vunpack.c.h.b16 %v147
  %v688 = vunpack.c.l.b16 %v148
  %v689 = vunpack.c.h.b16 %v148
  %v690 = vunpack.c.l.b16 %v149
  %v691 = vunpack.c.h.b16 %v149
  %v692 = vunpack.c.l.b16 %v150
  %v693 = vunpack.c.h.b16 %v150
  %v694 = vunpack.c.l.b16 %v151
  %v695 = vunpack.c.h.b16 %v151
  %v696 = vunpack.c.l.b16 %v152
  %v697 = vunpack.c.h.b16 %v152
  %v698 = vunpack.c.l.b16 %v153
  %v699 = vunpack.c.h.b16 %v153
  %v700 = vunpack.c.l.b16 %v154
  %v701 = vunpack.c.h.b16 %v154
  %v702 = vunpack.c.l.b16 %v155
  %v703 = vunpack.c.h.b16 %v155
  %v704 = vunpack.c.l.b16 %v156
  %v705 = vunpack.c.h.b16 %v156
  %v706 = vunpack.c.l.b16 %v157
  %v707 = vunpack.c.h.b16 %v157
  %v708 = vunpack.c.l.b16 %v158
  %v709 = vunpack.c.h.b16 %v158
  %v710 = vunpack.c.l.b16 %v159
  %v711 = vunpack.c.h.b16 %v159
  %v712 = vunpack.c.l.b16 %v160
  %v713 = vunpack.c.h.b16 %v160
  %v714 = vunpack.c.l.b16 %v161
  %v715 = vunpack.c.h.b16 %v161
  %v716 = vunpack.c.l.b16 %v162
  %v717 = vunpack.c.h.b16 %v162
  %v718 = vunpack.c.l.b16 %v163
  %v719 = vunpack.c.h.b16 %v163
  %v720 = vunpack.c.l.b16 %v164
  %v721 = vunpack.c.h.b16 %v164
  %v722 = vunpack.c.l.b16 %v165
  %v723 = vunpack.c.h.b16 %v165
  %v724 = vunpack.c.l.b16 %v166
  %v725 = vunpack.c.h.b16 %v166
  %v726 = vunpack.c.l.b16 %v167
  %v727 = vunpack.c.h.b16 %v167
  %v728 = vunpack.c.l.b16 %v168
  %v729 = vunpack.c.h.b16 %v168
  %v730 = vunpack.c.l.b16 %v169
  %v731 = vunpack.c.h.b16 %v169
  %v732 = vunpack.c.l.b16 %v170
  %v733 = vunpack.c.h.b16 %v170
  %v734 = vunpack.c.l.b16 %v171
  %v735 = vunpack.c.h.b16 %v171
  %v736 = vunpack.c.l.b16 %v172
  %v737 = vunpack.c.h.b16 %v172
  %v738 = vunpack.c.l.b16 %v173
  %v739 = vunpack.c.h.b16 %v173
  %v740 = vunpack.c.l.b16 %v174
  %v741 = vunpack.c.h.b16 %v174
  %v742 = vunpack.c.l.b16 %v175
  %v743 = vunpack.c.h.b16 %v175
  %v744 = vunpack.c.l.b16 %v176
  %v745 = vunpack.c.h.b16 %v176
  %v746 = vunpack.c.l.b16 %v177
  %v747 = vunpack.c.h.b16 %v177
  %v748 = vunpack.c.l.b16 %v178
  %v749 = vunpack.c.h.b16 %v178
  %v750 = vunpack.c.l.b16 %v179
  %v751 = vunpack.c.h.b16 %v179
  %v752 = vunpack.c.l.b16 %v180
  %v753 = vunpack.c.h.b16 %v180
  %v754 = vunpack.c.l.b16 %v181
  %v755 = vunpack.c.h.b16 %v181
  %v756 = vunpack.c.l.b16 %v182
  %v757 = vunpack.c.h.b16 %v182
  %v758 = vunpack.c.l.b16 %v183
  %v759 = vunpack.c.h.b16 %v183
  %v760 = vunpack.c.l.b16 %v184
  %v761 = vunpack.c.h.b16 %v184
  %v762 = vunpack.c.l.b16 %v185
  %v763 = vunpack.c.h.b16 %v185
  %v764 = vunpack.c.l.b16 %v186
  %v765 = vunpack.c.h.b16 %v186
  %v766 = vunpack.c.l.b16 %v187
  %v767 = vunpack.c.h.b16 %v187
  %v768 = vunpack.c.l.b16 %v188
  %v769 = vunpack.c.h.b16 %v188
  %v770 = vunpack.c.l.b16 %v189
  %v771 = vunpack.c.h.b16 %v189
  %v772 = vunpack.c.l.b16 %v190
  %v773 = vunpack.c.h.b16 %v190
  %v774 = vunpack.c.l.b16 %v191
  %v775 = vunpack.c.h.b16 %v191
  %v776 = vunpack.c.l.b16 %v192
  %v777 = vunpack.c.h.b16 %v192
  %v778 = vunpack.c.l.b16 %v193
  %v779 = vunpack.c.h.b16 %v193
  %v780 = vunpack.c.l.b16 %v194
  %v781 = vunpack.c.h.b16 %v194
  %v782 = vunpack.c.l.b16 %v195
  %v783 = vunpack.c.h.b16 %v195
  %v784 = vunpack.c.l.b16 %v196
  %v785 = vunpack.c.h.b16 %v196
  %v786 = vunpack.c.l.b16 %v197
  %v787 = vunpack.c.h.b16 %v197
  %v788 = vunpack.c.l.b16 %v198
  %v789 = vunpack.c.h.b16 %v198
  %v790 = vunpack.c.l.b16 %v199
  %v791 = vunpack.c.h.b16 %v199
  %v792 = vunpack.c.l.b16 %v200
  %v793 = vunpack.c.h.b16 %v200
  %v794 = vunpack.c.l.b16 %v201
  %v795 = vunpack.c.h.b16 %v201
  %v796 = vunpack.c.l.b16 %v202
  %v797 = vunpack.c.h.b16 %v202
  %v798 = vunpack.c.l.b16 %v203
  %v799 = vunpack.c.h.b16 %v203
  %v800 = vunpack.c.l.b16 %v204
  %v801 = vunpack.c.h.b16 %v204
  %v802 = vunpack.c.l.b16 %v205
  %v803 = vunpack.c.h.b16 %v205
  %v804 = vunpack.c.l.b16 %v206
  %v805 = vunpack.c.h.b16 %v206
  %v806 = vunpack.c.l.b16 %v207
  %v807 = vunpack.c.h.b16 %v207
  %v808 = vunpack.c.l.b16 %v208
  %v809 = vunpack.c.h.b16 %v208
  %v810 = vunpack.c.l.b16 %v209
  %v811 = vunpack.c.h.b16 %v209
  %v812 = vunpack.c.l.b16 %v210
  %v813 = vunpack.c.h.b16 %v210
  %v814 = vunpack.c.l.b16 %v211
  %v815 = vunpack.c.h.b16 %v211
  %v816 = vunpack.c.l.b16 %v212
  %v817 = vunpack.c.h.b16 %v212
  %v818 = vunpack.c.l.b16 %v213
  %v819 = vunpack.c.h.b16 %v213
  %v820 = vunpack.c.l.b16 %v214
  %v821 = vunpack.c.h.b16 %v214
  %v822 = vunpack.c.l.b16 %v215
  %v823 = vunpack.c.h.b16 %v215
  %v824 = vunpack.c.l.b16 %v216
  %v825 = vunpack.c.h.b16 %v216
  %v826 = vunpack.c.l.b16 %v217
  %v827 = vunpack.c.h.b16 %v217
  %v828 = vunpack.c.l.b16 %v218
  %v829 = vunpack.c.h.b16 %v218
  %v830 = vunpack.c.l.b16 %v219
  %v831 = vunpack.c.h.b16 %v219
  %v832 = vunpack.c.l.b16 %v220
  %v833 = vunpack.c.h.b16 %v220
  %v834 = vunpack.c.l.b16 %v221
  %v835 = vunpack.c.h.b16 %v221
  %v836 = vunpack.c.l.b16 %v222
  %v837 = vunpack.c.h.b16 %v222
  %v838 = vunpack.c.l.b16 %v223
  %v839 = vunpack.c.h.b16 %v223
  %v840 = vunpack.c.l.b16 %v224
  %v841 = vunpack.c.h.b16 %v224
  %v842 = vunpack.c.l.b16 %v225
  %v843 = vunpack.c.h.b16 %v225
  %v844 = vunpack.c.l.b16 %v226
  %v845 = vunpack.c.h.b16 %v226
  %v846 = vunpack.c.l.b16 %v227
  %v847 = vunpack.c.h.b16 %v227
  %v848 = vunpack.c.l.b16 %v228
  %v849 = vunpack.c.h.b16 %v228
  %v850 = vunpack.c.l.b16 %v229
  %v851 = vunpack.c.h.b16 %v229
  %v852 = vunpack.c.l.b16 %v230
  %v853 = vunpack.c.h.b16 %v230
  %v854 = vunpack.c.l.b16 %v231
  %v855 = vunpack.c.h.b16 %v231
  %v856 = vunpack.c.l.b16 %v232
  %v857 = vunpack.c.h.b16 %v232
  %v858 = vunpack.c.l.b16 %v233
  %v859 = vunpack.c.h.b16 %v233
  %v860 = vunpack.c.l.b16 %v234
  %v861 = vunpack.c.h.b16 %v234
  %v862 = vunpack.c.l.b16 %v235
  %v863 = vunpack.c.h.b16 %v235
  %v864 = vunpack.c.l.b16 %v236
  %v865 = vunpack.c.h.b16 %v236
  %v866 = vunpack.c.l.b16 %v237
  %v867 = vunpack.c.h.b16 %v237
  %v868 = vunpack.c.l.b16 %v238
  %v869 = vunpack.c.h.b16 %v238
  %v870 = vunpack.c.l.b16 %v239
  %v871 = vunpack.c.h.b16 %v239
  %v872 = vunpack.c.l.b16 %v240
  %v873 = vunpack.c.h.b16 %v240
  %v874 = vunpack.c.l.b16 %v241
  %v875 = vunpack.c.h.b16 %v241
  %v876 = vunpack.c.l.b16 %v242
  %v877 = vunpack.c.h.b16 %v242
  %v878 = vunpack.c.l.b16 %v243
  %v879 = vunpack.c.h.b16 %v243
  %v880 = vunpack.c.l.b16 %v244
  %v881 = vunpack.c.h.b16 %v244
  %v882 = vunpack.c.l.b16 %v245
  %v883 = vunpack.c.h.b16 %v245
  %v884 = vunpack.c.l.b16 %v246
  %v885 = vunpack.c.h.b16 %v246
  %v886 = vunpack.c.l.b16 %v247
  %v887 = vunpack.c.h.b16 %v247
  %v888 = vunpack.c.l.b16 %v248
  %v889 = vunpack.c.h.b16 %v248
  %v890 = vunpack.c.l.b16 %v249
  %v891 = vunpack.c.h.b16 %v249
  %v892 = vunpack.c.l.b16 %v250
  %v893 = vunpack.c.h.b16 %v250
  %v894 = vunpack.c.l.b16 %v251
  %v895 = vunpack.c.h.b16 %v251
  %v896 = vunpack.c.l.b16 %v252
  %v897 = vunpack.c.h.b16 %v252
  %v898 = vunpack.c.l.b16 %v253
  %v899 = vunpack.c.h.b16 %v253
  %v900 = vunpack.c.l.b16 %v254
  %v901 = vunpack.c.h.b16 %v254
  %v902 = vunpack.c.l.b16 %v255
  %v903 = vunpack.c.h.b16 %v255
  %v904 = vunpack.c.l.b16 %v256
  %v905 = vunpack.c.h.b16 %v256
  %v906 = vunpack.c.l.b16 %v257
  %v907 = vunpack.c.h.b16 %v257
  %v908 = vunpack.c.l.b16 %v258
  %v909 = vunpack.c.h.b16 %v258
  %v910 = vunpack.c.l.b16 %v259
  %v911 = vunpack.c.h.b16 %v259
  %v912 = vunpack.c.l.b16 %v260
  %v913 = vunpack.c.h.b16 %v260
  %v914 = vunpack.c.l.b16 %v261
  %v915 = vunpack.c.h.b16 %v261
  %v916 = vunpack.c.l.b16 %v262
  %v917 = vunpack.c.h.b16 %v262
  %v918 = vunpack.c.l.b16 %v263
  %v919 = vunpack.c.h.b16 %v263
  %v920 = vunpack.c.l.b16 %v264
  %v921 = vunpack.c.h.b16 %v264
  %v922 = vunpack.c.l.b16 %v265
  %v923 = vunpack.c.h.b16 %v265
  %v924 = vunpack.c.l.b16 %v266
  %v925 = vunpack.c.h.b16 %v266
  %v926 = vunpack.c.l.b16 %v267
  %v927 = vunpack.c.h.b16 %v267
  %v928 = vunpack.c.l.b16 %v268
  %v929 = vunpack.c.h.b16 %v268
  %v930 = vunpack.c.l.b16 %v269
  %v931 = vunpack.c.h.b16 %v269
  %v932 = vunpack.c.l.b16 %v270
  %v933 = vunpack.c.h.b16 %v270
  %v934 = vunpack.c.l.b16 %v271
  %v935 = vunpack.c.h.b16 %v271
  %v936 = vunpack.c.l.b16 %v272
  %v937 = vunpack.c.h.b16 %v272
  %v938 = vunpack.c.l.b16 %v273
  %v939 = vunpack.c.h.b16 %v273
  %v940 = vunpack.c.l.b16 %v274
  %v941 = vunpack.c.h.b16 %v274
  %v942 = vunpack.c.l.b16 %v275
  %v943 = vunpack.c.h.b16 %v275
  %v944 = vunpack.c.l.b16 %v276
  %v945 = vunpack.c.h.b16 %v276
  %v946 = vunpack.c.l.b16 %v277
  %v947 = vunpack.c.h.b16 %v277
  %v948 = vunpack.c.l.b16 %v278
  %v949 = vunpack.c.h.b16 %v278
  %v950 = vunpack.c.l.b16 %v279
  %v951 = vunpack.c.h.b16 %v279
  %v952 = vunpack.c.l.b16 %v280
  %v953 = vunpack.c.h.b16 %v280
  %v954 = vunpack.c.l.b16 %v281
  %v955 = vunpack.c.h.b16 %v281
  %v956 = vunpack.c.l.b16 %v282
  %v957 = vunpack.c.h.b16 %v282
  %v958 = vunpack.c.l.b16 %v283
  %v959 = vunpack.c.h.b16 %v283
  %v960 = vunpack.c.l.b16 %v284
  %v961 = vunpack.c.h.b16 %v284
  %v962 = vunpack.c.l.b16 %v285
  %v963 = vunpack.c.h.b16 %v285
  %v964 = vunpack.c.l.b16 %v286
  %v965 = vunpack.c.h.b16 %v286
  %v966 = vunpack.c.l.b16 %v287
  %v967 = vunpack.c.h.b16 %v287
  %v968 = vunpack.c.l.b16 %v288
  %v969 = vunpack.c.h.b16 %v288
  %v970 = vunpack.c.l.b16 %v289
  %v971 = vunpack.c.h.b16 %v289
  %v972 = vunpack.c.l.b16 %v290
  %v973 = vunpack.c.h.b16 %v290
  %v974 = vunpack.c.l.b16 %v291
  %v975 = vunpack.c.h.b16 %v291
  %v976 = vpack.c.b16 %v530, %v528
  %v977 = vpack.c.b16 %v531, %v529
  %v978 = vpack.c.b16 %v534, %v532
  %v979 = vpack.c.b16 %v535, %v533
  %v980 = vpack.c.b16 %v538, %v536
  %v981 = vpack.c.b16 %v539, %v537
  %v982 = vpack.c.b16 %v542, %v540
  %v983 = vpack.c.b16 %v543, %v541
  %v984 = vpack.c.b16 %v546, %v544
  %v985 = vpack.c.b16 %v547, %v545
  %v986 = vpack.c.b16 %v550, %v548
  %v987 = vpack.c.b16 %v551, %v549
  %v988 = vpack.c.b16 %v554, %v552
  %v989 = vpack.c.b16 %v555, %v553
  %v990 = vpack.c.b16 %v558, %v556
  %v991 = vpack.c.b16 %v559, %v557
  %v992 = vpack.c.b16 %v562, %v560
  %v993 = vpack.c.b16 %v563, %v561
  %v994 = vpack.c.b16 %v566, %v564
  %v995 = vpack.c.b16 %v567, %v565
  %v996 = vpack.c.b16 %v570, %v568
  %v997 = vpack.c.b16 %v571, %v569
  %v998 = vpack.c.b16 %v574, %v572
  %v999 = vpack.c.b16 %v575, %v573
  %v1000 = vpack.c.b16 %v578, %v576
  %v1001 = vpack.c.b16 %v579, %v577
  %v1002 = vpack.c.b16 %v582, %v580
  %v1003 = vpack.c.b16 %v583, %v581
  %v1004 = vpack.c.b16 %v586, %v584
  %v1005 = vpack.c.b16 %v587, %v585
  %v1006 = vpack.c.b16 %v590, %v588
  %v1007 = vpack.c.b16 %v591, %v589
  %v1008 = vpack.c.b16 %v594, %v592
  %v1009 = vpack.c.b16 %v595, %v593
  %v1010 = vpack.c.b16 %v598, %v596
  %v1011 = vpack.c.b16 %v599, %v597
  %v1012 = vpack.c.b16 %v602, %v600
  %v1013 = vpack.c.b16 %v603, %v601
  %v1014 = vpack.c.b16 %v606, %v604
  %v1015 = vpack.c.b16 %v607, %v605
  %v1016 = vpack.c.b16 %v610, %v608
  %v1017 = vpack.c.b16 %v611, %v609
  %v1018 = vpack.c.b16 %v614, %v612
  %v1019 = vpack.c.b16 %v615, %v613
  %v1020 = vpack.c.b16 %v618, %v616
  %v1021 = vpack.c.b16 %v619, %v617
  %v1022 = vpack.c.b16 %v622, %v620
  %v1023 = vpack.c.b16 %v623, %v621
  %v1024 = vpack.c.b16 %v626, %v624
  %v1025 = vpack.c.b16 %v627, %v625
  %v1026 = vpack.c.b16 %v630, %v628
  %v1027 = vpack.c.b16 %v631, %v629
  %v1028 = vpack.c.b16 %v634, %v632
  %v1029 = vpack.c.b16 %v635, %v633
  %v1030 = vpack.c.b16 %v638, %v636
  %v1031 = vpack.c.b16 %v639, %v637
  %v1032 = vpack.c.b16 %v642, %v640
  %v1033 = vpack.c.b16 %v643, %v641
  %v1034 = vpack.c.b16 %v646, %v644
  %v1035 = vpack.c.b16 %v647, %v645
  %v1036 = vpack.c.b16 %v650, %v648
  %v1037 = vpack.c.b16 %v651, %v649
  %v1038 = vpack.c.b16 %v654, %v652
  %v1039 = vpack.c.b16 %v655, %v653
  %v1040 = vpack.c.b16 %v658, %v656
  %v1041 = vpack.c.b16 %v659, %v657
  %v1042 = vpack.c.b16 %v662, %v660
  %v1043 = vpack.c.b16 %v663, %v661
  %v1044 = vpack.c.b16 %v666, %v664
  %v1045 = vpack.c.b16 %v667, %v665
  %v1046 = vpack.c.b16 %v670, %v668
  %v1047 = vpack.c.b16 %v671, %v669
  %v1048 = vpack.c.b16 %v674, %v672
  %v1049 = vpack.c.b16 %v675, %v673
  %v1050 = vpack.c.b16 %v678, %v676
  %v1051 = vpack.c.b16 %v679, %v677
  %v1052 = vpack.c.b16 %v682, %v680
  %v1053 = vpack.c.b16 %v683, %v681
  %v1054 = vpack.c.b16 %v686, %v684
  %v1055 = vpack.c.b16 %v687, %v685
  %v1056 = vpack.c.b16 %v690, %v688
  %v1057 = vpack.c.b16 %v691, %v689
  %v1058 = vpack.c.b16 %v694, %v692
  %v1059 = vpack.c.b16 %v695, %v693
  %v1060 = vpack.c.b16 %v698, %v696
  %v1061 = vpack.c.b16 %v699, %v697
  %v1062 = vpack.c.b16 %v702, %v700
  %v1063 = vpack.c.b16 %v703, %v701
  %v1064 = vpack.c.b16 %v706, %v704
  %v1065 = vpack.c.b16 %v707, %v705
  %v1066 = vpack.c.b16 %v710, %v708
  %v1067 = vpack.c.b16 %v711, %v709
  %v1068 = vpack.c.b16 %v714, %v712
  %v1069 = vpack.c.b16 %v715, %v713
  %v1070 = vpack.c.b16 %v718, %v716
  %v1071 = vpack.c.b16 %v719, %v717
  %v1072 = vpack.c.b16 %v722, %v720
  %v1073 = vpack.c.b16 %v723, %v721
  %v1074 = vpack.c.b16 %v726, %v724
  %v1075 = vpack.c.b16 %v727, %v725
  %v1076 = vpack.c.b16 %v730, %v728
  %v1077 = vpack.c.b16 %v731, %v729
  %v1078 = vpack.c.b16 %v734, %v732
  %v1079 = vpack.c.b16 %v735, %v733
  %v1080 = vpack.c.b16 %v738, %v736
  %v1081 = vpack.c.b16 %v739, %v737
  %v1082 = vpack.c.b16 %v742, %v740
  %v1083 = vpack.c.b16 %v743, %v741
  %v1084 = vpack.c.b16 %v746, %v744
  %v1085 = vpack.c.b16 %v747, %v745
  %v1086 = vpack.c.b16 %v750, %v748
  %v1087 = vpack.c.b16 %v751, %v749
  %v1088 = vpack.c.b16 %v754, %v752
  %v1089 = vpack.c.b16 %v755, %v753
  %v1090 = vpack.c.b16 %v758, %v756
  %v1091 = vpack.c.b16 %v759, %v757
  %v1092 = vpack.c.b16 %v762, %v760
  %v1093 = vpack.c.b16 %v763, %v761
  %v1094 = vpack.c.b16 %v766, %v764
  %v1095 = vpack.c.b16 %v767, %v765
  %v1096 = vpack.c.b16 %v770, %v768
  %v1097 = vpack.c.b16 %v771, %v769
  %v1098 = vpack.c.b16 %v774, %v772
  %v1099 = vpack.c.b16 %v775, %v773
  %v1100 = vpack.c.b16 %v778, %v776
  %v1101 = vpack.c.b16 %v779, %v777
  %v1102 = vpack.c.b16 %v782, %v780
  %v1103 = vpack.c.b16 %v783, %v781
  %v1104 = vpack.c.b16 %v786, %v784
  %v1105 = vpack.c.b16 %v787, %v785
  %v1106 = vpack.c.b16 %v790, %v788
  %v1107 = vpack.c.b16 %v791, %v789
  %v1108 = vpack.c.b16 %v794, %v792
  %v1109 = vpack.c.b16 %v795, %v793
  %v1110 = vpack.c.b16 %v798, %v796
  %v1111 = vpack.c.b16 %v799, %v797
  %v1112 = vpack.c.b16 %v802, %v800
  %v1113 = vpack.c.b16 %v803, %v801
  %v1114 = vpack.c.b16 %v806, %v804
  %v1115 = vpack.c.b16 %v807, %v805
  %v1116 = vpack.c.b16 %v810, %v808
  %v1117 = vpack.c.b16 %v811, %v809
  %v1118 = vpack.c.b16 %v814, %v812
  %v1119 = vpack.c.b16 %v815, %v813
  %v1120 = vpack.c.b16 %v818, %v816
  %v1121 = vpack.c.b16 %v819, %v817
  %v1122 = vpack.c.b16 %v822, %v820
  %v1123 = vpack.c.b16 %v823, %v821
  %v1124 = vpack.c.b16 %v826, %v824
  %v1125 = vpack.c.b16 %v827, %v825
  %v1126 = vpack.c.b16 %v830, %v828
  %v1127 = vpack.c.b16 %v831, %v829
  %v1128 = vpack.c.b16 %v834, %v832
  %v1129 = vpack.c.b16 %v835, %v833
  %v1130 = vpack.c.b16 %v838, %v836
  %v1131 = vpack.c.b16 %v839, %v837
  %v1132 = vpack.c.b16 %v842, %v840
  %v1133 = vpack.c.b16 %v843, %v841
  %v1134 = vpack.c.b16 %v846, %v844
  %v1135 = vpack.c.b16 %v847, %v845
  %v1136 = vpack.c.b16 %v850, %v848
  %v1137 = vpack.c.b16 %v851, %v849
  %v1138 = vpack.c.b16 %v854, %v852
  %v1139 = vpack.c.b16 %v855, %v853
  %v1140 = vpack.c.b16 %v858, %v856
  %v1141 = vpack.c.b16 %v859, %v857
  %v1142 = vpack.c.b16 %v862, %v860
  %v1143 = vpack.c.b16 %v863, %v861
  %v1144 = vpack.c.b16 %v866, %v864
  %v1145 = vpack.c.b16 %v867, %v865
  %v1146 = vpack.c.b16 %v870, %v868
  %v1147 = vpack.c.b16 %v871, %v869
  %v1148 = vpack.c.b16 %v874, %v872
  %v1149 = vpack.c.b16 %v875, %v873
  %v1150 = vpack.c.b16 %v878, %v876
  %v1151 = vpack.c.b16 %v879, %v877
  %v1152 = vpack.c.b16 %v882, %v880
  %v1153 = vpack.c.b16 %v883, %v881
  %v1154 = vpack.c.b16 %v886, %v884
  %v1155 = vpack.c.b16 %v887, %v885
  %v1156 = vpack.c.b16 %v890, %v888
  %v1157 = vpack.c.b16 %v891, %v889
  %v1158 = vpack.c.b16 %v894, %v892
  %v1159 = vpack.c.b16 %v895, %v893
  %v1160 = vpack.c.b16 %v898, %v896
  %v1161 = vpack.c.b16 %v899, %v897
  %v1162 = vpack.c.b16 %v902, %v900
  %v1163 = vpack.c.b16 %v903, %v901
  %v1164 = vpack.c.b16 %v906, %v904
  %v1165 = vpack.c.b16 %v907, %v905
  %v1166 = vpack.c.b16 %v910, %v908
  %v1167 = vpack.c.b16 %v911, %v909
  %v1168 = vpack.c.b16 %v914, %v912
  %v1169 = vpack.c.b16 %v915, %v913
  %v1170 = vpack.c.b16 %v918, %v916
  %v1171 = vpack.c.b16 %v919, %v917
  %v1172 = vpack.c.b16 %v922, %v920
  %v1173 = vpack.c.b16 %v923, %v921
  %v1174 = vpack.c.b16 %v926, %v924
  %v1175 = vpack.c.b16 %v927, %v925
  %v1176 = vpack.c.b16 %v930, %v928
  %v1177 = vpack.c.b16 %v931, %v929
  %v1178 = vpack.c.b16 %v934, %v932
  %v1179 = vpack.c.b16 %v935, %v933
  %v1180 = vpack.c.b16 %v938, %v936
  %v1181 = vpack.c.b16 %v939, %v937
  %v1182 = vpack.c.b16 %v942, %v940
  %v1183 = vpack.c.b16 %v943, %v941
  %v1184 = vpack.c.b16 %v946, %v944
  %v1185 = vpack.c.b16 %v947, %v945
  %v1186 = vpack.c.b16 %v950, %v948
  %v1187 = vpack.c.b16 %v951, %v949
  %v1188 = vpack.c.b16 %v954, %v952
  %v1189 = vpack.c.b16 %v955, %v953
  %v1190 = vpack.c.b16 %v958, %v956
  %v1191 = vpack.c.b16 %v959, %v957
  %v1192 = vpack.c.b16 %v962, %v960
  %v1193 = vpack.c.b16 %v963, %v961
  %v1194 = vpack.c.b16 %v966, %v964
  %v1195 = vpack.c.b16 %v967, %v965
  %v1196 = vpack.c.b16 %v970, %v968
  %v1197 = vpack.c.b16 %v971, %v969
  %v1198 = vpack.c.b16 %v974, %v972
  %v1199 = vpack.c.b16 %v975, %v973
  %1424 = vmatprep.subr.bf16.mxu0 %v977
  %1425 = vmatpush1.bf16.msra.mxu0 %v976
  %1426 = vmatprep.subr.bf16.mxu0 %v979
  %1427 = vmatpush1.bf16.msra.mxu0 %v978
  %1428 = vmatprep.subr.bf16.mxu0 %v981
  %1429 = vmatpush1.bf16.msra.mxu0 %v980
  %1430 = vmatprep.subr.bf16.mxu0 %v983
  %1431 = vmatpush1.bf16.msra.mxu0 %v982
  %1432 = vmatprep.subr.bf16.mxu0 %v985
  %1433 = vmatpush1.bf16.msra.mxu0 %v984
  %1434 = vmatprep.subr.bf16.mxu0 %v987
  %1435 = vmatpush1.bf16.msra.mxu0 %v986
  %1436 = vmatprep.subr.bf16.mxu0 %v989
  %1437 = vmatpush1.bf16.msra.mxu0 %v988
  %1438 = vmatprep.subr.bf16.mxu0 %v991
  %1439 = vmatpush1.bf16.msra.mxu0 %v990
  %1440 = vmatprep.subr.bf16.mxu0 %v993
  %1441 = vmatpush1.bf16.msra.mxu0 %v992
  %1442 = vmatprep.subr.bf16.mxu0 %v995
  %1443 = vmatpush1.bf16.msra.mxu0 %v994
  %1444 = vmatprep.subr.bf16.mxu0 %v997
  %1445 = vmatpush1.bf16.msra.mxu0 %v996
  %1446 = vmatprep.subr.bf16.mxu0 %v999
  %1447 = vmatpush1.bf16.msra.mxu0 %v998
  %1448 = vmatprep.subr.bf16.mxu0 %v1001
  %1449 = vmatpush1.bf16.msra.mxu0 %v1000
  %1450 = vmatprep.subr.bf16.mxu0 %v1003
  %1451 = vmatpush1.bf16.msra.mxu0 %v1002
  %1452 = vmatprep.subr.bf16.mxu0 %v1005
  %1453 = vmatpush1.bf16.msra.mxu0 %v1004
  %1454 = vmatprep.subr.bf16.mxu0 %v1007
  %1455 = vmatpush1.bf16.msra.mxu0 %v1006
  %1456 = vmatprep.mubr.bf16.mxu0 %v55
  %1457 = vmatmul.mubr.bf16.gmra.mrb[0].mxu0 %v54
  %v1458 = vpop.f32.mrb[0].mxu0
  %v1459 = vadd.f32 %v297, %v1458
  %v1460 = vpop.f32.mrb[0].mxu0
  %v1461 = vadd.f32 %v301, %v1460
  %v1462 = vpop.f32.mrb[0].mxu0
  %v1463 = vpop.f32.mrb[0].mxu0
  %1464 = vdwg.mxu0
  %1465 = vmatprep.subr.bf16.mxu0 %v1009
  %1466 = vmatpush1.bf16.msra.mxu0 %v1008
  %1467 = vmatprep.subr.bf16.mxu0 %v1011
  %1468 = vmatpush1.bf16.msra.mxu0 %v1010
  %1469 = vmatprep.subr.bf16.mxu0 %v1013
  %1470 = vmatpush1.bf16.msra.mxu0 %v1012
  %1471 = vmatprep.subr.bf16.mxu0 %v1015
  %1472 = vmatpush1.bf16.msra.mxu0 %v1014
  %1473 = vmatprep.subr.bf16.mxu0 %v1017
  %1474 = vmatpush1.bf16.msra.mxu0 %v1016
  %1475 = vmatprep.subr.bf16.mxu0 %v1019
  %1476 = vmatpush1.bf16.msra.mxu0 %v1018
  %1477 = vmatprep.subr.bf16.mxu0 %v1021
  %1478 = vmatpush1.bf16.msra.mxu0 %v1020
  %1479 = vmatprep.subr.bf16.mxu0 %v1023
  %1480 = vmatpush1.bf16.msra.mxu0 %v1022
  %1481 = vmatprep.subr.bf16.mxu0 %v1025
  %1482 = vmatpush1.bf16.msra.mxu0 %v1024
  %1483 = vmatprep.subr.bf16.mxu0 %v1027
  %1484 = vmatpush1.bf16.msra.mxu0 %v1026
  %1485 = vmatprep.subr.bf16.mxu0 %v1029
  %1486 = vmatpush1.bf16.msra.mxu0 %v1028
  %1487 = vmatprep.subr.bf16.mxu0 %v1031
  %1488 = vmatpush1.bf16.msra.mxu0 %v1030
  %1489 = vmatprep.subr.bf16.mxu0 %v1033
  %1490 = vmatpush1.bf16.msra.mxu0 %v1032
  %1491 = vmatprep.subr.bf16.mxu0 %v1035
  %1492 = vmatpush1.bf16.msra.mxu0 %v1034
  %1493 = vmatprep.subr.bf16.mxu0 %v1037
  %1494 = vmatpush1.bf16.msra.mxu0 %v1036
  %1495 = vmatprep.subr.bf16.mxu0 %v1039
  %1496 = vmatpush1.bf16.msra.mxu0 %v1038
  %1497 = vmatprep.mubr.bf16.mxu0 %v57
  %1498 = vmatmul.mubr.bf16.gmra.mrb[0].mxu0 %v56
  %v1499 = vpop.f32.mrb[0].mxu0
  %v1500 = vadd.f32 %v1459, %v1499
  %v1501 = vpop.f32.mrb[0].mxu0
  %v1502 = vadd.f32 %v1461, %v1501
  %v1503 = vpop.f32.mrb[0].mxu0
  %v1504 = vpop.f32.mrb[0].mxu0
  %1505 = vdwg.mxu0
  %1506 = vmatprep.subr.bf16.mxu0 %v1041
  %1507 = vmatpush1.bf16.msra.mxu0 %v1040
  %1508 = vmatprep.subr.bf16.mxu0 %v1043
  %1509 = vmatpush1.bf16.msra.mxu0 %v1042
  %1510 = vmatprep.subr.bf16.mxu0 %v1045
  %1511 = vmatpush1.bf16.msra.mxu0 %v1044
  %1512 = vmatprep.subr.bf16.mxu0 %v1047
  %1513 = vmatpush1.bf16.msra.mxu0 %v1046
  %1514 = vmatprep.subr.bf16.mxu0 %v1049
  %1515 = vmatpush1.bf16.msra.mxu0 %v1048
  %1516 = vmatprep.subr.bf16.mxu0 %v1051
  %1517 = vmatpush1.bf16.msra.mxu0 %v1050
  %1518 = vmatprep.subr.bf16.mxu0 %v1053
  %1519 = vmatpush1.bf16.msra.mxu0 %v1052
  %1520 = vmatprep.subr.bf16.mxu0 %v1055
  %1521 = vmatpush1.bf16.msra.mxu0 %v1054
  %1522 = vmatprep.subr.bf16.mxu0 %v1057
  %1523 = vmatpush1.bf16.msra.mxu0 %v1056
  %1524 = vmatprep.subr.bf16.mxu0 %v1059
  %1525 = vmatpush1.bf16.msra.mxu0 %v1058
  %1526 = vmatprep.subr.bf16.mxu0 %v1061
  %1527 = vmatpush1.bf16.msra.mxu0 %v1060
  %1528 = vmatprep.subr.bf16.mxu0 %v1063
  %1529 = vmatpush1.bf16.msra.mxu0 %v1062
  %1530 = vmatprep.subr.bf16.mxu0 %v1065
  %1531 = vmatpush1.bf16.msra.mxu0 %v1064
  %1532 = vmatprep.subr.bf16.mxu0 %v1067
  %1533 = vmatpush1.bf16.msra.mxu0 %v1066
  %1534 = vmatprep.subr.bf16.mxu0 %v1069
  %1535 = vmatpush1.bf16.msra.mxu0 %v1068
  %1536 = vmatprep.subr.bf16.mxu0 %v1071
  %1537 = vmatpush1.bf16.msra.mxu0 %v1070
  %1538 = vmatprep.mubr.bf16.mxu0 %v59
  %1539 = vmatmul.mubr.bf16.gmra.mrb[0].mxu0 %v58
  %v1540 = vpop.f32.mrb[0].mxu0
  %v1541 = vadd.f32 %v1500, %v1540
  %v1542 = vpop.f32.mrb[0].mxu0
  %v1543 = vadd.f32 %v1502, %v1542
  %v1544 = vpop.f32.mrb[0].mxu0
  %v1545 = vpop.f32.mrb[0].mxu0
  %1546 = vdwg.mxu0
  %1547 = vmatprep.subr.bf16.mxu0 %v1073
  %1548 = vmatpush1.bf16.msra.mxu0 %v1072
  %1549 = vmatprep.subr.bf16.mxu0 %v1075
  %1550 = vmatpush1.bf16.msra.mxu0 %v1074
  %1551 = vmatprep.subr.bf16.mxu0 %v1077
  %1552 = vmatpush1.bf16.msra.mxu0 %v1076
  %1553 = vmatprep.subr.bf16.mxu0 %v1079
  %1554 = vmatpush1.bf16.msra.mxu0 %v1078
  %1555 = vmatprep.subr.bf16.mxu0 %v1081
  %1556 = vmatpush1.bf16.msra.mxu0 %v1080
  %1557 = vmatprep.subr.bf16.mxu0 %v1083
  %1558 = vmatpush1.bf16.msra.mxu0 %v1082
  %1559 = vmatprep.subr.bf16.mxu0 %v1085
  %1560 = vmatpush1.bf16.msra.mxu0 %v1084
  %1561 = vmatprep.subr.bf16.mxu0 %v1087
  %1562 = vmatpush1.bf16.msra.mxu0 %v1086
  %1563 = vmatprep.subr.bf16.mxu0 %v1089
  %1564 = vmatpush1.bf16.msra.mxu0 %v1088
  %1565 = vmatprep.subr.bf16.mxu0 %v1091
  %1566 = vmatpush1.bf16.msra.mxu0 %v1090
  %1567 = vmatprep.subr.bf16.mxu0 %v1093
  %1568 = vmatpush1.bf16.msra.mxu0 %v1092
  %1569 = vmatprep.subr.bf16.mxu0 %v1095
  %1570 = vmatpush1.bf16.msra.mxu0 %v1094
  %1571 = vmatprep.subr.bf16.mxu0 %v1097
  %1572 = vmatpush1.bf16.msra.mxu0 %v1096
  %1573 = vmatprep.subr.bf16.mxu0 %v1099
  %1574 = vmatpush1.bf16.msra.mxu0 %v1098
  %1575 = vmatprep.subr.bf16.mxu0 %v1101
  %1576 = vmatpush1.bf16.msra.mxu0 %v1100
  %1577 = vmatprep.subr.bf16.mxu0 %v1103
  %1578 = vmatpush1.bf16.msra.mxu0 %v1102
  %1579 = vmatprep.mubr.bf16.mxu0 %v61
  %1580 = vmatmul.mubr.bf16.gmra.mrb[0].mxu0 %v60
  %v1581 = vpop.f32.mrb[0].mxu0
  %v1582 = vadd.f32 %v1541, %v1581
  %v1583 = vpop.f32.mrb[0].mxu0
  %v1584 = vadd.f32 %v1543, %v1583
  %v1585 = vpop.f32.mrb[0].mxu0
  %v1586 = vpop.f32.mrb[0].mxu0
  %1587 = vdwg.mxu0
  %1588 = vmatprep.subr.bf16.mxu0 %v1105
  %1589 = vmatpush1.bf16.msra.mxu0 %v1104
  %1590 = vmatprep.subr.bf16.mxu0 %v1107
  %1591 = vmatpush1.bf16.msra.mxu0 %v1106
  %1592 = vmatprep.subr.bf16.mxu0 %v1109
  %1593 = vmatpush1.bf16.msra.mxu0 %v1108
  %1594 = vmatprep.subr.bf16.mxu0 %v1111
  %1595 = vmatpush1.bf16.msra.mxu0 %v1110
  %1596 = vmatprep.subr.bf16.mxu0 %v1113
  %1597 = vmatpush1.bf16.msra.mxu0 %v1112
  %1598 = vmatprep.subr.bf16.mxu0 %v1115
  %1599 = vmatpush1.bf16.msra.mxu0 %v1114
  %1600 = vmatprep.subr.bf16.mxu0 %v1117
  %1601 = vmatpush1.bf16.msra.mxu0 %v1116
  %1602 = vmatprep.subr.bf16.mxu0 %v1119
  %1603 = vmatpush1.bf16.msra.mxu0 %v1118
  %1604 = vmatprep.subr.bf16.mxu0 %v1121
  %1605 = vmatpush1.bf16.msra.mxu0 %v1120
  %1606 = vmatprep.subr.bf16.mxu0 %v1123
  %1607 = vmatpush1.bf16.msra.mxu0 %v1122
  %1608 = vmatprep.subr.bf16.mxu0 %v1125
  %1609 = vmatpush1.bf16.msra.mxu0 %v1124
  %1610 = vmatprep.subr.bf16.mxu0 %v1127
  %1611 = vmatpush1.bf16.msra.mxu0 %v1126
  %1612 = vmatprep.subr.bf16.mxu0 %v1129
  %1613 = vmatpush1.bf16.msra.mxu0 %v1128
  %1614 = vmatprep.subr.bf16.mxu0 %v1131
  %1615 = vmatpush1.bf16.msra.mxu0 %v1130
  %1616 = vmatprep.subr.bf16.mxu0 %v1133
  %1617 = vmatpush1.bf16.msra.mxu0 %v1132
  %1618 = vmatprep.subr.bf16.mxu0 %v1135
  %1619 = vmatpush1.bf16.msra.mxu0 %v1134
  %1620 = vmatprep.mubr.bf16.mxu0 %v63
  %1621 = vmatmul.mubr.bf16.gmra.mrb[0].mxu0 %v62
  %v1622 = vpop.f32.mrb[0].mxu0
  %v1623 = vadd.f32 %v1582, %v1622
  %v1624 = vpop.f32.mrb[0].mxu0
  %v1625 = vadd.f32 %v1584, %v1624
  %v1626 = vpop.f32.mrb[0].mxu0
  %v1627 = vpop.f32.mrb[0].mxu0
  %1628 = vdwg.mxu0
  %1629 = vmatprep.subr.bf16.mxu0 %v1137
  %1630 = vmatpush1.bf16.msra.mxu0 %v1136
  %1631 = vmatprep.subr.bf16.mxu0 %v1139
  %1632 = vmatpush1.bf16.msra.mxu0 %v1138
  %1633 = vmatprep.subr.bf16.mxu0 %v1141
  %1634 = vmatpush1.bf16.msra.mxu0 %v1140
  %1635 = vmatprep.subr.bf16.mxu0 %v1143
  %1636 = vmatpush1.bf16.msra.mxu0 %v1142
  %1637 = vmatprep.subr.bf16.mxu0 %v1145
  %1638 = vmatpush1.bf16.msra.mxu0 %v1144
  %1639 = vmatprep.subr.bf16.mxu0 %v1147
  %1640 = vmatpush1.bf16.msra.mxu0 %v1146
  %1641 = vmatprep.subr.bf16.mxu0 %v1149
  %1642 = vmatpush1.bf16.msra.mxu0 %v1148
  %1643 = vmatprep.subr.bf16.mxu0 %v1151
  %1644 = vmatpush1.bf16.msra.mxu0 %v1150
  %1645 = vmatprep.subr.bf16.mxu0 %v1153
  %1646 = vmatpush1.bf16.msra.mxu0 %v1152
  %1647 = vmatprep.subr.bf16.mxu0 %v1155
  %1648 = vmatpush1.bf16.msra.mxu0 %v1154
  %1649 = vmatprep.subr.bf16.mxu0 %v1157
  %1650 = vmatpush1.bf16.msra.mxu0 %v1156
  %1651 = vmatprep.subr.bf16.mxu0 %v1159
  %1652 = vmatpush1.bf16.msra.mxu0 %v1158
  %1653 = vmatprep.subr.bf16.mxu0 %v1161
  %1654 = vmatpush1.bf16.msra.mxu0 %v1160
  %1655 = vmatprep.subr.bf16.mxu0 %v1163
  %1656 = vmatpush1.bf16.msra.mxu0 %v1162
  %1657 = vmatprep.subr.bf16.mxu0 %v1165
  %1658 = vmatpush1.bf16.msra.mxu0 %v1164
  %1659 = vmatprep.subr.bf16.mxu0 %v1167
  %1660 = vmatpush1.bf16.msra.mxu0 %v1166
  %1661 = vmatprep.mubr.bf16.mxu0 %v65
  %1662 = vmatmul.mubr.bf16.gmra.mrb[0].mxu0 %v64
  %v1663 = vpop.f32.mrb[0].mxu0
  %v1664 = vadd.f32 %v1623, %v1663
  %v1665 = vpop.f32.mrb[0].mxu0
  %v1666 = vadd.f32 %v1625, %v1665
  %v1667 = vpop.f32.mrb[0].mxu0
  %v1668 = vpop.f32.mrb[0].mxu0
  %1669 = vdwg.mxu0
  %1670 = vmatprep.subr.bf16.mxu0 %v1169
  %1671 = vmatpush1.bf16.msra.mxu0 %v1168
  %1672 = vmatprep.subr.bf16.mxu0 %v1171
  %1673 = vmatpush1.bf16.msra.mxu0 %v1170
  %1674 = vmatprep.subr.bf16.mxu0 %v1173
  %1675 = vmatpush1.bf16.msra.mxu0 %v1172
  %1676 = vmatprep.subr.bf16.mxu0 %v1175
  %1677 = vmatpush1.bf16.msra.mxu0 %v1174
  %1678 = vmatprep.subr.bf16.mxu0 %v1177
  %1679 = vmatpush1.bf16.msra.mxu0 %v1176
  %1680 = vmatprep.subr.bf16.mxu0 %v1179
  %1681 = vmatpush1.bf16.msra.mxu0 %v1178
  %1682 = vmatprep.subr.bf16.mxu0 %v1181
  %1683 = vmatpush1.bf16.msra.mxu0 %v1180
  %1684 = vmatprep.subr.bf16.mxu0 %v1183
  %1685 = vmatpush1.bf16.msra.mxu0 %v1182
  %1686 = vmatprep.subr.bf16.mxu0 %v1185
  %1687 = vmatpush1.bf16.msra.mxu0 %v1184
  %1688 = vmatprep.subr.bf16.mxu0 %v1187
  %1689 = vmatpush1.bf16.msra.mxu0 %v1186
  %1690 = vmatprep.subr.bf16.mxu0 %v1189
  %1691 = vmatpush1.bf16.msra.mxu0 %v1188
  %1692 = vmatprep.subr.bf16.mxu0 %v1191
  %1693 = vmatpush1.bf16.msra.mxu0 %v1190
  %1694 = vmatprep.subr.bf16.mxu0 %v1193
  %1695 = vmatpush1.bf16.msra.mxu0 %v1192
  %1696 = vmatprep.subr.bf16.mxu0 %v1195
  %1697 = vmatpush1.bf16.msra.mxu0 %v1194
  %1698 = vmatprep.subr.bf16.mxu0 %v1197
  %1699 = vmatpush1.bf16.msra.mxu0 %v1196
  %1700 = vmatprep.subr.bf16.mxu0 %v1199
  %1701 = vmatpush1.bf16.msra.mxu0 %v1198
  %1702 = vmatprep.mubr.bf16.mxu0 %v67
  %1703 = vmatmul.mubr.bf16.gmra.mrb[0].mxu0 %v66
  %v1704 = vpop.f32.mrb[0].mxu0
  %v1705 = vadd.f32 %v1664, %v1704
  %v1706 = vpop.f32.mrb[0].mxu0
  %v1707 = vadd.f32 %v1666, %v1706
  %v1708 = vpop.f32.mrb[0].mxu0
  %v1709 = vpop.f32.mrb[0].mxu0
  %1710 = vdwg.mxu0
  %v1711 = vmax.f32 %v1705, 0.0
  %v1712 = vmax.f32 %v1707, 0.0
  %v1713 = vld [vmem:[%s10] sm:$0xff]
  %v1714 = vld [vmem:[%s10 + $0x8] sm:$0xff]
  %v1715 = vmul.f32 %v1711, %v1713
  %v1716 = vmul.f32 %v1712, %v1714
  %v1717 = vld [vmem:[%s3] sm:$0xff]
  %v1718 = vld [vmem:[%s3 + $0x8] sm:$0xff]
  %v1719 = vld [vmem:[%s3 + $0x10] sm:$0xff]
  %v1720 = vld [vmem:[%s3 + $0x18] sm:$0xff]
  %v1721 = vld [vmem:[%s3 + $0x20] sm:$0xff]
  %v1722 = vld [vmem:[%s3 + $0x28] sm:$0xff]
  %v1723 = vld [vmem:[%s3 + $0x30] sm:$0xff]
  %v1724 = vld [vmem:[%s3 + $0x38] sm:$0xff]
  %v1725 = vld [vmem:[%s3 + $0x40] sm:$0xff]
  %v1726 = vld [vmem:[%s3 + $0x48] sm:$0xff]
  %v1727 = vld [vmem:[%s3 + $0x50] sm:$0xff]
  %v1728 = vld [vmem:[%s3 + $0x58] sm:$0xff]
  %v1729 = vld [vmem:[%s3 + $0x60] sm:$0xff]
  %v1730 = vld [vmem:[%s3 + $0x68] sm:$0xff]
  %v1731 = vld [vmem:[%s3 + $0x70] sm:$0xff]
  %v1732 = vld [vmem:[%s3 + $0x78] sm:$0xff]
  %v1733 = vld [vmem:[%s3 + $0x80] sm:$0xff]
  %v1734 = vld [vmem:[%s3 + $0x88] sm:$0xff]
  %v1735 = vld [vmem:[%s3 + $0x90] sm:$0xff]
  %v1736 = vld [vmem:[%s3 + $0x98] sm:$0xff]
  %v1737 = vld [vmem:[%s3 + $0xa0] sm:$0xff]
  %v1738 = vld [vmem:[%s3 + $0xa8] sm:$0xff]
  %v1739 = vld [vmem:[%s3 + $0xb0] sm:$0xff]
  %v1740 = vld [vmem:[%s3 + $0xb8] sm:$0xff]
  %v1741 = vld [vmem:[%s3 + $0xc0] sm:$0xff]
  %v1742 = vld [vmem:[%s3 + $0xc8] sm:$0xff]
  %v1743 = vld [vmem:[%s3 + $0xd0] sm:$0xff]
  %v1744 = vld [vmem:[%s3 + $0xd8] sm:$0xff]
  %v1745 = vld [vmem:[%s3 + $0xe0] sm:$0xff]
  %v1746 = vld [vmem:[%s3 + $0xe8] sm:$0xff]
  %v1747 = vld [vmem:[%s3 + $0xf0] sm:$0xff]
  %v1748 = vld [vmem:[%s3 + $0xf8] sm:$0xff]
  %v1749 = vld [vmem:[%s4] sm:$0x1]
  %v1751 = vlaneseq
  %v1752 = vshrl.u32 %v1751, 7
  %v1753 = vsub.s32 0, %v1752
  %v1754 = vrot.slane %v1749, %v1753
  %1756 = vmatprep.subr.mxu0 0.0
  %1757 = vmatpush1.msra.mxu0 %v1717
  %1758 = vmatprep.subr.mxu0 0.0
  %1759 = vmatpush1.msra.mxu0 %v1718
  %1760 = vmatprep.subr.mxu0 0.0
  %1761 = vmatpush1.msra.mxu0 %v1719
  %1762 = vmatprep.subr.mxu0 0.0
  %1763 = vmatpush1.msra.mxu0 %v1720
  %1764 = vmatprep.subr.mxu0 0.0
  %1765 = vmatpush1.msra.mxu0 %v1721
  %1766 = vmatprep.subr.mxu0 0.0
  %1767 = vmatpush1.msra.mxu0 %v1722
  %1768 = vmatprep.subr.mxu0 0.0
  %1769 = vmatpush1.msra.mxu0 %v1723
  %1770 = vmatprep.subr.mxu0 0.0
  %1771 = vmatpush1.msra.mxu0 %v1724
  %1772 = vmatprep.subr.mxu0 0.0
  %1773 = vmatpush1.msra.mxu0 %v1725
  %1774 = vmatprep.subr.mxu0 0.0
  %1775 = vmatpush1.msra.mxu0 %v1726
  %1776 = vmatprep.subr.mxu0 0.0
  %1777 = vmatpush1.msra.mxu0 %v1727
  %1778 = vmatprep.subr.mxu0 0.0
  %1779 = vmatpush1.msra.mxu0 %v1728
  %1780 = vmatprep.subr.mxu0 0.0
  %1781 = vmatpush1.msra.mxu0 %v1729
  %1782 = vmatprep.subr.mxu0 0.0
  %1783 = vmatpush1.msra.mxu0 %v1730
  %1784 = vmatprep.subr.mxu0 0.0
  %1785 = vmatpush1.msra.mxu0 %v1731
  %1786 = vmatprep.subr.mxu0 0.0
  %1787 = vmatpush1.msra.mxu0 %v1732
  %1788 = vmatprep.subr.mxu0 0.0
  %1789 = vmatpush1.msra.mxu0 %v1733
  %1790 = vmatprep.subr.mxu0 0.0
  %1791 = vmatpush1.msra.mxu0 %v1734
  %1792 = vmatprep.subr.mxu0 0.0
  %1793 = vmatpush1.msra.mxu0 %v1735
  %1794 = vmatprep.subr.mxu0 0.0
  %1795 = vmatpush1.msra.mxu0 %v1736
  %1796 = vmatprep.subr.mxu0 0.0
  %1797 = vmatpush1.msra.mxu0 %v1737
  %1798 = vmatprep.subr.mxu0 0.0
  %1799 = vmatpush1.msra.mxu0 %v1738
  %1800 = vmatprep.subr.mxu0 0.0
  %1801 = vmatpush1.msra.mxu0 %v1739
  %1802 = vmatprep.subr.mxu0 0.0
  %1803 = vmatpush1.msra.mxu0 %v1740
  %1804 = vmatprep.subr.mxu0 0.0
  %1805 = vmatpush1.msra.mxu0 %v1741
  %1806 = vmatprep.subr.mxu0 0.0
  %1807 = vmatpush1.msra.mxu0 %v1742
  %1808 = vmatprep.subr.mxu0 0.0
  %1809 = vmatpush1.msra.mxu0 %v1743
  %1810 = vmatprep.subr.mxu0 0.0
  %1811 = vmatpush1.msra.mxu0 %v1744
  %1812 = vmatprep.subr.mxu0 0.0
  %1813 = vmatpush1.msra.mxu0 %v1745
  %1814 = vmatprep.subr.mxu0 0.0
  %1815 = vmatpush1.msra.mxu0 %v1746
  %1816 = vmatprep.subr.mxu0 0.0
  %1817 = vmatpush1.msra.mxu0 %v1747
  %1818 = vmatprep.subr.mxu0 0.0
  %1819 = vmatpush1.msra.mxu0 %v1748
  %1820 = vmatprep.mubr.f32.mxu0 %v1716
  %1821 = vmatmul.mubr.f32.gmra.mrb[0].mxu0 %v1715
  %v1822 = vpop.f32.mrb[0].mxu0
  %v1823 = vadd.f32 %v1754, %v1822
  %v1824 = vpop.f32.mrb[0].mxu0
  %1825 = vdwg.mxu0
  %v1826 = vmul.f32 %v1823, 0.5
  %v1827 = vmul.f32 %v1826, 1.442695
  %v1828 = vpow.pop %v1827
  %v1829 = vld [vmem:[%s9] sm:$0xff]
  %1831 = vrot.lane.b32.xlu0 %v1828, 96
  %v1832 = vpop.permute.xlu0 %1831
  %v1834 = vmul.f32 %v1829, %v1832
  %v1835 = vadd.f32 %v1823, %v1834
  %v1836 = vld [vmem:[%s5] sm:$0xff]
  %v1837 = vld [vmem:[%s5 + $0x8] sm:$0xff]
  %v1838 = vld [vmem:[%s5 + $0x10] sm:$0xff]
  %v1839 = vld [vmem:[%s5 + $0x18] sm:$0xff]
  %v1840 = vld [vmem:[%s5 + $0x20] sm:$0xff]
  %v1841 = vld [vmem:[%s5 + $0x28] sm:$0xff]
  %v1842 = vld [vmem:[%s5 + $0x30] sm:$0xff]
  %v1843 = vld [vmem:[%s5 + $0x38] sm:$0xff]
  %v1844 = vld [vmem:[%s6] sm:$0x3]
  %v1846 = vlaneseq
  %v1847 = vshrl.u32 %v1846, 7
  %v1848 = vsub.s32 0, %v1847
  %v1849 = vrot.slane %v1844, %v1848
  %v1850 = vlaneseq
  %v1851 = vshrl.u32 %v1850, 7
  %v1852 = vsub.s32 1, %v1851
  %v1853 = vrot.slane %v1844, %v1852
  %vm1856 = vcmask 261120
  %v1858 = vsel %vm1856, %v1835, 0
  %1860 = vmatprep.subr.mxu0 %v1837
  %1861 = vmatpush1.msra.mxu0 %v1836
  %1862 = vmatprep.subr.mxu0 %v1839
  %1863 = vmatpush1.msra.mxu0 %v1838
  %1864 = vmatprep.subr.mxu0 %v1841
  %1865 = vmatpush1.msra.mxu0 %v1840
  %1866 = vmatprep.subr.mxu0 %v1843
  %1867 = vmatpush1.msra.mxu0 %v1842
  %1868 = vmatprep.subr.mxu0 0.0
  %1869 = vmatpush1.msra.mxu0 0.0
  %1870 = vmatprep.subr.mxu0 0.0
  %1871 = vmatpush1.msra.mxu0 0.0
  %1872 = vmatprep.subr.mxu0 0.0
  %1873 = vmatpush1.msra.mxu0 0.0
  %1874 = vmatprep.subr.mxu0 0.0
  %1875 = vmatpush1.msra.mxu0 0.0
  %1876 = vmatprep.subr.mxu0 0.0
  %1877 = vmatpush1.msra.mxu0 0.0
  %1878 = vmatprep.subr.mxu0 0.0
  %1879 = vmatpush1.msra.mxu0 0.0
  %1880 = vmatprep.subr.mxu0 0.0
  %1881 = vmatpush1.msra.mxu0 0.0
  %1882 = vmatprep.subr.mxu0 0.0
  %1883 = vmatpush1.msra.mxu0 0.0
  %1884 = vmatprep.subr.mxu0 0.0
  %1885 = vmatpush1.msra.mxu0 0.0
  %1886 = vmatprep.subr.mxu0 0.0
  %1887 = vmatpush1.msra.mxu0 0.0
  %1888 = vmatprep.subr.mxu0 0.0
  %1889 = vmatpush1.msra.mxu0 0.0
  %1890 = vmatprep.subr.mxu0 0.0
  %1891 = vmatpush1.msra.mxu0 0.0
  %1892 = vmatprep.subr.mxu0 0.0
  %1893 = vmatpush1.msra.mxu0 0.0
  %1894 = vmatprep.subr.mxu0 0.0
  %1895 = vmatpush1.msra.mxu0 0.0
  %1896 = vmatprep.subr.mxu0 0.0
  %1897 = vmatpush1.msra.mxu0 0.0
  %1898 = vmatprep.subr.mxu0 0.0
  %1899 = vmatpush1.msra.mxu0 0.0
  %1900 = vmatprep.subr.mxu0 0.0
  %1901 = vmatpush1.msra.mxu0 0.0
  %1902 = vmatprep.subr.mxu0 0.0
  %1903 = vmatpush1.msra.mxu0 0.0
  %1904 = vmatprep.subr.mxu0 0.0
  %1905 = vmatpush1.msra.mxu0 0.0
  %1906 = vmatprep.subr.mxu0 0.0
  %1907 = vmatpush1.msra.mxu0 0.0
  %1908 = vmatprep.subr.mxu0 0.0
  %1909 = vmatpush1.msra.mxu0 0.0
  %1910 = vmatprep.subr.mxu0 0.0
  %1911 = vmatpush1.msra.mxu0 0.0
  %1912 = vmatprep.subr.mxu0 0.0
  %1913 = vmatpush1.msra.mxu0 0.0
  %1914 = vmatprep.subr.mxu0 0.0
  %1915 = vmatpush1.msra.mxu0 0.0
  %1916 = vmatprep.subr.mxu0 0.0
  %1917 = vmatpush1.msra.mxu0 0.0
  %1918 = vmatprep.subr.mxu0 0.0
  %1919 = vmatpush1.msra.mxu0 0.0
  %1920 = vmatprep.subr.mxu0 0.0
  %1921 = vmatpush1.msra.mxu0 0.0
  %1922 = vmatprep.subr.mxu0 0.0
  %1923 = vmatpush1.msra.mxu0 0.0
  %1924 = vmatprep.mubr.f32.mxu0 0.0
  %1925 = vmatmul.mubr.f32.gmra.mrb[0].mxu0 %v1858
  %v1926 = vpop.f32.mrb[0].mxu0
  %v1927 = vadd.f32 %v1849, %v1926
  %v1928 = vpop.f32.mrb[0].mxu0
  %v1929 = vadd.f32 %v1853, %v1928
  %1930 = vdwg.mxu0
  %v1931 = vmax.f32 %v1927, 0.0
  %v1932 = vmax.f32 %v1929, 0.0
  %v1933 = vpack.c.bf16 %v1931, %v1931
  %v1934 = vpack.c.bf16 %v1932, %v1932
  %v1935 = vld [vmem:[%s7] sm:$0xff]
  %v1936 = vld [vmem:[%s7 + $0x8] sm:$0xff]
  %v1937 = vld [vmem:[%s7 + $0x10] sm:$0xff]
  %v1938 = vld [vmem:[%s7 + $0x18] sm:$0xff]
  %v1939 = vld [vmem:[%s7 + $0x20] sm:$0xff]
  %v1940 = vld [vmem:[%s7 + $0x28] sm:$0xff]
  %v1941 = vld [vmem:[%s7 + $0x30] sm:$0xff]
  %v1942 = vld [vmem:[%s7 + $0x38] sm:$0xff]
  %v1943 = vld [vmem:[%s7 + $0x40] sm:$0xff]
  %v1944 = vld [vmem:[%s7 + $0x48] sm:$0xff]
  %v1945 = vld [vmem:[%s7 + $0x50] sm:$0xff]
  %v1946 = vld [vmem:[%s7 + $0x58] sm:$0xff]
  %v1947 = vld [vmem:[%s7 + $0x60] sm:$0xff]
  %v1948 = vld [vmem:[%s7 + $0x68] sm:$0xff]
  %v1949 = vld [vmem:[%s7 + $0x70] sm:$0xff]
  %v1950 = vld [vmem:[%s7 + $0x78] sm:$0xff]
  %v1951 = vld [vmem:[%s7 + $0x80] sm:$0xff]
  %v1952 = vld [vmem:[%s7 + $0x88] sm:$0xff]
  %v1953 = vld [vmem:[%s7 + $0x90] sm:$0xff]
  %v1954 = vld [vmem:[%s7 + $0x98] sm:$0xff]
  %v1955 = vld [vmem:[%s7 + $0xa0] sm:$0xff]
  %v1956 = vld [vmem:[%s7 + $0xa8] sm:$0xff]
  %v1957 = vld [vmem:[%s7 + $0xb0] sm:$0xff]
  %v1958 = vld [vmem:[%s7 + $0xb8] sm:$0xff]
  %v1959 = vld [vmem:[%s7 + $0xc0] sm:$0xff]
  %v1960 = vld [vmem:[%s7 + $0xc8] sm:$0xff]
  %v1961 = vld [vmem:[%s7 + $0xd0] sm:$0xff]
  %v1962 = vld [vmem:[%s7 + $0xd8] sm:$0xff]
  %v1963 = vld [vmem:[%s7 + $0xe0] sm:$0xff]
  %v1964 = vld [vmem:[%s7 + $0xe8] sm:$0xff]
  %v1965 = vld [vmem:[%s7 + $0xf0] sm:$0xff]
  %v1966 = vld [vmem:[%s7 + $0xf8] sm:$0xff]
  %v1967 = vld [vmem:[%s7 + $0x100] sm:$0xff]
  %v1968 = vld [vmem:[%s7 + $0x108] sm:$0xff]
  %v1969 = vld [vmem:[%s7 + $0x110] sm:$0xff]
  %v1970 = vld [vmem:[%s7 + $0x118] sm:$0xff]
  %v1971 = vld [vmem:[%s7 + $0x120] sm:$0xff]
  %v1972 = vld [vmem:[%s7 + $0x128] sm:$0xff]
  %v1973 = vld [vmem:[%s7 + $0x130] sm:$0xff]
  %v1974 = vld [vmem:[%s7 + $0x138] sm:$0xff]
  %v1975 = vld [vmem:[%s7 + $0x140] sm:$0xff]
  %v1976 = vld [vmem:[%s7 + $0x148] sm:$0xff]
  %v1977 = vld [vmem:[%s7 + $0x150] sm:$0xff]
  %v1978 = vld [vmem:[%s7 + $0x158] sm:$0xff]
  %v1979 = vld [vmem:[%s7 + $0x160] sm:$0xff]
  %v1980 = vld [vmem:[%s7 + $0x168] sm:$0xff]
  %v1981 = vld [vmem:[%s7 + $0x170] sm:$0xff]
  %v1982 = vld [vmem:[%s7 + $0x178] sm:$0xff]
  %v1983 = vld [vmem:[%s7 + $0x180] sm:$0xff]
  %v1984 = vld [vmem:[%s7 + $0x188] sm:$0xff]
  %v1985 = vld [vmem:[%s7 + $0x190] sm:$0xff]
  %v1986 = vld [vmem:[%s7 + $0x198] sm:$0xff]
  %v1987 = vld [vmem:[%s7 + $0x1a0] sm:$0xff]
  %v1988 = vld [vmem:[%s7 + $0x1a8] sm:$0xff]
  %v1989 = vld [vmem:[%s7 + $0x1b0] sm:$0xff]
  %v1990 = vld [vmem:[%s7 + $0x1b8] sm:$0xff]
  %v1991 = vld [vmem:[%s7 + $0x1c0] sm:$0xff]
  %v1992 = vld [vmem:[%s7 + $0x1c8] sm:$0xff]
  %v1993 = vld [vmem:[%s7 + $0x1d0] sm:$0xff]
  %v1994 = vld [vmem:[%s7 + $0x1d8] sm:$0xff]
  %v1995 = vld [vmem:[%s7 + $0x1e0] sm:$0xff]
  %v1996 = vld [vmem:[%s7 + $0x1e8] sm:$0xff]
  %v1997 = vld [vmem:[%s7 + $0x1f0] sm:$0xff]
  %v1998 = vld [vmem:[%s7 + $0x1f8] sm:$0xff]
  %v1999 = vld [vmem:[%s7 + $0x200] sm:$0xff]
  %v2000 = vld [vmem:[%s7 + $0x208] sm:$0xff]
  %v2001 = vld [vmem:[%s7 + $0x210] sm:$0xff]
  %v2002 = vld [vmem:[%s7 + $0x218] sm:$0xff]
  %v2003 = vld [vmem:[%s7 + $0x220] sm:$0xff]
  %v2004 = vld [vmem:[%s7 + $0x228] sm:$0xff]
  %v2005 = vld [vmem:[%s7 + $0x230] sm:$0xff]
  %v2006 = vld [vmem:[%s7 + $0x238] sm:$0xff]
  %v2007 = vld [vmem:[%s7 + $0x240] sm:$0xff]
  %v2008 = vld [vmem:[%s7 + $0x248] sm:$0xff]
  %v2009 = vld [vmem:[%s7 + $0x250] sm:$0xff]
  %v2010 = vld [vmem:[%s7 + $0x258] sm:$0xff]
  %v2011 = vld [vmem:[%s7 + $0x260] sm:$0xff]
  %v2012 = vld [vmem:[%s7 + $0x268] sm:$0xff]
  %v2013 = vld [vmem:[%s7 + $0x270] sm:$0xff]
  %v2014 = vld [vmem:[%s7 + $0x278] sm:$0xff]
  %v2015 = vld [vmem:[%s7 + $0x280] sm:$0xff]
  %v2016 = vld [vmem:[%s7 + $0x288] sm:$0xff]
  %v2017 = vld [vmem:[%s7 + $0x290] sm:$0xff]
  %v2018 = vld [vmem:[%s7 + $0x298] sm:$0xff]
  %v2019 = vld [vmem:[%s7 + $0x2a0] sm:$0xff]
  %v2020 = vld [vmem:[%s7 + $0x2a8] sm:$0xff]
  %v2021 = vld [vmem:[%s7 + $0x2b0] sm:$0xff]
  %v2022 = vld [vmem:[%s7 + $0x2b8] sm:$0xff]
  %v2023 = vld [vmem:[%s7 + $0x2c0] sm:$0xff]
  %v2024 = vld [vmem:[%s7 + $0x2c8] sm:$0xff]
  %v2025 = vld [vmem:[%s7 + $0x2d0] sm:$0xff]
  %v2026 = vld [vmem:[%s7 + $0x2d8] sm:$0xff]
  %v2027 = vld [vmem:[%s7 + $0x2e0] sm:$0xff]
  %v2028 = vld [vmem:[%s7 + $0x2e8] sm:$0xff]
  %v2029 = vld [vmem:[%s7 + $0x2f0] sm:$0xff]
  %v2030 = vld [vmem:[%s7 + $0x2f8] sm:$0xff]
  %v2031 = vld [vmem:[%s7 + $0x300] sm:$0xff]
  %v2032 = vld [vmem:[%s7 + $0x308] sm:$0xff]
  %v2033 = vld [vmem:[%s7 + $0x310] sm:$0xff]
  %v2034 = vld [vmem:[%s7 + $0x318] sm:$0xff]
  %v2035 = vld [vmem:[%s7 + $0x320] sm:$0xff]
  %v2036 = vld [vmem:[%s7 + $0x328] sm:$0xff]
  %v2037 = vld [vmem:[%s7 + $0x330] sm:$0xff]
  %v2038 = vld [vmem:[%s7 + $0x338] sm:$0xff]
  %v2039 = vld [vmem:[%s7 + $0x340] sm:$0xff]
  %v2040 = vld [vmem:[%s7 + $0x348] sm:$0xff]
  %v2041 = vld [vmem:[%s7 + $0x350] sm:$0xff]
  %v2042 = vld [vmem:[%s7 + $0x358] sm:$0xff]
  %v2043 = vld [vmem:[%s7 + $0x360] sm:$0xff]
  %v2044 = vld [vmem:[%s7 + $0x368] sm:$0xff]
  %v2045 = vld [vmem:[%s7 + $0x370] sm:$0xff]
  %v2046 = vld [vmem:[%s7 + $0x378] sm:$0xff]
  %v2047 = vld [vmem:[%s7 + $0x380] sm:$0xff]
  %v2048 = vld [vmem:[%s7 + $0x388] sm:$0xff]
  %v2049 = vld [vmem:[%s7 + $0x390] sm:$0xff]
  %v2050 = vld [vmem:[%s7 + $0x398] sm:$0xff]
  %v2051 = vld [vmem:[%s7 + $0x3a0] sm:$0xff]
  %v2052 = vld [vmem:[%s7 + $0x3a8] sm:$0xff]
  %v2053 = vld [vmem:[%s7 + $0x3b0] sm:$0xff]
  %v2054 = vld [vmem:[%s7 + $0x3b8] sm:$0xff]
  %v2055 = vld [vmem:[%s7 + $0x3c0] sm:$0xff]
  %v2056 = vld [vmem:[%s7 + $0x3c8] sm:$0xff]
  %v2057 = vld [vmem:[%s7 + $0x3d0] sm:$0xff]
  %v2058 = vld [vmem:[%s7 + $0x3d8] sm:$0xff]
  %v2059 = vld [vmem:[%s7 + $0x3e0] sm:$0xff]
  %v2060 = vld [vmem:[%s7 + $0x3e8] sm:$0xff]
  %v2061 = vld [vmem:[%s7 + $0x3f0] sm:$0xff]
  %v2062 = vld [vmem:[%s7 + $0x3f8] sm:$0xff]
  %v2063 = vld [vmem:[%s7 + $0x400] sm:$0xff]
  %v2064 = vld [vmem:[%s7 + $0x408] sm:$0xff]
  %v2065 = vld [vmem:[%s7 + $0x410] sm:$0xff]
  %v2066 = vld [vmem:[%s7 + $0x418] sm:$0xff]
  %v2067 = vld [vmem:[%s7 + $0x420] sm:$0xff]
  %v2068 = vld [vmem:[%s7 + $0x428] sm:$0xff]
  %v2069 = vld [vmem:[%s7 + $0x430] sm:$0xff]
  %v2070 = vld [vmem:[%s7 + $0x438] sm:$0xff]
  %v2071 = vld [vmem:[%s7 + $0x440] sm:$0xff]
  %v2072 = vld [vmem:[%s7 + $0x448] sm:$0xff]
  %v2073 = vld [vmem:[%s7 + $0x450] sm:$0xff]
  %v2074 = vld [vmem:[%s7 + $0x458] sm:$0xff]
  %v2075 = vld [vmem:[%s7 + $0x460] sm:$0xff]
  %v2076 = vld [vmem:[%s7 + $0x468] sm:$0xff]
  %v2077 = vld [vmem:[%s7 + $0x470] sm:$0xff]
  %v2078 = vld [vmem:[%s7 + $0x478] sm:$0xff]
  %v2079 = vld [vmem:[%s7 + $0x480] sm:$0xff]
  %v2080 = vld [vmem:[%s7 + $0x488] sm:$0xff]
  %v2081 = vld [vmem:[%s7 + $0x490] sm:$0xff]
  %v2082 = vld [vmem:[%s7 + $0x498] sm:$0xff]
  %v2083 = vld [vmem:[%s7 + $0x4a0] sm:$0xff]
  %v2084 = vld [vmem:[%s7 + $0x4a8] sm:$0xff]
  %v2085 = vld [vmem:[%s7 + $0x4b0] sm:$0xff]
  %v2086 = vld [vmem:[%s7 + $0x4b8] sm:$0xff]
  %v2087 = vld [vmem:[%s7 + $0x4c0] sm:$0xff]
  %v2088 = vld [vmem:[%s7 + $0x4c8] sm:$0xff]
  %v2089 = vld [vmem:[%s7 + $0x4d0] sm:$0xff]
  %v2090 = vld [vmem:[%s7 + $0x4d8] sm:$0xff]
  %v2091 = vld [vmem:[%s7 + $0x4e0] sm:$0xff]
  %v2092 = vld [vmem:[%s7 + $0x4e8] sm:$0xff]
  %v2093 = vld [vmem:[%s7 + $0x4f0] sm:$0xff]
  %v2094 = vld [vmem:[%s7 + $0x4f8] sm:$0xff]
  %v2095 = vld [vmem:[%s7 + $0x500] sm:$0xff]
  %v2096 = vld [vmem:[%s7 + $0x508] sm:$0xff]
  %v2097 = vld [vmem:[%s7 + $0x510] sm:$0xff]
  %v2098 = vld [vmem:[%s7 + $0x518] sm:$0xff]
  %v2099 = vld [vmem:[%s7 + $0x520] sm:$0xff]
  %v2100 = vld [vmem:[%s7 + $0x528] sm:$0xff]
  %v2101 = vld [vmem:[%s7 + $0x530] sm:$0xff]
  %v2102 = vld [vmem:[%s7 + $0x538] sm:$0xff]
  %v2103 = vld [vmem:[%s7 + $0x540] sm:$0xff]
  %v2104 = vld [vmem:[%s7 + $0x548] sm:$0xff]
  %v2105 = vld [vmem:[%s7 + $0x550] sm:$0xff]
  %v2106 = vld [vmem:[%s7 + $0x558] sm:$0xff]
  %v2107 = vld [vmem:[%s7 + $0x560] sm:$0xff]
  %v2108 = vld [vmem:[%s7 + $0x568] sm:$0xff]
  %v2109 = vld [vmem:[%s7 + $0x570] sm:$0xff]
  %v2110 = vld [vmem:[%s7 + $0x578] sm:$0xff]
  %v2111 = vld [vmem:[%s7 + $0x580] sm:$0xff]
  %v2112 = vld [vmem:[%s7 + $0x588] sm:$0xff]
  %v2113 = vld [vmem:[%s7 + $0x590] sm:$0xff]
  %v2114 = vld [vmem:[%s7 + $0x598] sm:$0xff]
  %v2115 = vld [vmem:[%s7 + $0x5a0] sm:$0xff]
  %v2116 = vld [vmem:[%s7 + $0x5a8] sm:$0xff]
  %v2117 = vld [vmem:[%s7 + $0x5b0] sm:$0xff]
  %v2118 = vld [vmem:[%s7 + $0x5b8] sm:$0xff]
  %v2119 = vld [vmem:[%s7 + $0x5c0] sm:$0xff]
  %v2120 = vld [vmem:[%s7 + $0x5c8] sm:$0xff]
  %v2121 = vld [vmem:[%s7 + $0x5d0] sm:$0xff]
  %v2122 = vld [vmem:[%s7 + $0x5d8] sm:$0xff]
  %v2123 = vld [vmem:[%s7 + $0x5e0] sm:$0xff]
  %v2124 = vld [vmem:[%s7 + $0x5e8] sm:$0xff]
  %v2125 = vld [vmem:[%s7 + $0x5f0] sm:$0xff]
  %v2126 = vld [vmem:[%s7 + $0x5f8] sm:$0xff]
  %v2127 = vld [vmem:[%s7 + $0x600] sm:$0xff]
  %v2128 = vld [vmem:[%s7 + $0x608] sm:$0xff]
  %v2129 = vld [vmem:[%s7 + $0x610] sm:$0xff]
  %v2130 = vld [vmem:[%s7 + $0x618] sm:$0xff]
  %v2131 = vld [vmem:[%s7 + $0x620] sm:$0xff]
  %v2132 = vld [vmem:[%s7 + $0x628] sm:$0xff]
  %v2133 = vld [vmem:[%s7 + $0x630] sm:$0xff]
  %v2134 = vld [vmem:[%s7 + $0x638] sm:$0xff]
  %v2135 = vld [vmem:[%s7 + $0x640] sm:$0xff]
  %v2136 = vld [vmem:[%s7 + $0x648] sm:$0xff]
  %v2137 = vld [vmem:[%s7 + $0x650] sm:$0xff]
  %v2138 = vld [vmem:[%s7 + $0x658] sm:$0xff]
  %v2139 = vld [vmem:[%s7 + $0x660] sm:$0xff]
  %v2140 = vld [vmem:[%s7 + $0x668] sm:$0xff]
  %v2141 = vld [vmem:[%s7 + $0x670] sm:$0xff]
  %v2142 = vld [vmem:[%s7 + $0x678] sm:$0xff]
  %v2143 = vld [vmem:[%s7 + $0x680] sm:$0xff]
  %v2144 = vld [vmem:[%s7 + $0x688] sm:$0xff]
  %v2145 = vld [vmem:[%s7 + $0x690] sm:$0xff]
  %v2146 = vld [vmem:[%s7 + $0x698] sm:$0xff]
  %v2147 = vld [vmem:[%s7 + $0x6a0] sm:$0xff]
  %v2148 = vld [vmem:[%s7 + $0x6a8] sm:$0xff]
  %v2149 = vld [vmem:[%s7 + $0x6b0] sm:$0xff]
  %v2150 = vld [vmem:[%s7 + $0x6b8] sm:$0xff]
  %v2151 = vld [vmem:[%s7 + $0x6c0] sm:$0xff]
  %v2152 = vld [vmem:[%s7 + $0x6c8] sm:$0xff]
  %v2153 = vld [vmem:[%s7 + $0x6d0] sm:$0xff]
  %v2154 = vld [vmem:[%s7 + $0x6d8] sm:$0xff]
  %v2155 = vld [vmem:[%s7 + $0x6e0] sm:$0xff]
  %v2156 = vld [vmem:[%s7 + $0x6e8] sm:$0xff]
  %v2157 = vld [vmem:[%s7 + $0x6f0] sm:$0xff]
  %v2158 = vld [vmem:[%s7 + $0x6f8] sm:$0xff]
  %v2159 = vld [vmem:[%s8] sm:$0xff]
  %v2160 = vld [vmem:[%s8 + $0x8] sm:$0x3f]
  %v2163 = vlaneseq
  %v2164 = vshrl.u32 %v2163, 7
  %v2165 = vsub.s32 0, %v2164
  %v2166 = vrot.slane %v2159, %v2165
  %v2167 = vlaneseq
  %v2168 = vshrl.u32 %v2167, 7
  %v2169 = vsub.s32 1, %v2168
  %v2170 = vrot.slane %v2159, %v2169
  %v2171 = vlaneseq
  %v2172 = vshrl.u32 %v2171, 7
  %v2173 = vsub.s32 2, %v2172
  %v2174 = vrot.slane %v2159, %v2173
  %v2175 = vlaneseq
  %v2176 = vshrl.u32 %v2175, 7
  %v2177 = vsub.s32 3, %v2176
  %v2178 = vrot.slane %v2159, %v2177
  %v2179 = vlaneseq
  %v2180 = vshrl.u32 %v2179, 7
  %v2181 = vsub.s32 4, %v2180
  %v2182 = vrot.slane %v2159, %v2181
  %v2183 = vlaneseq
  %v2184 = vshrl.u32 %v2183, 7
  %v2185 = vsub.s32 5, %v2184
  %v2186 = vrot.slane %v2159, %v2185
  %v2187 = vlaneseq
  %v2188 = vshrl.u32 %v2187, 7
  %v2189 = vsub.s32 6, %v2188
  %v2190 = vrot.slane %v2159, %v2189
  %v2191 = vlaneseq
  %v2192 = vshrl.u32 %v2191, 7
  %v2193 = vsub.s32 7, %v2192
  %v2194 = vrot.slane %v2159, %v2193
  %v2195 = vlaneseq
  %v2196 = vshrl.u32 %v2195, 7
  %v2197 = vsub.s32 0, %v2196
  %v2198 = vrot.slane %v2160, %v2197
  %v2199 = vlaneseq
  %v2200 = vshrl.u32 %v2199, 7
  %v2201 = vsub.s32 1, %v2200
  %v2202 = vrot.slane %v2160, %v2201
  %v2203 = vlaneseq
  %v2204 = vshrl.u32 %v2203, 7
  %v2205 = vsub.s32 2, %v2204
  %v2206 = vrot.slane %v2160, %v2205
  %v2207 = vlaneseq
  %v2208 = vshrl.u32 %v2207, 7
  %v2209 = vsub.s32 3, %v2208
  %v2210 = vrot.slane %v2160, %v2209
  %v2211 = vlaneseq
  %v2212 = vshrl.u32 %v2211, 7
  %v2213 = vsub.s32 4, %v2212
  %v2214 = vrot.slane %v2160, %v2213
  %v2215 = vlaneseq
  %v2216 = vshrl.u32 %v2215, 7
  %v2217 = vsub.s32 5, %v2216
  %v2218 = vrot.slane %v2160, %v2217
  %v2457 = vunpack.c.l.b16 %v1935
  %v2458 = vunpack.c.h.b16 %v1935
  %v2459 = vunpack.c.l.b16 %v1936
  %v2460 = vunpack.c.h.b16 %v1936
  %v2461 = vunpack.c.l.b16 %v1937
  %v2462 = vunpack.c.h.b16 %v1937
  %v2463 = vunpack.c.l.b16 %v1938
  %v2464 = vunpack.c.h.b16 %v1938
  %v2465 = vunpack.c.l.b16 %v1939
  %v2466 = vunpack.c.h.b16 %v1939
  %v2467 = vunpack.c.l.b16 %v1940
  %v2468 = vunpack.c.h.b16 %v1940
  %v2469 = vunpack.c.l.b16 %v1941
  %v2470 = vunpack.c.h.b16 %v1941
  %v2471 = vunpack.c.l.b16 %v1942
  %v2472 = vunpack.c.h.b16 %v1942
  %v2473 = vunpack.c.l.b16 %v1943
  %v2474 = vunpack.c.h.b16 %v1943
  %v2475 = vunpack.c.l.b16 %v1944
  %v2476 = vunpack.c.h.b16 %v1944
  %v2477 = vunpack.c.l.b16 %v1945
  %v2478 = vunpack.c.h.b16 %v1945
  %v2479 = vunpack.c.l.b16 %v1946
  %v2480 = vunpack.c.h.b16 %v1946
  %v2481 = vunpack.c.l.b16 %v1947
  %v2482 = vunpack.c.h.b16 %v1947
  %v2483 = vunpack.c.l.b16 %v1948
  %v2484 = vunpack.c.h.b16 %v1948
  %v2485 = vunpack.c.l.b16 %v1949
  %v2486 = vunpack.c.h.b16 %v1949
  %v2487 = vunpack.c.l.b16 %v1950
  %v2488 = vunpack.c.h.b16 %v1950
  %v2489 = vunpack.c.l.b16 %v1951
  %v2490 = vunpack.c.h.b16 %v1951
  %v2491 = vunpack.c.l.b16 %v1952
  %v2492 = vunpack.c.h.b16 %v1952
  %v2493 = vunpack.c.l.b16 %v1953
  %v2494 = vunpack.c.h.b16 %v1953
  %v2495 = vunpack.c.l.b16 %v1954
  %v2496 = vunpack.c.h.b16 %v1954
  %v2497 = vunpack.c.l.b16 %v1955
  %v2498 = vunpack.c.h.b16 %v1955
  %v2499 = vunpack.c.l.b16 %v1956
  %v2500 = vunpack.c.h.b16 %v1956
  %v2501 = vunpack.c.l.b16 %v1957
  %v2502 = vunpack.c.h.b16 %v1957
  %v2503 = vunpack.c.l.b16 %v1958
  %v2504 = vunpack.c.h.b16 %v1958
  %v2505 = vunpack.c.l.b16 %v1959
  %v2506 = vunpack.c.h.b16 %v1959
  %v2507 = vunpack.c.l.b16 %v1960
  %v2508 = vunpack.c.h.b16 %v1960
  %v2509 = vunpack.c.l.b16 %v1961
  %v2510 = vunpack.c.h.b16 %v1961
  %v2511 = vunpack.c.l.b16 %v1962
  %v2512 = vunpack.c.h.b16 %v1962
  %v2513 = vunpack.c.l.b16 %v1963
  %v2514 = vunpack.c.h.b16 %v1963
  %v2515 = vunpack.c.l.b16 %v1964
  %v2516 = vunpack.c.h.b16 %v1964
  %v2517 = vunpack.c.l.b16 %v1965
  %v2518 = vunpack.c.h.b16 %v1965
  %v2519 = vunpack.c.l.b16 %v1966
  %v2520 = vunpack.c.h.b16 %v1966
  %v2521 = vunpack.c.l.b16 %v1967
  %v2522 = vunpack.c.h.b16 %v1967
  %v2523 = vunpack.c.l.b16 %v1968
  %v2524 = vunpack.c.h.b16 %v1968
  %v2525 = vunpack.c.l.b16 %v1969
  %v2526 = vunpack.c.h.b16 %v1969
  %v2527 = vunpack.c.l.b16 %v1970
  %v2528 = vunpack.c.h.b16 %v1970
  %v2529 = vunpack.c.l.b16 %v1971
  %v2530 = vunpack.c.h.b16 %v1971
  %v2531 = vunpack.c.l.b16 %v1972
  %v2532 = vunpack.c.h.b16 %v1972
  %v2533 = vunpack.c.l.b16 %v1973
  %v2534 = vunpack.c.h.b16 %v1973
  %v2535 = vunpack.c.l.b16 %v1974
  %v2536 = vunpack.c.h.b16 %v1974
  %v2537 = vunpack.c.l.b16 %v1975
  %v2538 = vunpack.c.h.b16 %v1975
  %v2539 = vunpack.c.l.b16 %v1976
  %v2540 = vunpack.c.h.b16 %v1976
  %v2541 = vunpack.c.l.b16 %v1977
  %v2542 = vunpack.c.h.b16 %v1977
  %v2543 = vunpack.c.l.b16 %v1978
  %v2544 = vunpack.c.h.b16 %v1978
  %v2545 = vunpack.c.l.b16 %v1979
  %v2546 = vunpack.c.h.b16 %v1979
  %v2547 = vunpack.c.l.b16 %v1980
  %v2548 = vunpack.c.h.b16 %v1980
  %v2549 = vunpack.c.l.b16 %v1981
  %v2550 = vunpack.c.h.b16 %v1981
  %v2551 = vunpack.c.l.b16 %v1982
  %v2552 = vunpack.c.h.b16 %v1982
  %v2553 = vunpack.c.l.b16 %v1983
  %v2554 = vunpack.c.h.b16 %v1983
  %v2555 = vunpack.c.l.b16 %v1984
  %v2556 = vunpack.c.h.b16 %v1984
  %v2557 = vunpack.c.l.b16 %v1985
  %v2558 = vunpack.c.h.b16 %v1985
  %v2559 = vunpack.c.l.b16 %v1986
  %v2560 = vunpack.c.h.b16 %v1986
  %v2561 = vunpack.c.l.b16 %v1987
  %v2562 = vunpack.c.h.b16 %v1987
  %v2563 = vunpack.c.l.b16 %v1988
  %v2564 = vunpack.c.h.b16 %v1988
  %v2565 = vunpack.c.l.b16 %v1989
  %v2566 = vunpack.c.h.b16 %v1989
  %v2567 = vunpack.c.l.b16 %v1990
  %v2568 = vunpack.c.h.b16 %v1990
  %v2569 = vunpack.c.l.b16 %v1991
  %v2570 = vunpack.c.h.b16 %v1991
  %v2571 = vunpack.c.l.b16 %v1992
  %v2572 = vunpack.c.h.b16 %v1992
  %v2573 = vunpack.c.l.b16 %v1993
  %v2574 = vunpack.c.h.b16 %v1993
  %v2575 = vunpack.c.l.b16 %v1994
  %v2576 = vunpack.c.h.b16 %v1994
  %v2577 = vunpack.c.l.b16 %v1995
  %v2578 = vunpack.c.h.b16 %v1995
  %v2579 = vunpack.c.l.b16 %v1996
  %v2580 = vunpack.c.h.b16 %v1996
  %v2581 = vunpack.c.l.b16 %v1997
  %v2582 = vunpack.c.h.b16 %v1997
  %v2583 = vunpack.c.l.b16 %v1998
  %v2584 = vunpack.c.h.b16 %v1998
  %v2585 = vunpack.c.l.b16 %v1999
  %v2586 = vunpack.c.h.b16 %v1999
  %v2587 = vunpack.c.l.b16 %v2000
  %v2588 = vunpack.c.h.b16 %v2000
  %v2589 = vunpack.c.l.b16 %v2001
  %v2590 = vunpack.c.h.b16 %v2001
  %v2591 = vunpack.c.l.b16 %v2002
  %v2592 = vunpack.c.h.b16 %v2002
  %v2593 = vunpack.c.l.b16 %v2003
  %v2594 = vunpack.c.h.b16 %v2003
  %v2595 = vunpack.c.l.b16 %v2004
  %v2596 = vunpack.c.h.b16 %v2004
  %v2597 = vunpack.c.l.b16 %v2005
  %v2598 = vunpack.c.h.b16 %v2005
  %v2599 = vunpack.c.l.b16 %v2006
  %v2600 = vunpack.c.h.b16 %v2006
  %v2601 = vunpack.c.l.b16 %v2007
  %v2602 = vunpack.c.h.b16 %v2007
  %v2603 = vunpack.c.l.b16 %v2008
  %v2604 = vunpack.c.h.b16 %v2008
  %v2605 = vunpack.c.l.b16 %v2009
  %v2606 = vunpack.c.h.b16 %v2009
  %v2607 = vunpack.c.l.b16 %v2010
  %v2608 = vunpack.c.h.b16 %v2010
  %v2609 = vunpack.c.l.b16 %v2011
  %v2610 = vunpack.c.h.b16 %v2011
  %v2611 = vunpack.c.l.b16 %v2012
  %v2612 = vunpack.c.h.b16 %v2012
  %v2613 = vunpack.c.l.b16 %v2013
  %v2614 = vunpack.c.h.b16 %v2013
  %v2615 = vunpack.c.l.b16 %v2014
  %v2616 = vunpack.c.h.b16 %v2014
  %v2617 = vunpack.c.l.b16 %v2015
  %v2618 = vunpack.c.h.b16 %v2015
  %v2619 = vunpack.c.l.b16 %v2016
  %v2620 = vunpack.c.h.b16 %v2016
  %v2621 = vunpack.c.l.b16 %v2017
  %v2622 = vunpack.c.h.b16 %v2017
  %v2623 = vunpack.c.l.b16 %v2018
  %v2624 = vunpack.c.h.b16 %v2018
  %v2625 = vunpack.c.l.b16 %v2019
  %v2626 = vunpack.c.h.b16 %v2019
  %v2627 = vunpack.c.l.b16 %v2020
  %v2628 = vunpack.c.h.b16 %v2020
  %v2629 = vunpack.c.l.b16 %v2021
  %v2630 = vunpack.c.h.b16 %v2021
  %v2631 = vunpack.c.l.b16 %v2022
  %v2632 = vunpack.c.h.b16 %v2022
  %v2633 = vunpack.c.l.b16 %v2023
  %v2634 = vunpack.c.h.b16 %v2023
  %v2635 = vunpack.c.l.b16 %v2024
  %v2636 = vunpack.c.h.b16 %v2024
  %v2637 = vunpack.c.l.b16 %v2025
  %v2638 = vunpack.c.h.b16 %v2025
  %v2639 = vunpack.c.l.b16 %v2026
  %v2640 = vunpack.c.h.b16 %v2026
  %v2641 = vunpack.c.l.b16 %v2027
  %v2642 = vunpack.c.h.b16 %v2027
  %v2643 = vunpack.c.l.b16 %v2028
  %v2644 = vunpack.c.h.b16 %v2028
  %v2645 = vunpack.c.l.b16 %v2029
  %v2646 = vunpack.c.h.b16 %v2029
  %v2647 = vunpack.c.l.b16 %v2030
  %v2648 = vunpack.c.h.b16 %v2030
  %v2649 = vunpack.c.l.b16 %v2031
  %v2650 = vunpack.c.h.b16 %v2031
  %v2651 = vunpack.c.l.b16 %v2032
  %v2652 = vunpack.c.h.b16 %v2032
  %v2653 = vunpack.c.l.b16 %v2033
  %v2654 = vunpack.c.h.b16 %v2033
  %v2655 = vunpack.c.l.b16 %v2034
  %v2656 = vunpack.c.h.b16 %v2034
  %v2657 = vunpack.c.l.b16 %v2035
  %v2658 = vunpack.c.h.b16 %v2035
  %v2659 = vunpack.c.l.b16 %v2036
  %v2660 = vunpack.c.h.b16 %v2036
  %v2661 = vunpack.c.l.b16 %v2037
  %v2662 = vunpack.c.h.b16 %v2037
  %v2663 = vunpack.c.l.b16 %v2038
  %v2664 = vunpack.c.h.b16 %v2038
  %v2665 = vunpack.c.l.b16 %v2039
  %v2666 = vunpack.c.h.b16 %v2039
  %v2667 = vunpack.c.l.b16 %v2040
  %v2668 = vunpack.c.h.b16 %v2040
  %v2669 = vunpack.c.l.b16 %v2041
  %v2670 = vunpack.c.h.b16 %v2041
  %v2671 = vunpack.c.l.b16 %v2042
  %v2672 = vunpack.c.h.b16 %v2042
  %v2673 = vunpack.c.l.b16 %v2043
  %v2674 = vunpack.c.h.b16 %v2043
  %v2675 = vunpack.c.l.b16 %v2044
  %v2676 = vunpack.c.h.b16 %v2044
  %v2677 = vunpack.c.l.b16 %v2045
  %v2678 = vunpack.c.h.b16 %v2045
  %v2679 = vunpack.c.l.b16 %v2046
  %v2680 = vunpack.c.h.b16 %v2046
  %v2681 = vunpack.c.l.b16 %v2047
  %v2682 = vunpack.c.h.b16 %v2047
  %v2683 = vunpack.c.l.b16 %v2048
  %v2684 = vunpack.c.h.b16 %v2048
  %v2685 = vunpack.c.l.b16 %v2049
  %v2686 = vunpack.c.h.b16 %v2049
  %v2687 = vunpack.c.l.b16 %v2050
  %v2688 = vunpack.c.h.b16 %v2050
  %v2689 = vunpack.c.l.b16 %v2051
  %v2690 = vunpack.c.h.b16 %v2051
  %v2691 = vunpack.c.l.b16 %v2052
  %v2692 = vunpack.c.h.b16 %v2052
  %v2693 = vunpack.c.l.b16 %v2053
  %v2694 = vunpack.c.h.b16 %v2053
  %v2695 = vunpack.c.l.b16 %v2054
  %v2696 = vunpack.c.h.b16 %v2054
  %v2697 = vunpack.c.l.b16 %v2055
  %v2698 = vunpack.c.h.b16 %v2055
  %v2699 = vunpack.c.l.b16 %v2056
  %v2700 = vunpack.c.h.b16 %v2056
  %v2701 = vunpack.c.l.b16 %v2057
  %v2702 = vunpack.c.h.b16 %v2057
  %v2703 = vunpack.c.l.b16 %v2058
  %v2704 = vunpack.c.h.b16 %v2058
  %v2705 = vunpack.c.l.b16 %v2059
  %v2706 = vunpack.c.h.b16 %v2059
  %v2707 = vunpack.c.l.b16 %v2060
  %v2708 = vunpack.c.h.b16 %v2060
  %v2709 = vunpack.c.l.b16 %v2061
  %v2710 = vunpack.c.h.b16 %v2061
  %v2711 = vunpack.c.l.b16 %v2062
  %v2712 = vunpack.c.h.b16 %v2062
  %v2713 = vunpack.c.l.b16 %v2063
  %v2714 = vunpack.c.h.b16 %v2063
  %v2715 = vunpack.c.l.b16 %v2064
  %v2716 = vunpack.c.h.b16 %v2064
  %v2717 = vunpack.c.l.b16 %v2065
  %v2718 = vunpack.c.h.b16 %v2065
  %v2719 = vunpack.c.l.b16 %v2066
  %v2720 = vunpack.c.h.b16 %v2066
  %v2721 = vunpack.c.l.b16 %v2067
  %v2722 = vunpack.c.h.b16 %v2067
  %v2723 = vunpack.c.l.b16 %v2068
  %v2724 = vunpack.c.h.b16 %v2068
  %v2725 = vunpack.c.l.b16 %v2069
  %v2726 = vunpack.c.h.b16 %v2069
  %v2727 = vunpack.c.l.b16 %v2070
  %v2728 = vunpack.c.h.b16 %v2070
  %v2729 = vunpack.c.l.b16 %v2071
  %v2730 = vunpack.c.h.b16 %v2071
  %v2731 = vunpack.c.l.b16 %v2072
  %v2732 = vunpack.c.h.b16 %v2072
  %v2733 = vunpack.c.l.b16 %v2073
  %v2734 = vunpack.c.h.b16 %v2073
  %v2735 = vunpack.c.l.b16 %v2074
  %v2736 = vunpack.c.h.b16 %v2074
  %v2737 = vunpack.c.l.b16 %v2075
  %v2738 = vunpack.c.h.b16 %v2075
  %v2739 = vunpack.c.l.b16 %v2076
  %v2740 = vunpack.c.h.b16 %v2076
  %v2741 = vunpack.c.l.b16 %v2077
  %v2742 = vunpack.c.h.b16 %v2077
  %v2743 = vunpack.c.l.b16 %v2078
  %v2744 = vunpack.c.h.b16 %v2078
  %v2745 = vunpack.c.l.b16 %v2079
  %v2746 = vunpack.c.h.b16 %v2079
  %v2747 = vunpack.c.l.b16 %v2080
  %v2748 = vunpack.c.h.b16 %v2080
  %v2749 = vunpack.c.l.b16 %v2081
  %v2750 = vunpack.c.h.b16 %v2081
  %v2751 = vunpack.c.l.b16 %v2082
  %v2752 = vunpack.c.h.b16 %v2082
  %v2753 = vunpack.c.l.b16 %v2083
  %v2754 = vunpack.c.h.b16 %v2083
  %v2755 = vunpack.c.l.b16 %v2084
  %v2756 = vunpack.c.h.b16 %v2084
  %v2757 = vunpack.c.l.b16 %v2085
  %v2758 = vunpack.c.h.b16 %v2085
  %v2759 = vunpack.c.l.b16 %v2086
  %v2760 = vunpack.c.h.b16 %v2086
  %v2761 = vunpack.c.l.b16 %v2087
  %v2762 = vunpack.c.h.b16 %v2087
  %v2763 = vunpack.c.l.b16 %v2088
  %v2764 = vunpack.c.h.b16 %v2088
  %v2765 = vunpack.c.l.b16 %v2089
  %v2766 = vunpack.c.h.b16 %v2089
  %v2767 = vunpack.c.l.b16 %v2090
  %v2768 = vunpack.c.h.b16 %v2090
  %v2769 = vunpack.c.l.b16 %v2091
  %v2770 = vunpack.c.h.b16 %v2091
  %v2771 = vunpack.c.l.b16 %v2092
  %v2772 = vunpack.c.h.b16 %v2092
  %v2773 = vunpack.c.l.b16 %v2093
  %v2774 = vunpack.c.h.b16 %v2093
  %v2775 = vunpack.c.l.b16 %v2094
  %v2776 = vunpack.c.h.b16 %v2094
  %v2777 = vunpack.c.l.b16 %v2095
  %v2778 = vunpack.c.h.b16 %v2095
  %v2779 = vunpack.c.l.b16 %v2096
  %v2780 = vunpack.c.h.b16 %v2096
  %v2781 = vunpack.c.l.b16 %v2097
  %v2782 = vunpack.c.h.b16 %v2097
  %v2783 = vunpack.c.l.b16 %v2098
  %v2784 = vunpack.c.h.b16 %v2098
  %v2785 = vunpack.c.l.b16 %v2099
  %v2786 = vunpack.c.h.b16 %v2099
  %v2787 = vunpack.c.l.b16 %v2100
  %v2788 = vunpack.c.h.b16 %v2100
  %v2789 = vunpack.c.l.b16 %v2101
  %v2790 = vunpack.c.h.b16 %v2101
  %v2791 = vunpack.c.l.b16 %v2102
  %v2792 = vunpack.c.h.b16 %v2102
  %v2793 = vunpack.c.l.b16 %v2103
  %v2794 = vunpack.c.h.b16 %v2103
  %v2795 = vunpack.c.l.b16 %v2104
  %v2796 = vunpack.c.h.b16 %v2104
  %v2797 = vunpack.c.l.b16 %v2105
  %v2798 = vunpack.c.h.b16 %v2105
  %v2799 = vunpack.c.l.b16 %v2106
  %v2800 = vunpack.c.h.b16 %v2106
  %v2801 = vunpack.c.l.b16 %v2107
  %v2802 = vunpack.c.h.b16 %v2107
  %v2803 = vunpack.c.l.b16 %v2108
  %v2804 = vunpack.c.h.b16 %v2108
  %v2805 = vunpack.c.l.b16 %v2109
  %v2806 = vunpack.c.h.b16 %v2109
  %v2807 = vunpack.c.l.b16 %v2110
  %v2808 = vunpack.c.h.b16 %v2110
  %v2809 = vunpack.c.l.b16 %v2111
  %v2810 = vunpack.c.h.b16 %v2111
  %v2811 = vunpack.c.l.b16 %v2112
  %v2812 = vunpack.c.h.b16 %v2112
  %v2813 = vunpack.c.l.b16 %v2113
  %v2814 = vunpack.c.h.b16 %v2113
  %v2815 = vunpack.c.l.b16 %v2114
  %v2816 = vunpack.c.h.b16 %v2114
  %v2817 = vunpack.c.l.b16 %v2115
  %v2818 = vunpack.c.h.b16 %v2115
  %v2819 = vunpack.c.l.b16 %v2116
  %v2820 = vunpack.c.h.b16 %v2116
  %v2821 = vunpack.c.l.b16 %v2117
  %v2822 = vunpack.c.h.b16 %v2117
  %v2823 = vunpack.c.l.b16 %v2118
  %v2824 = vunpack.c.h.b16 %v2118
  %v2825 = vunpack.c.l.b16 %v2119
  %v2826 = vunpack.c.h.b16 %v2119
  %v2827 = vunpack.c.l.b16 %v2120
  %v2828 = vunpack.c.h.b16 %v2120
  %v2829 = vunpack.c.l.b16 %v2121
  %v2830 = vunpack.c.h.b16 %v2121
  %v2831 = vunpack.c.l.b16 %v2122
  %v2832 = vunpack.c.h.b16 %v2122
  %v2833 = vunpack.c.l.b16 %v2123
  %v2834 = vunpack.c.h.b16 %v2123
  %v2835 = vunpack.c.l.b16 %v2124
  %v2836 = vunpack.c.h.b16 %v2124
  %v2837 = vunpack.c.l.b16 %v2125
  %v2838 = vunpack.c.h.b16 %v2125
  %v2839 = vunpack.c.l.b16 %v2126
  %v2840 = vunpack.c.h.b16 %v2126
  %v2841 = vunpack.c.l.b16 %v2127
  %v2842 = vunpack.c.h.b16 %v2127
  %v2843 = vunpack.c.l.b16 %v2128
  %v2844 = vunpack.c.h.b16 %v2128
  %v2845 = vunpack.c.l.b16 %v2129
  %v2846 = vunpack.c.h.b16 %v2129
  %v2847 = vunpack.c.l.b16 %v2130
  %v2848 = vunpack.c.h.b16 %v2130
  %v2849 = vunpack.c.l.b16 %v2131
  %v2850 = vunpack.c.h.b16 %v2131
  %v2851 = vunpack.c.l.b16 %v2132
  %v2852 = vunpack.c.h.b16 %v2132
  %v2853 = vunpack.c.l.b16 %v2133
  %v2854 = vunpack.c.h.b16 %v2133
  %v2855 = vunpack.c.l.b16 %v2134
  %v2856 = vunpack.c.h.b16 %v2134
  %v2857 = vunpack.c.l.b16 %v2135
  %v2858 = vunpack.c.h.b16 %v2135
  %v2859 = vunpack.c.l.b16 %v2136
  %v2860 = vunpack.c.h.b16 %v2136
  %v2861 = vunpack.c.l.b16 %v2137
  %v2862 = vunpack.c.h.b16 %v2137
  %v2863 = vunpack.c.l.b16 %v2138
  %v2864 = vunpack.c.h.b16 %v2138
  %v2865 = vunpack.c.l.b16 %v2139
  %v2866 = vunpack.c.h.b16 %v2139
  %v2867 = vunpack.c.l.b16 %v2140
  %v2868 = vunpack.c.h.b16 %v2140
  %v2869 = vunpack.c.l.b16 %v2141
  %v2870 = vunpack.c.h.b16 %v2141
  %v2871 = vunpack.c.l.b16 %v2142
  %v2872 = vunpack.c.h.b16 %v2142
  %v2873 = vunpack.c.l.b16 %v2143
  %v2874 = vunpack.c.h.b16 %v2143
  %v2875 = vunpack.c.l.b16 %v2144
  %v2876 = vunpack.c.h.b16 %v2144
  %v2877 = vunpack.c.l.b16 %v2145
  %v2878 = vunpack.c.h.b16 %v2145
  %v2879 = vunpack.c.l.b16 %v2146
  %v2880 = vunpack.c.h.b16 %v2146
  %v2881 = vunpack.c.l.b16 %v2147
  %v2882 = vunpack.c.h.b16 %v2147
  %v2883 = vunpack.c.l.b16 %v2148
  %v2884 = vunpack.c.h.b16 %v2148
  %v2885 = vunpack.c.l.b16 %v2149
  %v2886 = vunpack.c.h.b16 %v2149
  %v2887 = vunpack.c.l.b16 %v2150
  %v2888 = vunpack.c.h.b16 %v2150
  %v2889 = vunpack.c.l.b16 %v2151
  %v2890 = vunpack.c.h.b16 %v2151
  %v2891 = vunpack.c.l.b16 %v2152
  %v2892 = vunpack.c.h.b16 %v2152
  %v2893 = vunpack.c.l.b16 %v2153
  %v2894 = vunpack.c.h.b16 %v2153
  %v2895 = vunpack.c.l.b16 %v2154
  %v2896 = vunpack.c.h.b16 %v2154
  %v2897 = vunpack.c.l.b16 %v2155
  %v2898 = vunpack.c.h.b16 %v2155
  %v2899 = vunpack.c.l.b16 %v2156
  %v2900 = vunpack.c.h.b16 %v2156
  %v2901 = vunpack.c.l.b16 %v2157
  %v2902 = vunpack.c.h.b16 %v2157
  %v2903 = vunpack.c.l.b16 %v2158
  %v2904 = vunpack.c.h.b16 %v2158
  %v2905 = vpack.c.b16 %v2471, %v2457
  %v2906 = vpack.c.b16 %v2472, %v2458
  %v2907 = vpack.c.b16 %v2473, %v2459
  %v2908 = vpack.c.b16 %v2474, %v2460
  %v2909 = vpack.c.b16 %v2475, %v2461
  %v2910 = vpack.c.b16 %v2476, %v2462
  %v2911 = vpack.c.b16 %v2477, %v2463
  %v2912 = vpack.c.b16 %v2478, %v2464
  %v2913 = vpack.c.b16 %v2479, %v2465
  %v2914 = vpack.c.b16 %v2480, %v2466
  %v2915 = vpack.c.b16 %v2481, %v2467
  %v2916 = vpack.c.b16 %v2482, %v2468
  %v2917 = vpack.c.b16 %v2483, %v2469
  %v2918 = vpack.c.b16 %v2484, %v2470
  %v2919 = vpack.c.b16 %v2499, %v2485
  %v2920 = vpack.c.b16 %v2500, %v2486
  %v2921 = vpack.c.b16 %v2501, %v2487
  %v2922 = vpack.c.b16 %v2502, %v2488
  %v2923 = vpack.c.b16 %v2503, %v2489
  %v2924 = vpack.c.b16 %v2504, %v2490
  %v2925 = vpack.c.b16 %v2505, %v2491
  %v2926 = vpack.c.b16 %v2506, %v2492
  %v2927 = vpack.c.b16 %v2507, %v2493
  %v2928 = vpack.c.b16 %v2508, %v2494
  %v2929 = vpack.c.b16 %v2509, %v2495
  %v2930 = vpack.c.b16 %v2510, %v2496
  %v2931 = vpack.c.b16 %v2511, %v2497
  %v2932 = vpack.c.b16 %v2512, %v2498
  %v2933 = vpack.c.b16 %v2527, %v2513
  %v2934 = vpack.c.b16 %v2528, %v2514
  %v2935 = vpack.c.b16 %v2529, %v2515
  %v2936 = vpack.c.b16 %v2530, %v2516
  %v2937 = vpack.c.b16 %v2531, %v2517
  %v2938 = vpack.c.b16 %v2532, %v2518
  %v2939 = vpack.c.b16 %v2533, %v2519
  %v2940 = vpack.c.b16 %v2534, %v2520
  %v2941 = vpack.c.b16 %v2535, %v2521
  %v2942 = vpack.c.b16 %v2536, %v2522
  %v2943 = vpack.c.b16 %v2537, %v2523
  %v2944 = vpack.c.b16 %v2538, %v2524
  %v2945 = vpack.c.b16 %v2539, %v2525
  %v2946 = vpack.c.b16 %v2540, %v2526
  %v2947 = vpack.c.b16 %v2555, %v2541
  %v2948 = vpack.c.b16 %v2556, %v2542
  %v2949 = vpack.c.b16 %v2557, %v2543
  %v2950 = vpack.c.b16 %v2558, %v2544
  %v2951 = vpack.c.b16 %v2559, %v2545
  %v2952 = vpack.c.b16 %v2560, %v2546
  %v2953 = vpack.c.b16 %v2561, %v2547
  %v2954 = vpack.c.b16 %v2562, %v2548
  %v2955 = vpack.c.b16 %v2563, %v2549
  %v2956 = vpack.c.b16 %v2564, %v2550
  %v2957 = vpack.c.b16 %v2565, %v2551
  %v2958 = vpack.c.b16 %v2566, %v2552
  %v2959 = vpack.c.b16 %v2567, %v2553
  %v2960 = vpack.c.b16 %v2568, %v2554
  %v2961 = vpack.c.b16 %v2583, %v2569
  %v2962 = vpack.c.b16 %v2584, %v2570
  %v2963 = vpack.c.b16 %v2585, %v2571
  %v2964 = vpack.c.b16 %v2586, %v2572
  %v2965 = vpack.c.b16 %v2587, %v2573
  %v2966 = vpack.c.b16 %v2588, %v2574
  %v2967 = vpack.c.b16 %v2589, %v2575
  %v2968 = vpack.c.b16 %v2590, %v2576
  %v2969 = vpack.c.b16 %v2591, %v2577
  %v2970 = vpack.c.b16 %v2592, %v2578
  %v2971 = vpack.c.b16 %v2593, %v2579
  %v2972 = vpack.c.b16 %v2594, %v2580
  %v2973 = vpack.c.b16 %v2595, %v2581
  %v2974 = vpack.c.b16 %v2596, %v2582
  %v2975 = vpack.c.b16 %v2611, %v2597
  %v2976 = vpack.c.b16 %v2612, %v2598
  %v2977 = vpack.c.b16 %v2613, %v2599
  %v2978 = vpack.c.b16 %v2614, %v2600
  %v2979 = vpack.c.b16 %v2615, %v2601
  %v2980 = vpack.c.b16 %v2616, %v2602
  %v2981 = vpack.c.b16 %v2617, %v2603
  %v2982 = vpack.c.b16 %v2618, %v2604
  %v2983 = vpack.c.b16 %v2619, %v2605
  %v2984 = vpack.c.b16 %v2620, %v2606
  %v2985 = vpack.c.b16 %v2621, %v2607
  %v2986 = vpack.c.b16 %v2622, %v2608
  %v2987 = vpack.c.b16 %v2623, %v2609
  %v2988 = vpack.c.b16 %v2624, %v2610
  %v2989 = vpack.c.b16 %v2639, %v2625
  %v2990 = vpack.c.b16 %v2640, %v2626
  %v2991 = vpack.c.b16 %v2641, %v2627
  %v2992 = vpack.c.b16 %v2642, %v2628
  %v2993 = vpack.c.b16 %v2643, %v2629
  %v2994 = vpack.c.b16 %v2644, %v2630
  %v2995 = vpack.c.b16 %v2645, %v2631
  %v2996 = vpack.c.b16 %v2646, %v2632
  %v2997 = vpack.c.b16 %v2647, %v2633
  %v2998 = vpack.c.b16 %v2648, %v2634
  %v2999 = vpack.c.b16 %v2649, %v2635
  %v3000 = vpack.c.b16 %v2650, %v2636
  %v3001 = vpack.c.b16 %v2651, %v2637
  %v3002 = vpack.c.b16 %v2652, %v2638
  %v3003 = vpack.c.b16 %v2667, %v2653
  %v3004 = vpack.c.b16 %v2668, %v2654
  %v3005 = vpack.c.b16 %v2669, %v2655
  %v3006 = vpack.c.b16 %v2670, %v2656
  %v3007 = vpack.c.b16 %v2671, %v2657
  %v3008 = vpack.c.b16 %v2672, %v2658
  %v3009 = vpack.c.b16 %v2673, %v2659
  %v3010 = vpack.c.b16 %v2674, %v2660
  %v3011 = vpack.c.b16 %v2675, %v2661
  %v3012 = vpack.c.b16 %v2676, %v2662
  %v3013 = vpack.c.b16 %v2677, %v2663
  %v3014 = vpack.c.b16 %v2678, %v2664
  %v3015 = vpack.c.b16 %v2679, %v2665
  %v3016 = vpack.c.b16 %v2680, %v2666
  %v3017 = vpack.c.b16 %v2695, %v2681
  %v3018 = vpack.c.b16 %v2696, %v2682
  %v3019 = vpack.c.b16 %v2697, %v2683
  %v3020 = vpack.c.b16 %v2698, %v2684
  %v3021 = vpack.c.b16 %v2699, %v2685
  %v3022 = vpack.c.b16 %v2700, %v2686
  %v3023 = vpack.c.b16 %v2701, %v2687
  %v3024 = vpack.c.b16 %v2702, %v2688
  %v3025 = vpack.c.b16 %v2703, %v2689
  %v3026 = vpack.c.b16 %v2704, %v2690
  %v3027 = vpack.c.b16 %v2705, %v2691
  %v3028 = vpack.c.b16 %v2706, %v2692
  %v3029 = vpack.c.b16 %v2707, %v2693
  %v3030 = vpack.c.b16 %v2708, %v2694
  %v3031 = vpack.c.b16 %v2723, %v2709
  %v3032 = vpack.c.b16 %v2724, %v2710
  %v3033 = vpack.c.b16 %v2725, %v2711
  %v3034 = vpack.c.b16 %v2726, %v2712
  %v3035 = vpack.c.b16 %v2727, %v2713
  %v3036 = vpack.c.b16 %v2728, %v2714
  %v3037 = vpack.c.b16 %v2729, %v2715
  %v3038 = vpack.c.b16 %v2730, %v2716
  %v3039 = vpack.c.b16 %v2731, %v2717
  %v3040 = vpack.c.b16 %v2732, %v2718
  %v3041 = vpack.c.b16 %v2733, %v2719
  %v3042 = vpack.c.b16 %v2734, %v2720
  %v3043 = vpack.c.b16 %v2735, %v2721
  %v3044 = vpack.c.b16 %v2736, %v2722
  %v3045 = vpack.c.b16 %v2751, %v2737
  %v3046 = vpack.c.b16 %v2752, %v2738
  %v3047 = vpack.c.b16 %v2753, %v2739
  %v3048 = vpack.c.b16 %v2754, %v2740
  %v3049 = vpack.c.b16 %v2755, %v2741
  %v3050 = vpack.c.b16 %v2756, %v2742
  %v3051 = vpack.c.b16 %v2757, %v2743
  %v3052 = vpack.c.b16 %v2758, %v2744
  %v3053 = vpack.c.b16 %v2759, %v2745
  %v3054 = vpack.c.b16 %v2760, %v2746
  %v3055 = vpack.c.b16 %v2761, %v2747
  %v3056 = vpack.c.b16 %v2762, %v2748
  %v3057 = vpack.c.b16 %v2763, %v2749
  %v3058 = vpack.c.b16 %v2764, %v2750
  %v3059 = vpack.c.b16 %v2779, %v2765
  %v3060 = vpack.c.b16 %v2780, %v2766
  %v3061 = vpack.c.b16 %v2781, %v2767
  %v3062 = vpack.c.b16 %v2782, %v2768
  %v3063 = vpack.c.b16 %v2783, %v2769
  %v3064 = vpack.c.b16 %v2784, %v2770
  %v3065 = vpack.c.b16 %v2785, %v2771
  %v3066 = vpack.c.b16 %v2786, %v2772
  %v3067 = vpack.c.b16 %v2787, %v2773
  %v3068 = vpack.c.b16 %v2788, %v2774
  %v3069 = vpack.c.b16 %v2789, %v2775
  %v3070 = vpack.c.b16 %v2790, %v2776
  %v3071 = vpack.c.b16 %v2791, %v2777
  %v3072 = vpack.c.b16 %v2792, %v2778
  %v3073 = vpack.c.b16 %v2807, %v2793
  %v3074 = vpack.c.b16 %v2808, %v2794
  %v3075 = vpack.c.b16 %v2809, %v2795
  %v3076 = vpack.c.b16 %v2810, %v2796
  %v3077 = vpack.c.b16 %v2811, %v2797
  %v3078 = vpack.c.b16 %v2812, %v2798
  %v3079 = vpack.c.b16 %v2813, %v2799
  %v3080 = vpack.c.b16 %v2814, %v2800
  %v3081 = vpack.c.b16 %v2815, %v2801
  %v3082 = vpack.c.b16 %v2816, %v2802
  %v3083 = vpack.c.b16 %v2817, %v2803
  %v3084 = vpack.c.b16 %v2818, %v2804
  %v3085 = vpack.c.b16 %v2819, %v2805
  %v3086 = vpack.c.b16 %v2820, %v2806
  %v3087 = vpack.c.b16 %v2835, %v2821
  %v3088 = vpack.c.b16 %v2836, %v2822
  %v3089 = vpack.c.b16 %v2837, %v2823
  %v3090 = vpack.c.b16 %v2838, %v2824
  %v3091 = vpack.c.b16 %v2839, %v2825
  %v3092 = vpack.c.b16 %v2840, %v2826
  %v3093 = vpack.c.b16 %v2841, %v2827
  %v3094 = vpack.c.b16 %v2842, %v2828
  %v3095 = vpack.c.b16 %v2843, %v2829
  %v3096 = vpack.c.b16 %v2844, %v2830
  %v3097 = vpack.c.b16 %v2845, %v2831
  %v3098 = vpack.c.b16 %v2846, %v2832
  %v3099 = vpack.c.b16 %v2847, %v2833
  %v3100 = vpack.c.b16 %v2848, %v2834
  %v3101 = vpack.c.b16 %v2863, %v2849
  %v3102 = vpack.c.b16 %v2864, %v2850
  %v3103 = vpack.c.b16 %v2865, %v2851
  %v3104 = vpack.c.b16 %v2866, %v2852
  %v3105 = vpack.c.b16 %v2867, %v2853
  %v3106 = vpack.c.b16 %v2868, %v2854
  %v3107 = vpack.c.b16 %v2869, %v2855
  %v3108 = vpack.c.b16 %v2870, %v2856
  %v3109 = vpack.c.b16 %v2871, %v2857
  %v3110 = vpack.c.b16 %v2872, %v2858
  %v3111 = vpack.c.b16 %v2873, %v2859
  %v3112 = vpack.c.b16 %v2874, %v2860
  %v3113 = vpack.c.b16 %v2875, %v2861
  %v3114 = vpack.c.b16 %v2876, %v2862
  %v3115 = vpack.c.b16 %v2891, %v2877
  %v3116 = vpack.c.b16 %v2892, %v2878
  %v3117 = vpack.c.b16 %v2893, %v2879
  %v3118 = vpack.c.b16 %v2894, %v2880
  %v3119 = vpack.c.b16 %v2895, %v2881
  %v3120 = vpack.c.b16 %v2896, %v2882
  %v3121 = vpack.c.b16 %v2897, %v2883
  %v3122 = vpack.c.b16 %v2898, %v2884
  %v3123 = vpack.c.b16 %v2899, %v2885
  %v3124 = vpack.c.b16 %v2900, %v2886
  %v3125 = vpack.c.b16 %v2901, %v2887
  %v3126 = vpack.c.b16 %v2902, %v2888
  %v3127 = vpack.c.b16 %v2903, %v2889
  %v3128 = vpack.c.b16 %v2904, %v2890
  %3353 = vmatprep.subr.bf16.mxu0 %v2906
  %3354 = vmatpush1.bf16.msra.mxu0 %v2905
  %3355 = vmatprep.subr.bf16.mxu0 %v2920
  %3356 = vmatpush1.bf16.msra.mxu0 %v2919
  %3357 = vmatprep.subr.bf16.mxu0 %v2934
  %3358 = vmatpush1.bf16.msra.mxu0 %v2933
  %3359 = vmatprep.subr.bf16.mxu0 %v2948
  %3360 = vmatpush1.bf16.msra.mxu0 %v2947
  %3361 = vmatprep.subr.bf16.mxu0 %v2962
  %3362 = vmatpush1.bf16.msra.mxu0 %v2961
  %3363 = vmatprep.subr.bf16.mxu0 %v2976
  %3364 = vmatpush1.bf16.msra.mxu0 %v2975
  %3365 = vmatprep.subr.bf16.mxu0 %v2990
  %3366 = vmatpush1.bf16.msra.mxu0 %v2989
  %3367 = vmatprep.subr.bf16.mxu0 %v3004
  %3368 = vmatpush1.bf16.msra.mxu0 %v3003
  %3369 = vmatprep.subr.bf16.mxu0 %v3018
  %3370 = vmatpush1.bf16.msra.mxu0 %v3017
  %3371 = vmatprep.subr.bf16.mxu0 %v3032
  %3372 = vmatpush1.bf16.msra.mxu0 %v3031
  %3373 = vmatprep.subr.bf16.mxu0 %v3046
  %3374 = vmatpush1.bf16.msra.mxu0 %v3045
  %3375 = vmatprep.subr.bf16.mxu0 %v3060
  %3376 = vmatpush1.bf16.msra.mxu0 %v3059
  %3377 = vmatprep.subr.bf16.mxu0 %v3074
  %3378 = vmatpush1.bf16.msra.mxu0 %v3073
  %3379 = vmatprep.subr.bf16.mxu0 %v3088
  %3380 = vmatpush1.bf16.msra.mxu0 %v3087
  %3381 = vmatprep.subr.bf16.mxu0 %v3102
  %3382 = vmatpush1.bf16.msra.mxu0 %v3101
  %3383 = vmatprep.subr.bf16.mxu0 %v3116
  %3384 = vmatpush1.bf16.msra.mxu0 %v3115
  %3385 = vmatprep.mubr.bf16.mxu0 %v1934
  %3386 = vmatmul.mubr.bf16.gmra.mrb[0].mxu0 %v1933
  %v3387 = vpop.f32.mrb[0].mxu0
  %v3388 = vadd.f32 %v2166, %v3387
  %v3389 = vpop.f32.mrb[0].mxu0
  %v3390 = vadd.f32 %v2170, %v3389
  %v3391 = vpop.f32.mrb[0].mxu0
  %v3392 = vpop.f32.mrb[0].mxu0
  %3393 = vdwg.mxu0
  %3394 = vmatprep.subr.bf16.mxu0 %v2908
  %3395 = vmatpush1.bf16.msra.mxu0 %v2907
  %3396 = vmatprep.subr.bf16.mxu0 %v2922
  %3397 = vmatpush1.bf16.msra.mxu0 %v2921
  %3398 = vmatprep.subr.bf16.mxu0 %v2936
  %3399 = vmatpush1.bf16.msra.mxu0 %v2935
  %3400 = vmatprep.subr.bf16.mxu0 %v2950
  %3401 = vmatpush1.bf16.msra.mxu0 %v2949
  %3402 = vmatprep.subr.bf16.mxu0 %v2964
  %3403 = vmatpush1.bf16.msra.mxu0 %v2963
  %3404 = vmatprep.subr.bf16.mxu0 %v2978
  %3405 = vmatpush1.bf16.msra.mxu0 %v2977
  %3406 = vmatprep.subr.bf16.mxu0 %v2992
  %3407 = vmatpush1.bf16.msra.mxu0 %v2991
  %3408 = vmatprep.subr.bf16.mxu0 %v3006
  %3409 = vmatpush1.bf16.msra.mxu0 %v3005
  %3410 = vmatprep.subr.bf16.mxu0 %v3020
  %3411 = vmatpush1.bf16.msra.mxu0 %v3019
  %3412 = vmatprep.subr.bf16.mxu0 %v3034
  %3413 = vmatpush1.bf16.msra.mxu0 %v3033
  %3414 = vmatprep.subr.bf16.mxu0 %v3048
  %3415 = vmatpush1.bf16.msra.mxu0 %v3047
  %3416 = vmatprep.subr.bf16.mxu0 %v3062
  %3417 = vmatpush1.bf16.msra.mxu0 %v3061
  %3418 = vmatprep.subr.bf16.mxu0 %v3076
  %3419 = vmatpush1.bf16.msra.mxu0 %v3075
  %3420 = vmatprep.subr.bf16.mxu0 %v3090
  %3421 = vmatpush1.bf16.msra.mxu0 %v3089
  %3422 = vmatprep.subr.bf16.mxu0 %v3104
  %3423 = vmatpush1.bf16.msra.mxu0 %v3103
  %3424 = vmatprep.subr.bf16.mxu0 %v3118
  %3425 = vmatpush1.bf16.msra.mxu0 %v3117
  %3426 = vmatprep.mubr.bf16.mxu0 %v1934
  %3427 = vmatmul.mubr.bf16.gmra.mrb[0].mxu0 %v1933
  %v3428 = vpop.f32.mrb[0].mxu0
  %v3429 = vadd.f32 %v2174, %v3428
  %v3430 = vpop.f32.mrb[0].mxu0
  %v3431 = vadd.f32 %v2178, %v3430
  %v3432 = vpop.f32.mrb[0].mxu0
  %v3433 = vpop.f32.mrb[0].mxu0
  %3434 = vdwg.mxu0
  %3435 = vmatprep.subr.bf16.mxu0 %v2910
  %3436 = vmatpush1.bf16.msra.mxu0 %v2909
  %3437 = vmatprep.subr.bf16.mxu0 %v2924
  %3438 = vmatpush1.bf16.msra.mxu0 %v2923
  %3439 = vmatprep.subr.bf16.mxu0 %v2938
  %3440 = vmatpush1.bf16.msra.mxu0 %v2937
  %3441 = vmatprep.subr.bf16.mxu0 %v2952
  %3442 = vmatpush1.bf16.msra.mxu0 %v2951
  %3443 = vmatprep.subr.bf16.mxu0 %v2966
  %3444 = vmatpush1.bf16.msra.mxu0 %v2965
  %3445 = vmatprep.subr.bf16.mxu0 %v2980
  %3446 = vmatpush1.bf16.msra.mxu0 %v2979
  %3447 = vmatprep.subr.bf16.mxu0 %v2994
  %3448 = vmatpush1.bf16.msra.mxu0 %v2993
  %3449 = vmatprep.subr.bf16.mxu0 %v3008
  %3450 = vmatpush1.bf16.msra.mxu0 %v3007
  %3451 = vmatprep.subr.bf16.mxu0 %v3022
  %3452 = vmatpush1.bf16.msra.mxu0 %v3021
  %3453 = vmatprep.subr.bf16.mxu0 %v3036
  %3454 = vmatpush1.bf16.msra.mxu0 %v3035
  %3455 = vmatprep.subr.bf16.mxu0 %v3050
  %3456 = vmatpush1.bf16.msra.mxu0 %v3049
  %3457 = vmatprep.subr.bf16.mxu0 %v3064
  %3458 = vmatpush1.bf16.msra.mxu0 %v3063
  %3459 = vmatprep.subr.bf16.mxu0 %v3078
  %3460 = vmatpush1.bf16.msra.mxu0 %v3077
  %3461 = vmatprep.subr.bf16.mxu0 %v3092
  %3462 = vmatpush1.bf16.msra.mxu0 %v3091
  %3463 = vmatprep.subr.bf16.mxu0 %v3106
  %3464 = vmatpush1.bf16.msra.mxu0 %v3105
  %3465 = vmatprep.subr.bf16.mxu0 %v3120
  %3466 = vmatpush1.bf16.msra.mxu0 %v3119
  %3467 = vmatprep.mubr.bf16.mxu0 %v1934
  %3468 = vmatmul.mubr.bf16.gmra.mrb[0].mxu0 %v1933
  %v3469 = vpop.f32.mrb[0].mxu0
  %v3470 = vadd.f32 %v2182, %v3469
  %v3471 = vpop.f32.mrb[0].mxu0
  %v3472 = vadd.f32 %v2186, %v3471
  %v3473 = vpop.f32.mrb[0].mxu0
  %v3474 = vpop.f32.mrb[0].mxu0
  %3475 = vdwg.mxu0
  %3476 = vmatprep.subr.bf16.mxu0 %v2912
  %3477 = vmatpush1.bf16.msra.mxu0 %v2911
  %3478 = vmatprep.subr.bf16.mxu0 %v2926
  %3479 = vmatpush1.bf16.msra.mxu0 %v2925
  %3480 = vmatprep.subr.bf16.mxu0 %v2940
  %3481 = vmatpush1.bf16.msra.mxu0 %v2939
  %3482 = vmatprep.subr.bf16.mxu0 %v2954
  %3483 = vmatpush1.bf16.msra.mxu0 %v2953
  %3484 = vmatprep.subr.bf16.mxu0 %v2968
  %3485 = vmatpush1.bf16.msra.mxu0 %v2967
  %3486 = vmatprep.subr.bf16.mxu0 %v2982
  %3487 = vmatpush1.bf16.msra.mxu0 %v2981
  %3488 = vmatprep.subr.bf16.mxu0 %v2996
  %3489 = vmatpush1.bf16.msra.mxu0 %v2995
  %3490 = vmatprep.subr.bf16.mxu0 %v3010
  %3491 = vmatpush1.bf16.msra.mxu0 %v3009
  %3492 = vmatprep.subr.bf16.mxu0 %v3024
  %3493 = vmatpush1.bf16.msra.mxu0 %v3023
  %3494 = vmatprep.subr.bf16.mxu0 %v3038
  %3495 = vmatpush1.bf16.msra.mxu0 %v3037
  %3496 = vmatprep.subr.bf16.mxu0 %v3052
  %3497 = vmatpush1.bf16.msra.mxu0 %v3051
  %3498 = vmatprep.subr.bf16.mxu0 %v3066
  %3499 = vmatpush1.bf16.msra.mxu0 %v3065
  %3500 = vmatprep.subr.bf16.mxu0 %v3080
  %3501 = vmatpush1.bf16.msra.mxu0 %v3079
  %3502 = vmatprep.subr.bf16.mxu0 %v3094
  %3503 = vmatpush1.bf16.msra.mxu0 %v3093
  %3504 = vmatprep.subr.bf16.mxu0 %v3108
  %3505 = vmatpush1.bf16.msra.mxu0 %v3107
  %3506 = vmatprep.subr.bf16.mxu0 %v3122
  %3507 = vmatpush1.bf16.msra.mxu0 %v3121
  %3508 = vmatprep.mubr.bf16.mxu0 %v1934
  %3509 = vmatmul.mubr.bf16.gmra.mrb[0].mxu0 %v1933
  %v3510 = vpop.f32.mrb[0].mxu0
  %v3511 = vadd.f32 %v2190, %v3510
  %v3512 = vpop.f32.mrb[0].mxu0
  %v3513 = vadd.f32 %v2194, %v3512
  %v3514 = vpop.f32.mrb[0].mxu0
  %v3515 = vpop.f32.mrb[0].mxu0
  %3516 = vdwg.mxu0
  %3517 = vmatprep.subr.bf16.mxu0 %v2914
  %3518 = vmatpush1.bf16.msra.mxu0 %v2913
  %3519 = vmatprep.subr.bf16.mxu0 %v2928
  %3520 = vmatpush1.bf16.msra.mxu0 %v2927
  %3521 = vmatprep.subr.bf16.mxu0 %v2942
  %3522 = vmatpush1.bf16.msra.mxu0 %v2941
  %3523 = vmatprep.subr.bf16.mxu0 %v2956
  %3524 = vmatpush1.bf16.msra.mxu0 %v2955
  %3525 = vmatprep.subr.bf16.mxu0 %v2970
  %3526 = vmatpush1.bf16.msra.mxu0 %v2969
  %3527 = vmatprep.subr.bf16.mxu0 %v2984
  %3528 = vmatpush1.bf16.msra.mxu0 %v2983
  %3529 = vmatprep.subr.bf16.mxu0 %v2998
  %3530 = vmatpush1.bf16.msra.mxu0 %v2997
  %3531 = vmatprep.subr.bf16.mxu0 %v3012
  %3532 = vmatpush1.bf16.msra.mxu0 %v3011
  %3533 = vmatprep.subr.bf16.mxu0 %v3026
  %3534 = vmatpush1.bf16.msra.mxu0 %v3025
  %3535 = vmatprep.subr.bf16.mxu0 %v3040
  %3536 = vmatpush1.bf16.msra.mxu0 %v3039
  %3537 = vmatprep.subr.bf16.mxu0 %v3054
  %3538 = vmatpush1.bf16.msra.mxu0 %v3053
  %3539 = vmatprep.subr.bf16.mxu0 %v3068
  %3540 = vmatpush1.bf16.msra.mxu0 %v3067
  %3541 = vmatprep.subr.bf16.mxu0 %v3082
  %3542 = vmatpush1.bf16.msra.mxu0 %v3081
  %3543 = vmatprep.subr.bf16.mxu0 %v3096
  %3544 = vmatpush1.bf16.msra.mxu0 %v3095
  %3545 = vmatprep.subr.bf16.mxu0 %v3110
  %3546 = vmatpush1.bf16.msra.mxu0 %v3109
  %3547 = vmatprep.subr.bf16.mxu0 %v3124
  %3548 = vmatpush1.bf16.msra.mxu0 %v3123
  %3549 = vmatprep.mubr.bf16.mxu0 %v1934
  %3550 = vmatmul.mubr.bf16.gmra.mrb[0].mxu0 %v1933
  %v3551 = vpop.f32.mrb[0].mxu0
  %v3552 = vadd.f32 %v2198, %v3551
  %v3553 = vpop.f32.mrb[0].mxu0
  %v3554 = vadd.f32 %v2202, %v3553
  %v3555 = vpop.f32.mrb[0].mxu0
  %v3556 = vpop.f32.mrb[0].mxu0
  %3557 = vdwg.mxu0
  %3558 = vmatprep.subr.bf16.mxu0 %v2916
  %3559 = vmatpush1.bf16.msra.mxu0 %v2915
  %3560 = vmatprep.subr.bf16.mxu0 %v2930
  %3561 = vmatpush1.bf16.msra.mxu0 %v2929
  %3562 = vmatprep.subr.bf16.mxu0 %v2944
  %3563 = vmatpush1.bf16.msra.mxu0 %v2943
  %3564 = vmatprep.subr.bf16.mxu0 %v2958
  %3565 = vmatpush1.bf16.msra.mxu0 %v2957
  %3566 = vmatprep.subr.bf16.mxu0 %v2972
  %3567 = vmatpush1.bf16.msra.mxu0 %v2971
  %3568 = vmatprep.subr.bf16.mxu0 %v2986
  %3569 = vmatpush1.bf16.msra.mxu0 %v2985
  %3570 = vmatprep.subr.bf16.mxu0 %v3000
  %3571 = vmatpush1.bf16.msra.mxu0 %v2999
  %3572 = vmatprep.subr.bf16.mxu0 %v3014
  %3573 = vmatpush1.bf16.msra.mxu0 %v3013
  %3574 = vmatprep.subr.bf16.mxu0 %v3028
  %3575 = vmatpush1.bf16.msra.mxu0 %v3027
  %3576 = vmatprep.subr.bf16.mxu0 %v3042
  %3577 = vmatpush1.bf16.msra.mxu0 %v3041
  %3578 = vmatprep.subr.bf16.mxu0 %v3056
  %3579 = vmatpush1.bf16.msra.mxu0 %v3055
  %3580 = vmatprep.subr.bf16.mxu0 %v3070
  %3581 = vmatpush1.bf16.msra.mxu0 %v3069
  %3582 = vmatprep.subr.bf16.mxu0 %v3084
  %3583 = vmatpush1.bf16.msra.mxu0 %v3083
  %3584 = vmatprep.subr.bf16.mxu0 %v3098
  %3585 = vmatpush1.bf16.msra.mxu0 %v3097
  %3586 = vmatprep.subr.bf16.mxu0 %v3112
  %3587 = vmatpush1.bf16.msra.mxu0 %v3111
  %3588 = vmatprep.subr.bf16.mxu0 %v3126
  %3589 = vmatpush1.bf16.msra.mxu0 %v3125
  %3590 = vmatprep.mubr.bf16.mxu0 %v1934
  %3591 = vmatmul.mubr.bf16.gmra.mrb[0].mxu0 %v1933
  %v3592 = vpop.f32.mrb[0].mxu0
  %v3593 = vadd.f32 %v2206, %v3592
  %v3594 = vpop.f32.mrb[0].mxu0
  %v3595 = vadd.f32 %v2210, %v3594
  %v3596 = vpop.f32.mrb[0].mxu0
  %v3597 = vpop.f32.mrb[0].mxu0
  %3598 = vdwg.mxu0
  %3599 = vmatprep.subr.bf16.mxu0 %v2918
  %3600 = vmatpush1.bf16.msra.mxu0 %v2917
  %3601 = vmatprep.subr.bf16.mxu0 %v2932
  %3602 = vmatpush1.bf16.msra.mxu0 %v2931
  %3603 = vmatprep.subr.bf16.mxu0 %v2946
  %3604 = vmatpush1.bf16.msra.mxu0 %v2945
  %3605 = vmatprep.subr.bf16.mxu0 %v2960
  %3606 = vmatpush1.bf16.msra.mxu0 %v2959
  %3607 = vmatprep.subr.bf16.mxu0 %v2974
  %3608 = vmatpush1.bf16.msra.mxu0 %v2973
  %3609 = vmatprep.subr.bf16.mxu0 %v2988
  %3610 = vmatpush1.bf16.msra.mxu0 %v2987
  %3611 = vmatprep.subr.bf16.mxu0 %v3002
  %3612 = vmatpush1.bf16.msra.mxu0 %v3001
  %3613 = vmatprep.subr.bf16.mxu0 %v3016
  %3614 = vmatpush1.bf16.msra.mxu0 %v3015
  %3615 = vmatprep.subr.bf16.mxu0 %v3030
  %3616 = vmatpush1.bf16.msra.mxu0 %v3029
  %3617 = vmatprep.subr.bf16.mxu0 %v3044
  %3618 = vmatpush1.bf16.msra.mxu0 %v3043
  %3619 = vmatprep.subr.bf16.mxu0 %v3058
  %3620 = vmatpush1.bf16.msra.mxu0 %v3057
  %3621 = vmatprep.subr.bf16.mxu0 %v3072
  %3622 = vmatpush1.bf16.msra.mxu0 %v3071
  %3623 = vmatprep.subr.bf16.mxu0 %v3086
  %3624 = vmatpush1.bf16.msra.mxu0 %v3085
  %3625 = vmatprep.subr.bf16.mxu0 %v3100
  %3626 = vmatpush1.bf16.msra.mxu0 %v3099
  %3627 = vmatprep.subr.bf16.mxu0 %v3114
  %3628 = vmatpush1.bf16.msra.mxu0 %v3113
  %3629 = vmatprep.subr.bf16.mxu0 %v3128
  %3630 = vmatpush1.bf16.msra.mxu0 %v3127
  %3631 = vmatprep.mubr.bf16.mxu0 %v1934
  %3632 = vmatmul.mubr.bf16.gmra.mrb[0].mxu0 %v1933
  %v3633 = vpop.f32.mrb[0].mxu0
  %v3634 = vadd.f32 %v2214, %v3633
  %v3635 = vpop.f32.mrb[0].mxu0
  %v3636 = vadd.f32 %v2218, %v3635
  %v3637 = vpop.f32.mrb[0].mxu0
  %v3638 = vpop.f32.mrb[0].mxu0
  %3639 = vdwg.mxu0
  %v3640 = vxor.u32 %v3388, 2147483648
  %v3641 = vxor.u32 %v3390, 2147483648
  %v3642 = vxor.u32 %v3429, 2147483648
  %v3643 = vxor.u32 %v3431, 2147483648
  %v3644 = vxor.u32 %v3470, 2147483648
  %v3645 = vxor.u32 %v3472, 2147483648
  %v3646 = vxor.u32 %v3511, 2147483648
  %v3647 = vxor.u32 %v3513, 2147483648
  %v3648 = vxor.u32 %v3552, 2147483648
  %v3649 = vxor.u32 %v3554, 2147483648
  %v3650 = vxor.u32 %v3593, 2147483648
  %v3651 = vxor.u32 %v3595, 2147483648
  %v3652 = vxor.u32 %v3634, 2147483648
  %v3653 = vxor.u32 %v3636, 2147483648
  %v3654 = vmul.f32 %v3640, 1.442695
  %v3655 = vpow.pop %v3654
  %v3656 = vmul.f32 %v3641, 1.442695
  %v3657 = vpow.pop %v3656
  %v3658 = vmul.f32 %v3642, 1.442695
  %v3659 = vpow.pop %v3658
  %v3660 = vmul.f32 %v3643, 1.442695
  %v3661 = vpow.pop %v3660
  %v3662 = vmul.f32 %v3644, 1.442695
  %v3663 = vpow.pop %v3662
  %v3664 = vmul.f32 %v3645, 1.442695
  %v3665 = vpow.pop %v3664
  %v3666 = vmul.f32 %v3646, 1.442695
  %v3667 = vpow.pop %v3666
  %v3668 = vmul.f32 %v3647, 1.442695
  %v3669 = vpow.pop %v3668
  %v3670 = vmul.f32 %v3648, 1.442695
  %v3671 = vpow.pop %v3670
  %v3672 = vmul.f32 %v3649, 1.442695
  %v3673 = vpow.pop %v3672
  %v3674 = vmul.f32 %v3650, 1.442695
  %v3675 = vpow.pop %v3674
  %v3676 = vmul.f32 %v3651, 1.442695
  %v3677 = vpow.pop %v3676
  %v3678 = vmul.f32 %v3652, 1.442695
  %v3679 = vpow.pop %v3678
  %v3680 = vmul.f32 %v3653, 1.442695
  %v3681 = vpow.pop %v3680
  %v3682 = vadd.f32 %v3655, 1.0
  %v3683 = vadd.f32 %v3657, 1.0
  %v3684 = vadd.f32 %v3659, 1.0
  %v3685 = vadd.f32 %v3661, 1.0
  %v3686 = vadd.f32 %v3663, 1.0
  %v3687 = vadd.f32 %v3665, 1.0
  %v3688 = vadd.f32 %v3667, 1.0
  %v3689 = vadd.f32 %v3669, 1.0
  %v3690 = vadd.f32 %v3671, 1.0
  %v3691 = vadd.f32 %v3673, 1.0
  %v3692 = vadd.f32 %v3675, 1.0
  %v3693 = vadd.f32 %v3677, 1.0
  %v3694 = vadd.f32 %v3679, 1.0
  %v3695 = vadd.f32 %v3681, 1.0
  %v3696 = vrcp.pop %v3682
  %v3697 = vmul.f32 1.0, %v3696
  %v3698 = vrcp.pop %v3683
  %v3699 = vmul.f32 1.0, %v3698
  %v3700 = vrcp.pop %v3684
  %v3701 = vmul.f32 1.0, %v3700
  %v3702 = vrcp.pop %v3685
  %v3703 = vmul.f32 1.0, %v3702
  %v3704 = vrcp.pop %v3686
  %v3705 = vmul.f32 1.0, %v3704
  %v3706 = vrcp.pop %v3687
  %v3707 = vmul.f32 1.0, %v3706
  %v3708 = vrcp.pop %v3688
  %v3709 = vmul.f32 1.0, %v3708
  %v3710 = vrcp.pop %v3689
  %v3711 = vmul.f32 1.0, %v3710
  %v3712 = vrcp.pop %v3690
  %v3713 = vmul.f32 1.0, %v3712
  %v3714 = vrcp.pop %v3691
  %v3715 = vmul.f32 1.0, %v3714
  %v3716 = vrcp.pop %v3692
  %v3717 = vmul.f32 1.0, %v3716
  %v3718 = vrcp.pop %v3693
  %v3719 = vmul.f32 1.0, %v3718
  %v3720 = vrcp.pop %v3694
  %v3721 = vmul.f32 1.0, %v3720
  %v3722 = vrcp.pop %v3695
  %v3723 = vmul.f32 1.0, %v3722
  %3724 = vst [vmem:[%s11] sm:$0xff] %v3697
  %3725 = vst [vmem:[%s11 + $0x8] sm:$0xff] %v3699
  %3726 = vst [vmem:[%s11 + $0x10] sm:$0xff] %v3701
  %3727 = vst [vmem:[%s11 + $0x18] sm:$0xff] %v3703
  %3728 = vst [vmem:[%s11 + $0x20] sm:$0xff] %v3705
  %3729 = vst [vmem:[%s11 + $0x28] sm:$0xff] %v3707
  %3730 = vst [vmem:[%s11 + $0x30] sm:$0xff] %v3709
  %3731 = vst [vmem:[%s11 + $0x38] sm:$0xff] %v3711
  %3732 = vst [vmem:[%s11 + $0x40] sm:$0xff] %v3713
  %3733 = vst [vmem:[%s11 + $0x48] sm:$0xff] %v3715
  %3734 = vst [vmem:[%s11 + $0x50] sm:$0xff] %v3717
  %3735 = vst [vmem:[%s11 + $0x58] sm:$0xff] %v3719
  %3736 = vst [vmem:[%s11 + $0x60] sm:$0xff] %v3721
  %3737 = vst [vmem:[%s11 + $0x68] sm:$0xff] %v3723
  %3738 = vrot.lane.b32.xlu0 %v1835, 64
  %v3739 = vpop.permute.xlu0 %3738
  %vm3741 = vcmask 523264
  %v3742 = vsel %vm3741, %v1823, %v3739
  %vm3743 = vcmask 785408
  %v3744 = vsel %vm3743, %v3742, 0.0
  %3745 = vst [vmem:[%s12] sm:$0xff] %v3744
  // Predicated region
  $region46: #{vae_dual_forward.1} parent=0 // pred_check
    _
  $region47: #{vae_dual_forward.1} parent=0 // pred_check_branch
    %3747 = sbr.rel (0) target = $region49
  $region48: #{vae_dual_forward.1} parent=0 // pred_region
    _
  $region49: #{vae_dual_forward.1} parent=0 // pred_fallthru
    _
  // Predicated region
  $region50: #{vae_dual_forward.1} parent=0 // pred_check
    _
  $region51: #{vae_dual_forward.1} parent=0 // pred_check_branch
    %3749 = sbr.rel (0) target = $region53
  $region52: #{vae_dual_forward.1} parent=0 // pred_region
    _
  $region53: #{vae_dual_forward.1} parent=0 // pred_fallthru
    _
  // Predicated region
  $region54: #{vae_dual_forward.1} parent=0 // pred_check
    _
  $region55: #{vae_dual_forward.1} parent=0 // pred_check_branch
    %3751 = sbr.rel (0) target = $region57
  $region56: #{vae_dual_forward.1} parent=0 // pred_region
    _
  $region57: #{vae_dual_forward.1} parent=0 // pred_fallthru
    _
  // Predicated region
  $region58: #{vae_dual_forward.1} parent=0 // pred_check
    _
  $region59: #{vae_dual_forward.1} parent=0 // pred_check_branch
    %3753 = sbr.rel (0) target = $region61
  $region60: #{vae_dual_forward.1} parent=0 // pred_region
    _
  $region61: #{vae_dual_forward.1} parent=0 // pred_fallthru
    _

</llo_original>
